<compile_context>
chip_gen: v7x
topology: tpu7x:2x2x1
jax: 0.10.0
libtpu: 0.0.40
codegen_flags: <defaults>
</compile_context>

<pallas_src>
import numpy as np

import jax
import jax.numpy as jnp
from jax.experimental import pallas as pl
from jax.experimental.pallas import tpu as pltpu


TB = 8  # samples per grid step (M=256/112 conv rows; fine on v5e/v6e/v7x MXUs)


def _tree_sum(terms):
    terms = list(terms)
    while len(terms) > 1:
        nxt = [terms[i] + terms[i + 1] for i in range(0, len(terms) - 1, 2)]
        if len(terms) % 2:
            nxt.append(terms[-1])
        terms = nxt
    return terms[0]


# ---------------------------------------------------------------------------
# Fused kernel.  Per-sample activation layout is [H, W*C] (height on sublanes,
# width-major / channel-minor on lanes); TB samples are stacked on sublanes.
# ---------------------------------------------------------------------------
def _net_kernel(x_ref,              # (1, TB*32+8, 128) f32   input block
                wc1_ref, b1_ref,    # (5, 128, 168) bf16, (1, 168) f32  conv1
                r1_ref, s1_ref,     # (2, TB*14+8, TB*32), (2, 168, 84) bf16
                wc2_ref, b2_ref,    # (5, 84, 160) bf16, (1, 160) f32   conv2
                r2_ref, s2_ref,     # (2, 5*TB, TB*14), (2, 160, 80) bf16
                fw1_ref,            # (5, 80, 128) bf16                 fc1
                fw23_ref,           # (2, 128, 128) bf16                fc2/fc3
                fb_ref,             # (3, 128) f32                      fc biases
                o_ref):             # (TB, 128) f32
    f32 = jnp.float32
    bf16 = jnp.bfloat16
    m1 = TB * 32          # conv1 output rows (stride 32/sample, 28 valid)
    m2 = TB * 14          # conv2 output rows (stride 14/sample, 10 valid)

    def mxu(a, b):
        return jnp.dot(a, b, preferred_element_type=f32)

    x = x_ref[0].astype(bf16)                                   # [TB*32+8, 128]

    # ---- conv1 (5x5, 3->6): 5 sublane-shifted taps, dj/ci folded in weight ----
    y1 = _tree_sum([mxu(x[di:di + m1, :], wc1_ref[di]) for di in range(5)])
    y1 = jnp.maximum(y1 + b1_ref[...], 0.0)                     # [TB*32, 168] f32

    # ---- maxpool 2x2 (0/1 row/col selector matmuls; also drops invalid rows) ----
    y1b = y1.astype(bf16)
    t1 = jnp.maximum(mxu(r1_ref[0], y1b), mxu(r1_ref[1], y1b))  # [TB*14+8, 168]
    t1b = t1.astype(bf16)
    p1 = jnp.maximum(mxu(t1b, s1_ref[0]), mxu(t1b, s1_ref[1]))  # [TB*14+8, 84]
    p1b = p1.astype(bf16)

    # ---- conv2 (5x5, 6->16): 5 sublane-shifted taps ----
    y2 = _tree_sum([mxu(p1b[di:di + m2, :], wc2_ref[di]) for di in range(5)])
    y2 = jnp.maximum(y2 + b2_ref[...], 0.0)                     # [TB*14, 160] f32

    # ---- maxpool 2x2; row selector regroups rows as (h, sample) for fc1 ----
    y2b = y2.astype(bf16)
    t2 = jnp.maximum(mxu(r2_ref[0], y2b), mxu(r2_ref[1], y2b))  # [5*TB, 160]
    t2b = t2.astype(bf16)
    p2 = jnp.maximum(mxu(t2b, s2_ref[0]), mxu(t2b, s2_ref[1]))  # [5*TB, 80]
    p2b = p2.astype(bf16)

    fb = fb_ref[...]                                            # [3, 128]

    # ---- fc1 (400 -> 120, padded to 128): flatten folded into the weight ----
    h = _tree_sum([mxu(p2b[hh * TB:(hh + 1) * TB, :], fw1_ref[hh])
                   for hh in range(5)])                         # [TB, 128]
    h = jnp.maximum(h + fb[0:1, :], 0.0)

    # ---- fc2 (120 -> 84, padded) ----
    h = jnp.maximum(mxu(h.astype(bf16), fw23_ref[0]) + fb[1:2, :], 0.0)

    # ---- fc3 (84 -> 10, padded); Dropout(p=0.5) in eval mode == identity ----
    out = mxu(h.astype(bf16), fw23_ref[1]) + fb[2:3, :]

    o_ref[...] = out                                            # dense (8,128)


# ---------------------------------------------------------------------------
# Parameter initialization (PyTorch-shaped, PyTorch default uniform init).
# ---------------------------------------------------------------------------
def init_params(key):
    def u(k, shape, fan_in):
        bound = 1.0 / float(fan_in) ** 0.5
        return jax.random.uniform(k, shape, jnp.float32, minval=-bound, maxval=bound)

    ks = jax.random.split(key, 10)
    return dict(
        conv1_w=u(ks[0], (6, 3, 5, 5), 75),   conv1_b=u(ks[1], (6,), 75),
        conv2_w=u(ks[2], (16, 6, 5, 5), 150), conv2_b=u(ks[3], (16,), 150),
        fc1_w=u(ks[4], (120, 400), 400),      fc1_b=u(ks[5], (120,), 400),
        fc2_w=u(ks[6], (84, 120), 120),       fc2_b=u(ks[7], (84,), 120),
        fc3_w=u(ks[8], (10, 84), 84),         fc3_b=u(ks[9], (10,), 84),
    )


# ---------------------------------------------------------------------------
# One-time transforms of PyTorch-shaped params into kernel operands.
# ---------------------------------------------------------------------------
def prepare_kernel_params(p, tb=TB):
    bf16 = jnp.bfloat16
    cw1 = np.asarray(p["conv1_w"], np.float32)   # [6, 3, 5, 5]
    cw2 = np.asarray(p["conv2_w"], np.float32)   # [16, 6, 5, 5]

    # conv1: one [128,168] matrix per row-tap di; dj/ci offsets absorbed.
    wc1 = np.zeros((5, 128, 168), np.float32)
    for di in range(5):
        for dj in range(5):
            blk = cw1[:, :, di, dj].T            # [ci, co] = [3, 6]
            for w in range(28):
                r = (w + dj) * 3
                wc1[di, r:r + 3, w * 6:w * 6 + 6] += blk
    b1 = np.tile(np.asarray(p["conv1_b"], np.float32), 28)[None, :]      # [1,168]

    # conv2: one [84,160] matrix per row-tap di.
    wc2 = np.zeros((5, 84, 160), np.float32)
    for di in range(5):
        for dj in range(5):
            blk = cw2[:, :, di, dj].T            # [ci, co] = [6, 16]
            for w in range(10):
                r = (w + dj) * 6
                wc2[di, r:r + 6, w * 16:w * 16 + 16] += blk
    b2 = np.tile(np.asarray(p["conv2_b"], np.float32), 10)[None, :]      # [1,160]

    # pool1 selectors: rows (sample-stride 32, 28 valid) -> (stride 14) + 8 pad
    r1 = np.zeros((2, tb * 14 + 8, tb * 32), np.float32)
    for s in range(tb):
        for i in range(14):
            r1[0, s * 14 + i, s * 32 + 2 * i] = 1.0
            r1[1, s * 14 + i, s * 32 + 2 * i + 1] = 1.0
    s1 = np.zeros((2, 168, 84), np.float32)
    for w in range(14):
        for c in range(6):
            s1[0, (2 * w) * 6 + c, w * 6 + c] = 1.0
            s1[1, (2 * w + 1) * 6 + c, w * 6 + c] = 1.0

    # pool2 selectors: rows (sample-stride 14, 10 valid) -> ordered (h, sample)
    r2 = np.zeros((2, 5 * tb, tb * 14), np.float32)
    for h in range(5):
        for s in range(tb):
            r2[0, h * tb + s, s * 14 + 2 * h] = 1.0
            r2[1, h * tb + s, s * 14 + 2 * h + 1] = 1.0
    s2 = np.zeros((2, 160, 80), np.float32)
    for w in range(5):
        for c in range(16):
            s2[0, (2 * w) * 16 + c, w * 16 + c] = 1.0
            s2[1, (2 * w + 1) * 16 + c, w * 16 + c] = 1.0

    # fc1: fold torch.flatten's (c, h, w) ordering; pad 120 -> 128 lanes.
    fw1 = np.asarray(p["fc1_w"], np.float32).reshape(120, 16, 5, 5)      # [o,c,h,w]
    fw1 = np.transpose(fw1, (2, 3, 1, 0)).reshape(5, 80, 120)            # [h, w*16+c, o]
    fw1 = np.pad(fw1, ((0, 0), (0, 0), (0, 8)))                          # [5, 80, 128]

    fw2 = np.pad(np.asarray(p["fc2_w"], np.float32).T, ((0, 8), (0, 44)))    # [128,128]
    fw3 = np.pad(np.asarray(p["fc3_w"], np.float32).T, ((0, 44), (0, 118)))  # [128,128]
    fw23 = np.stack([fw2, fw3])

    fb = np.stack([np.pad(np.asarray(p["fc1_b"], np.float32), (0, 8)),
                   np.pad(np.asarray(p["fc2_b"], np.float32), (0, 44)),
                   np.pad(np.asarray(p["fc3_b"], np.float32), (0, 118))])    # [3,128]

    return (jnp.asarray(wc1, bf16), jnp.asarray(b1, jnp.float32),
            jnp.asarray(r1, bf16), jnp.asarray(s1, bf16),
            jnp.asarray(wc2, bf16), jnp.asarray(b2, jnp.float32),
            jnp.asarray(r2, bf16), jnp.asarray(s2, bf16),
            jnp.asarray(fw1, bf16), jnp.asarray(fw23, bf16),
            jnp.asarray(fb, jnp.float32))


# ---------------------------------------------------------------------------
# Forward wrapper.
# ---------------------------------------------------------------------------
@jax.jit
def net_forward(kparams, x_nchw):
    B = x_nchw.shape[0]
    nblk = -(-B // TB)
    Bp = nblk * TB

    # NCHW -> per-sample [H, W*Cin], pad lanes 96->128, pad batch to TB, stack
    # TB samples per block and add 8 zero tail rows (conv row-tap slack).
    xl = jnp.transpose(x_nchw, (0, 2, 3, 1)).reshape(B, 32, 96)
    xl = jnp.pad(xl, ((0, Bp - B), (0, 0), (0, 32)))
    xl = xl.reshape(nblk, TB * 32, 128)
    xl = jnp.pad(xl, ((0, 0), (0, 8), (0, 0)))                 # (nblk, TB*32+8, 128)

    def full_spec(a):
        nd = a.ndim
        return pl.BlockSpec(a.shape, lambda b, _n=nd: (0,) * _n)

    in_specs = [pl.BlockSpec((1, TB * 32 + 8, 128), lambda b: (b, 0, 0))]
    in_specs += [full_spec(a) for a in kparams]

    # Actual MXU work (block-weight + selector inflation), per block.
    m1, m2 = TB * 32, TB * 14
    flops_blk = 2 * (5 * m1 * 128 * 168          # conv1 row-taps
                     + 2 * (m2 + 8) * m1 * 168   # pool1 row selectors
                     + 2 * (m2 + 8) * 168 * 84   # pool1 col selectors
                     + 5 * m2 * 84 * 160         # conv2 row-taps
                     + 2 * 5 * TB * m2 * 160     # pool2 row selectors
                     + 2 * 5 * TB * 160 * 80     # pool2 col selectors
                     + 5 * TB * 80 * 128         # fc1
                     + 2 * TB * 128 * 128)       # fc2 + fc3
    bytes_accessed = (int(xl.size) * xl.dtype.itemsize
                      + sum(int(a.size) * a.dtype.itemsize for a in kparams)
                      + Bp * 128 * 4)

    out = pl.pallas_call(
        _net_kernel,
        out_shape=jax.ShapeDtypeStruct((Bp, 128), jnp.float32),
        grid=(nblk,),
        in_specs=in_specs,
        out_specs=pl.BlockSpec((TB, 128), lambda b: (b, 0)),
        compiler_params=pltpu.CompilerParams(
            dimension_semantics=("parallel",),    # batch blocks across TCs (v7x)
            vmem_limit_bytes=32 * 1024 * 1024),
        cost_estimate=pl.CostEstimate(
            flops=nblk * flops_blk, transcendentals=0,
            bytes_accessed=bytes_accessed),
    )(xl, *kparams)

    return out[:B, :10]                                        # drop padding


# ---------------------------------------------------------------------------
# Plain-JAX reference (mirrors the PyTorch module exactly, eval-mode dropout).
# ---------------------------------------------------------------------------
def ref_forward(p, x):
    def conv(x, w, b):
        k = w.shape[-1]
        oh, ow = x.shape[2] - k + 1, x.shape[3] - k + 1
        out = jnp.zeros((x.shape[0], w.shape[0], oh, ow), jnp.float32)
        for di in range(k):
            for dj in range(k):
                out = out + jnp.einsum("bchw,oc->bohw",
                                       x[:, :, di:di + oh, dj:dj + ow],
                                       w[:, :, di, dj])
        return out + b[None, :, None, None]

    def pool(x):
        b, c, h, w = x.shape
        return jnp.max(x.reshape(b, c, h // 2, 2, w // 2, 2), axis=(3, 5))

    y = pool(jnp.maximum(conv(x, p["conv1_w"], p["conv1_b"]), 0.0))
    y = pool(jnp.maximum(conv(y, p["conv2_w"], p["conv2_b"]), 0.0))
    f = y.reshape(y.shape[0], -1)                              # torch.flatten(x, 1)
    h = jnp.maximum(f @ p["fc1_w"].T + p["fc1_b"], 0.0)
    h = jnp.maximum(h @ p["fc2_w"].T + p["fc2_b"], 0.0)
    return h @ p["fc3_w"].T + p["fc3_b"]                       # dropout(eval) = id


if __name__ == "__main__":
    key = jax.random.PRNGKey(0)
    key, kx = jax.random.split(key)

    pt_params = init_params(key)
    kparams = prepare_kernel_params(pt_params)

    # CIFAR-sized input; B=16 -> grid of 2 blocks (exercises multi-block path
    # and the v7x two-TensorCore split).
    x = jax.random.normal(kx, (16, 3, 32, 32), jnp.float32)

    out = net_forward(kparams, x)
    jax.block_until_ready(out)

    assert out.shape == (16, 10), out.shape
    assert out.dtype == jnp.float32

    ref = ref_forward(pt_params, x)
    err = float(jnp.max(jnp.abs(out - ref)))
    # bf16 MXU operands vs f32 reference: tolerance loosened accordingly.
    assert err < 5e-2, f"max abs err vs reference: {err}"

    print("KERNEL_OK")
</pallas_src>

<mosaic_0001>
module attributes {stable_mosaic.version = 11 : i64} {
  func.func @_net_kernel(%arg0: i32, %arg1: memref<1x264x128xf32, #tpu.memory_space<vmem>>, %arg2: memref<5x128x168xbf16, #tpu.memory_space<vmem>>, %arg3: memref<1x168xf32, #tpu.memory_space<vmem>>, %arg4: memref<2x120x256xbf16, #tpu.memory_space<vmem>>, %arg5: memref<2x168x84xbf16, #tpu.memory_space<vmem>>, %arg6: memref<5x84x160xbf16, #tpu.memory_space<vmem>>, %arg7: memref<1x160xf32, #tpu.memory_space<vmem>>, %arg8: memref<2x40x112xbf16, #tpu.memory_space<vmem>>, %arg9: memref<2x160x80xbf16, #tpu.memory_space<vmem>>, %arg10: memref<5x80x128xbf16, #tpu.memory_space<vmem>>, %arg11: memref<2x128x128xbf16, #tpu.memory_space<vmem>>, %arg12: memref<3x128xf32, #tpu.memory_space<vmem>>, %arg13: memref<8x128xf32, #tpu.memory_space<vmem>>) attributes {dimension_semantics = [#tpu.dimension_semantics<parallel>], iteration_bounds = array<i64: 2>, scalar_prefetch = 0 : i64, scratch_operands = 0 : i64, tpu.core_type = #tpu.core_type<tc>, window_params = [{transform_indices = @transform_0, window_bounds = array<i64: 1, 264, 128>}, {pipeline_mode = #tpu.pipeline_mode<synchronous>, transform_indices = @transform_1, window_bounds = array<i64: 5, 128, 168>}, {pipeline_mode = #tpu.pipeline_mode<synchronous>, transform_indices = @transform_2, window_bounds = array<i64: 1, 168>}, {pipeline_mode = #tpu.pipeline_mode<synchronous>, transform_indices = @transform_3, window_bounds = array<i64: 2, 120, 256>}, {pipeline_mode = #tpu.pipeline_mode<synchronous>, transform_indices = @transform_4, window_bounds = array<i64: 2, 168, 84>}, {pipeline_mode = #tpu.pipeline_mode<synchronous>, transform_indices = @transform_5, window_bounds = array<i64: 5, 84, 160>}, {pipeline_mode = #tpu.pipeline_mode<synchronous>, transform_indices = @transform_6, window_bounds = array<i64: 1, 160>}, {pipeline_mode = #tpu.pipeline_mode<synchronous>, transform_indices = @transform_7, window_bounds = array<i64: 2, 40, 112>}, {pipeline_mode = #tpu.pipeline_mode<synchronous>, transform_indices = @transform_8, window_bounds = array<i64: 2, 160, 80>}, {pipeline_mode = #tpu.pipeline_mode<synchronous>, transform_indices = @transform_9, window_bounds = array<i64: 5, 80, 128>}, {pipeline_mode = #tpu.pipeline_mode<synchronous>, transform_indices = @transform_10, window_bounds = array<i64: 2, 128, 128>}, {pipeline_mode = #tpu.pipeline_mode<synchronous>, transform_indices = @transform_11, window_bounds = array<i64: 3, 128>}, {transform_indices = @transform_12, window_bounds = array<i64: 8, 128>}]} {
    %c0 = arith.constant 0 : index
    %c0_0 = arith.constant 0 : index
    %c0_1 = arith.constant 0 : index
    %0 = vector.load %arg1[%c0, %c0_0, %c0_1] : memref<1x264x128xf32, #tpu.memory_space<vmem>>, vector<1x264x128xf32>
    %1 = vector.shape_cast %0 : vector<1x264x128xf32> to vector<264x128xf32>
    %2 = arith.truncf %1 : vector<264x128xf32> to vector<264x128xbf16>
    %3 = vector.extract_strided_slice %2 {offsets = [0, 0], sizes = [256, 128], strides = [1, 1]} : vector<264x128xbf16> to vector<256x128xbf16>
    %c0_2 = arith.constant 0 : index
    %c0_3 = arith.constant 0 : index
    %c0_4 = arith.constant 0 : index
    %4 = vector.load %arg2[%c0_2, %c0_3, %c0_4] : memref<5x128x168xbf16, #tpu.memory_space<vmem>>, vector<1x128x168xbf16>
    %5 = vector.shape_cast %4 : vector<1x128x168xbf16> to vector<128x168xbf16>
    %cst = arith.constant dense<0.000000e+00> : vector<256x168xf32>
    %6 = tpu.matmul %3, %5, %cst {dimension_numbers = #tpu.dot_dimension_numbers<[1], [0], [0], [1], [0, 0, 1, 1], [], []>} : vector<256x128xbf16>, vector<128x168xbf16>, vector<256x168xf32> -> vector<256x168xf32>
    %7 = vector.extract_strided_slice %2 {offsets = [1, 0], sizes = [256, 128], strides = [1, 1]} : vector<264x128xbf16> to vector<256x128xbf16>
    %c1 = arith.constant 1 : index
    %c0_5 = arith.constant 0 : index
    %c0_6 = arith.constant 0 : index
    %8 = vector.load %arg2[%c1, %c0_5, %c0_6] : memref<5x128x168xbf16, #tpu.memory_space<vmem>>, vector<1x128x168xbf16>
    %9 = vector.shape_cast %8 : vector<1x128x168xbf16> to vector<128x168xbf16>
    %cst_7 = arith.constant dense<0.000000e+00> : vector<256x168xf32>
    %10 = tpu.matmul %7, %9, %cst_7 {dimension_numbers = #tpu.dot_dimension_numbers<[1], [0], [0], [1], [0, 0, 1, 1], [], []>} : vector<256x128xbf16>, vector<128x168xbf16>, vector<256x168xf32> -> vector<256x168xf32>
    %11 = vector.extract_strided_slice %2 {offsets = [2, 0], sizes = [256, 128], strides = [1, 1]} : vector<264x128xbf16> to vector<256x128xbf16>
    %c2 = arith.constant 2 : index
    %c0_8 = arith.constant 0 : index
    %c0_9 = arith.constant 0 : index
    %12 = vector.load %arg2[%c2, %c0_8, %c0_9] : memref<5x128x168xbf16, #tpu.memory_space<vmem>>, vector<1x128x168xbf16>
    %13 = vector.shape_cast %12 : vector<1x128x168xbf16> to vector<128x168xbf16>
    %cst_10 = arith.constant dense<0.000000e+00> : vector<256x168xf32>
    %14 = tpu.matmul %11, %13, %cst_10 {dimension_numbers = #tpu.dot_dimension_numbers<[1], [0], [0], [1], [0, 0, 1, 1], [], []>} : vector<256x128xbf16>, vector<128x168xbf16>, vector<256x168xf32> -> vector<256x168xf32>
    %15 = vector.extract_strided_slice %2 {offsets = [3, 0], sizes = [256, 128], strides = [1, 1]} : vector<264x128xbf16> to vector<256x128xbf16>
    %c3 = arith.constant 3 : index
    %c0_11 = arith.constant 0 : index
    %c0_12 = arith.constant 0 : index
    %16 = vector.load %arg2[%c3, %c0_11, %c0_12] : memref<5x128x168xbf16, #tpu.memory_space<vmem>>, vector<1x128x168xbf16>
    %17 = vector.shape_cast %16 : vector<1x128x168xbf16> to vector<128x168xbf16>
    %cst_13 = arith.constant dense<0.000000e+00> : vector<256x168xf32>
    %18 = tpu.matmul %15, %17, %cst_13 {dimension_numbers = #tpu.dot_dimension_numbers<[1], [0], [0], [1], [0, 0, 1, 1], [], []>} : vector<256x128xbf16>, vector<128x168xbf16>, vector<256x168xf32> -> vector<256x168xf32>
    %19 = vector.extract_strided_slice %2 {offsets = [4, 0], sizes = [256, 128], strides = [1, 1]} : vector<264x128xbf16> to vector<256x128xbf16>
    %c4 = arith.constant 4 : index
    %c0_14 = arith.constant 0 : index
    %c0_15 = arith.constant 0 : index
    %20 = vector.load %arg2[%c4, %c0_14, %c0_15] : memref<5x128x168xbf16, #tpu.memory_space<vmem>>, vector<1x128x168xbf16>
    %21 = vector.shape_cast %20 : vector<1x128x168xbf16> to vector<128x168xbf16>
    %cst_16 = arith.constant dense<0.000000e+00> : vector<256x168xf32>
    %22 = tpu.matmul %19, %21, %cst_16 {dimension_numbers = #tpu.dot_dimension_numbers<[1], [0], [0], [1], [0, 0, 1, 1], [], []>} : vector<256x128xbf16>, vector<128x168xbf16>, vector<256x168xf32> -> vector<256x168xf32>
    %23 = arith.addf %6, %10 : vector<256x168xf32>
    %24 = arith.addf %14, %18 : vector<256x168xf32>
    %25 = arith.addf %23, %24 : vector<256x168xf32>
    %26 = arith.addf %25, %22 : vector<256x168xf32>
    %c0_17 = arith.constant 0 : index
    %c0_18 = arith.constant 0 : index
    %27 = vector.load %arg3[%c0_17, %c0_18] : memref<1x168xf32, #tpu.memory_space<vmem>>, vector<1x168xf32>
    %28 = vector.broadcast %27 : vector<1x168xf32> to vector<256x168xf32>
    %29 = arith.addf %26, %28 : vector<256x168xf32>
    %cst_19 = arith.constant 0.000000e+00 : f32
    %30 = vector.broadcast %cst_19 : f32 to vector<256x168xf32>
    %31 = arith.maximumf %29, %30 : vector<256x168xf32>
    %32 = arith.truncf %31 : vector<256x168xf32> to vector<256x168xbf16>
    %c0_20 = arith.constant 0 : index
    %c0_21 = arith.constant 0 : index
    %c0_22 = arith.constant 0 : index
    %33 = vector.load %arg4[%c0_20, %c0_21, %c0_22] : memref<2x120x256xbf16, #tpu.memory_space<vmem>>, vector<1x120x256xbf16>
    %34 = vector.shape_cast %33 : vector<1x120x256xbf16> to vector<120x256xbf16>
    %cst_23 = arith.constant dense<0.000000e+00> : vector<120x168xf32>
    %35 = tpu.matmul %34, %32, %cst_23 {dimension_numbers = #tpu.dot_dimension_numbers<[1], [0], [0], [1], [0, 0, 1, 1], [], []>} : vector<120x256xbf16>, vector<256x168xbf16>, vector<120x168xf32> -> vector<120x168xf32>
    %c1_24 = arith.constant 1 : index
    %c0_25 = arith.constant 0 : index
    %c0_26 = arith.constant 0 : index
    %36 = vector.load %arg4[%c1_24, %c0_25, %c0_26] : memref<2x120x256xbf16, #tpu.memory_space<vmem>>, vector<1x120x256xbf16>
    %37 = vector.shape_cast %36 : vector<1x120x256xbf16> to vector<120x256xbf16>
    %cst_27 = arith.constant dense<0.000000e+00> : vector<120x168xf32>
    %38 = tpu.matmul %37, %32, %cst_27 {dimension_numbers = #tpu.dot_dimension_numbers<[1], [0], [0], [1], [0, 0, 1, 1], [], []>} : vector<120x256xbf16>, vector<256x168xbf16>, vector<120x168xf32> -> vector<120x168xf32>
    %39 = arith.maximumf %35, %38 : vector<120x168xf32>
    %40 = arith.truncf %39 : vector<120x168xf32> to vector<120x168xbf16>
    %c0_28 = arith.constant 0 : index
    %c0_29 = arith.constant 0 : index
    %c0_30 = arith.constant 0 : index
    %41 = vector.load %arg5[%c0_28, %c0_29, %c0_30] : memref<2x168x84xbf16, #tpu.memory_space<vmem>>, vector<1x168x84xbf16>
    %42 = vector.shape_cast %41 : vector<1x168x84xbf16> to vector<168x84xbf16>
    %cst_31 = arith.constant dense<0.000000e+00> : vector<120x84xf32>
    %43 = tpu.matmul %40, %42, %cst_31 {dimension_numbers = #tpu.dot_dimension_numbers<[1], [0], [0], [1], [0, 0, 1, 1], [], []>} : vector<120x168xbf16>, vector<168x84xbf16>, vector<120x84xf32> -> vector<120x84xf32>
    %c1_32 = arith.constant 1 : index
    %c0_33 = arith.constant 0 : index
    %c0_34 = arith.constant 0 : index
    %44 = vector.load %arg5[%c1_32, %c0_33, %c0_34] : memref<2x168x84xbf16, #tpu.memory_space<vmem>>, vector<1x168x84xbf16>
    %45 = vector.shape_cast %44 : vector<1x168x84xbf16> to vector<168x84xbf16>
    %cst_35 = arith.constant dense<0.000000e+00> : vector<120x84xf32>
    %46 = tpu.matmul %40, %45, %cst_35 {dimension_numbers = #tpu.dot_dimension_numbers<[1], [0], [0], [1], [0, 0, 1, 1], [], []>} : vector<120x168xbf16>, vector<168x84xbf16>, vector<120x84xf32> -> vector<120x84xf32>
    %47 = arith.maximumf %43, %46 : vector<120x84xf32>
    %48 = arith.truncf %47 : vector<120x84xf32> to vector<120x84xbf16>
    %49 = vector.extract_strided_slice %48 {offsets = [0, 0], sizes = [112, 84], strides = [1, 1]} : vector<120x84xbf16> to vector<112x84xbf16>
    %c0_36 = arith.constant 0 : index
    %c0_37 = arith.constant 0 : index
    %c0_38 = arith.constant 0 : index
    %50 = vector.load %arg6[%c0_36, %c0_37, %c0_38] : memref<5x84x160xbf16, #tpu.memory_space<vmem>>, vector<1x84x160xbf16>
    %51 = vector.shape_cast %50 : vector<1x84x160xbf16> to vector<84x160xbf16>
    %cst_39 = arith.constant dense<0.000000e+00> : vector<112x160xf32>
    %52 = tpu.matmul %49, %51, %cst_39 {dimension_numbers = #tpu.dot_dimension_numbers<[1], [0], [0], [1], [0, 0, 1, 1], [], []>} : vector<112x84xbf16>, vector<84x160xbf16>, vector<112x160xf32> -> vector<112x160xf32>
    %53 = vector.extract_strided_slice %48 {offsets = [1, 0], sizes = [112, 84], strides = [1, 1]} : vector<120x84xbf16> to vector<112x84xbf16>
    %c1_40 = arith.constant 1 : index
    %c0_41 = arith.constant 0 : index
    %c0_42 = arith.constant 0 : index
    %54 = vector.load %arg6[%c1_40, %c0_41, %c0_42] : memref<5x84x160xbf16, #tpu.memory_space<vmem>>, vector<1x84x160xbf16>
    %55 = vector.shape_cast %54 : vector<1x84x160xbf16> to vector<84x160xbf16>
    %cst_43 = arith.constant dense<0.000000e+00> : vector<112x160xf32>
    %56 = tpu.matmul %53, %55, %cst_43 {dimension_numbers = #tpu.dot_dimension_numbers<[1], [0], [0], [1], [0, 0, 1, 1], [], []>} : vector<112x84xbf16>, vector<84x160xbf16>, vector<112x160xf32> -> vector<112x160xf32>
    %57 = vector.extract_strided_slice %48 {offsets = [2, 0], sizes = [112, 84], strides = [1, 1]} : vector<120x84xbf16> to vector<112x84xbf16>
    %c2_44 = arith.constant 2 : index
    %c0_45 = arith.constant 0 : index
    %c0_46 = arith.constant 0 : index
    %58 = vector.load %arg6[%c2_44, %c0_45, %c0_46] : memref<5x84x160xbf16, #tpu.memory_space<vmem>>, vector<1x84x160xbf16>
    %59 = vector.shape_cast %58 : vector<1x84x160xbf16> to vector<84x160xbf16>
    %cst_47 = arith.constant dense<0.000000e+00> : vector<112x160xf32>
    %60 = tpu.matmul %57, %59, %cst_47 {dimension_numbers = #tpu.dot_dimension_numbers<[1], [0], [0], [1], [0, 0, 1, 1], [], []>} : vector<112x84xbf16>, vector<84x160xbf16>, vector<112x160xf32> -> vector<112x160xf32>
    %61 = vector.extract_strided_slice %48 {offsets = [3, 0], sizes = [112, 84], strides = [1, 1]} : vector<120x84xbf16> to vector<112x84xbf16>
    %c3_48 = arith.constant 3 : index
    %c0_49 = arith.constant 0 : index
    %c0_50 = arith.constant 0 : index
    %62 = vector.load %arg6[%c3_48, %c0_49, %c0_50] : memref<5x84x160xbf16, #tpu.memory_space<vmem>>, vector<1x84x160xbf16>
    %63 = vector.shape_cast %62 : vector<1x84x160xbf16> to vector<84x160xbf16>
    %cst_51 = arith.constant dense<0.000000e+00> : vector<112x160xf32>
    %64 = tpu.matmul %61, %63, %cst_51 {dimension_numbers = #tpu.dot_dimension_numbers<[1], [0], [0], [1], [0, 0, 1, 1], [], []>} : vector<112x84xbf16>, vector<84x160xbf16>, vector<112x160xf32> -> vector<112x160xf32>
    %65 = vector.extract_strided_slice %48 {offsets = [4, 0], sizes = [112, 84], strides = [1, 1]} : vector<120x84xbf16> to vector<112x84xbf16>
    %c4_52 = arith.constant 4 : index
    %c0_53 = arith.constant 0 : index
    %c0_54 = arith.constant 0 : index
    %66 = vector.load %arg6[%c4_52, %c0_53, %c0_54] : memref<5x84x160xbf16, #tpu.memory_space<vmem>>, vector<1x84x160xbf16>
    %67 = vector.shape_cast %66 : vector<1x84x160xbf16> to vector<84x160xbf16>
    %cst_55 = arith.constant dense<0.000000e+00> : vector<112x160xf32>
    %68 = tpu.matmul %65, %67, %cst_55 {dimension_numbers = #tpu.dot_dimension_numbers<[1], [0], [0], [1], [0, 0, 1, 1], [], []>} : vector<112x84xbf16>, vector<84x160xbf16>, vector<112x160xf32> -> vector<112x160xf32>
    %69 = arith.addf %52, %56 : vector<112x160xf32>
    %70 = arith.addf %60, %64 : vector<112x160xf32>
    %71 = arith.addf %69, %70 : vector<112x160xf32>
    %72 = arith.addf %71, %68 : vector<112x160xf32>
    %c0_56 = arith.constant 0 : index
    %c0_57 = arith.constant 0 : index
    %73 = vector.load %arg7[%c0_56, %c0_57] : memref<1x160xf32, #tpu.memory_space<vmem>>, vector<1x160xf32>
    %74 = vector.broadcast %73 : vector<1x160xf32> to vector<112x160xf32>
    %75 = arith.addf %72, %74 : vector<112x160xf32>
    %cst_58 = arith.constant 0.000000e+00 : f32
    %76 = vector.broadcast %cst_58 : f32 to vector<112x160xf32>
    %77 = arith.maximumf %75, %76 : vector<112x160xf32>
    %78 = arith.truncf %77 : vector<112x160xf32> to vector<112x160xbf16>
    %c0_59 = arith.constant 0 : index
    %c0_60 = arith.constant 0 : index
    %c0_61 = arith.constant 0 : index
    %79 = vector.load %arg8[%c0_59, %c0_60, %c0_61] : memref<2x40x112xbf16, #tpu.memory_space<vmem>>, vector<1x40x112xbf16>
    %80 = vector.shape_cast %79 : vector<1x40x112xbf16> to vector<40x112xbf16>
    %cst_62 = arith.constant dense<0.000000e+00> : vector<40x160xf32>
    %81 = tpu.matmul %80, %78, %cst_62 {dimension_numbers = #tpu.dot_dimension_numbers<[1], [0], [0], [1], [0, 0, 1, 1], [], []>} : vector<40x112xbf16>, vector<112x160xbf16>, vector<40x160xf32> -> vector<40x160xf32>
    %c1_63 = arith.constant 1 : index
    %c0_64 = arith.constant 0 : index
    %c0_65 = arith.constant 0 : index
    %82 = vector.load %arg8[%c1_63, %c0_64, %c0_65] : memref<2x40x112xbf16, #tpu.memory_space<vmem>>, vector<1x40x112xbf16>
    %83 = vector.shape_cast %82 : vector<1x40x112xbf16> to vector<40x112xbf16>
    %cst_66 = arith.constant dense<0.000000e+00> : vector<40x160xf32>
    %84 = tpu.matmul %83, %78, %cst_66 {dimension_numbers = #tpu.dot_dimension_numbers<[1], [0], [0], [1], [0, 0, 1, 1], [], []>} : vector<40x112xbf16>, vector<112x160xbf16>, vector<40x160xf32> -> vector<40x160xf32>
    %85 = arith.maximumf %81, %84 : vector<40x160xf32>
    %86 = arith.truncf %85 : vector<40x160xf32> to vector<40x160xbf16>
    %c0_67 = arith.constant 0 : index
    %c0_68 = arith.constant 0 : index
    %c0_69 = arith.constant 0 : index
    %87 = vector.load %arg9[%c0_67, %c0_68, %c0_69] : memref<2x160x80xbf16, #tpu.memory_space<vmem>>, vector<1x160x80xbf16>
    %88 = vector.shape_cast %87 : vector<1x160x80xbf16> to vector<160x80xbf16>
    %cst_70 = arith.constant dense<0.000000e+00> : vector<40x80xf32>
    %89 = tpu.matmul %86, %88, %cst_70 {dimension_numbers = #tpu.dot_dimension_numbers<[1], [0], [0], [1], [0, 0, 1, 1], [], []>} : vector<40x160xbf16>, vector<160x80xbf16>, vector<40x80xf32> -> vector<40x80xf32>
    %c1_71 = arith.constant 1 : index
    %c0_72 = arith.constant 0 : index
    %c0_73 = arith.constant 0 : index
    %90 = vector.load %arg9[%c1_71, %c0_72, %c0_73] : memref<2x160x80xbf16, #tpu.memory_space<vmem>>, vector<1x160x80xbf16>
    %91 = vector.shape_cast %90 : vector<1x160x80xbf16> to vector<160x80xbf16>
    %cst_74 = arith.constant dense<0.000000e+00> : vector<40x80xf32>
    %92 = tpu.matmul %86, %91, %cst_74 {dimension_numbers = #tpu.dot_dimension_numbers<[1], [0], [0], [1], [0, 0, 1, 1], [], []>} : vector<40x160xbf16>, vector<160x80xbf16>, vector<40x80xf32> -> vector<40x80xf32>
    %93 = arith.maximumf %89, %92 : vector<40x80xf32>
    %94 = arith.truncf %93 : vector<40x80xf32> to vector<40x80xbf16>
    %c0_75 = arith.constant 0 : index
    %c0_76 = arith.constant 0 : index
    %95 = vector.load %arg12[%c0_75, %c0_76] : memref<3x128xf32, #tpu.memory_space<vmem>>, vector<3x128xf32>
    %96 = vector.extract_strided_slice %94 {offsets = [0, 0], sizes = [8, 80], strides = [1, 1]} : vector<40x80xbf16> to vector<8x80xbf16>
    %c0_77 = arith.constant 0 : index
    %c0_78 = arith.constant 0 : index
    %c0_79 = arith.constant 0 : index
    %97 = vector.load %arg10[%c0_77, %c0_78, %c0_79] : memref<5x80x128xbf16, #tpu.memory_space<vmem>>, vector<1x80x128xbf16>
    %98 = vector.shape_cast %97 : vector<1x80x128xbf16> to vector<80x128xbf16>
    %cst_80 = arith.constant dense<0.000000e+00> : vector<8x128xf32>
    %99 = tpu.matmul %96, %98, %cst_80 {dimension_numbers = #tpu.dot_dimension_numbers<[1], [0], [0], [1], [0, 0, 1, 1], [], []>} : vector<8x80xbf16>, vector<80x128xbf16>, vector<8x128xf32> -> vector<8x128xf32>
    %100 = vector.extract_strided_slice %94 {offsets = [8, 0], sizes = [8, 80], strides = [1, 1]} : vector<40x80xbf16> to vector<8x80xbf16>
    %c1_81 = arith.constant 1 : index
    %c0_82 = arith.constant 0 : index
    %c0_83 = arith.constant 0 : index
    %101 = vector.load %arg10[%c1_81, %c0_82, %c0_83] : memref<5x80x128xbf16, #tpu.memory_space<vmem>>, vector<1x80x128xbf16>
    %102 = vector.shape_cast %101 : vector<1x80x128xbf16> to vector<80x128xbf16>
    %cst_84 = arith.constant dense<0.000000e+00> : vector<8x128xf32>
    %103 = tpu.matmul %100, %102, %cst_84 {dimension_numbers = #tpu.dot_dimension_numbers<[1], [0], [0], [1], [0, 0, 1, 1], [], []>} : vector<8x80xbf16>, vector<80x128xbf16>, vector<8x128xf32> -> vector<8x128xf32>
    %104 = vector.extract_strided_slice %94 {offsets = [16, 0], sizes = [8, 80], strides = [1, 1]} : vector<40x80xbf16> to vector<8x80xbf16>
    %c2_85 = arith.constant 2 : index
    %c0_86 = arith.constant 0 : index
    %c0_87 = arith.constant 0 : index
    %105 = vector.load %arg10[%c2_85, %c0_86, %c0_87] : memref<5x80x128xbf16, #tpu.memory_space<vmem>>, vector<1x80x128xbf16>
    %106 = vector.shape_cast %105 : vector<1x80x128xbf16> to vector<80x128xbf16>
    %cst_88 = arith.constant dense<0.000000e+00> : vector<8x128xf32>
    %107 = tpu.matmul %104, %106, %cst_88 {dimension_numbers = #tpu.dot_dimension_numbers<[1], [0], [0], [1], [0, 0, 1, 1], [], []>} : vector<8x80xbf16>, vector<80x128xbf16>, vector<8x128xf32> -> vector<8x128xf32>
    %108 = vector.extract_strided_slice %94 {offsets = [24, 0], sizes = [8, 80], strides = [1, 1]} : vector<40x80xbf16> to vector<8x80xbf16>
    %c3_89 = arith.constant 3 : index
    %c0_90 = arith.constant 0 : index
    %c0_91 = arith.constant 0 : index
    %109 = vector.load %arg10[%c3_89, %c0_90, %c0_91] : memref<5x80x128xbf16, #tpu.memory_space<vmem>>, vector<1x80x128xbf16>
    %110 = vector.shape_cast %109 : vector<1x80x128xbf16> to vector<80x128xbf16>
    %cst_92 = arith.constant dense<0.000000e+00> : vector<8x128xf32>
    %111 = tpu.matmul %108, %110, %cst_92 {dimension_numbers = #tpu.dot_dimension_numbers<[1], [0], [0], [1], [0, 0, 1, 1], [], []>} : vector<8x80xbf16>, vector<80x128xbf16>, vector<8x128xf32> -> vector<8x128xf32>
    %112 = vector.extract_strided_slice %94 {offsets = [32, 0], sizes = [8, 80], strides = [1, 1]} : vector<40x80xbf16> to vector<8x80xbf16>
    %c4_93 = arith.constant 4 : index
    %c0_94 = arith.constant 0 : index
    %c0_95 = arith.constant 0 : index
    %113 = vector.load %arg10[%c4_93, %c0_94, %c0_95] : memref<5x80x128xbf16, #tpu.memory_space<vmem>>, vector<1x80x128xbf16>
    %114 = vector.shape_cast %113 : vector<1x80x128xbf16> to vector<80x128xbf16>
    %cst_96 = arith.constant dense<0.000000e+00> : vector<8x128xf32>
    %115 = tpu.matmul %112, %114, %cst_96 {dimension_numbers = #tpu.dot_dimension_numbers<[1], [0], [0], [1], [0, 0, 1, 1], [], []>} : vector<8x80xbf16>, vector<80x128xbf16>, vector<8x128xf32> -> vector<8x128xf32>
    %116 = arith.addf %99, %103 : vector<8x128xf32>
    %117 = arith.addf %107, %111 : vector<8x128xf32>
    %118 = arith.addf %116, %117 : vector<8x128xf32>
    %119 = arith.addf %118, %115 : vector<8x128xf32>
    %120 = vector.extract_strided_slice %95 {offsets = [0, 0], sizes = [1, 128], strides = [1, 1]} : vector<3x128xf32> to vector<1x128xf32>
    %121 = vector.broadcast %120 : vector<1x128xf32> to vector<8x128xf32>
    %122 = arith.addf %119, %121 : vector<8x128xf32>
    %cst_97 = arith.constant 0.000000e+00 : f32
    %123 = vector.broadcast %cst_97 : f32 to vector<8x128xf32>
    %124 = arith.maximumf %122, %123 : vector<8x128xf32>
    %125 = arith.truncf %124 : vector<8x128xf32> to vector<8x128xbf16>
    %c0_98 = arith.constant 0 : index
    %c0_99 = arith.constant 0 : index
    %c0_100 = arith.constant 0 : index
    %126 = vector.load %arg11[%c0_98, %c0_99, %c0_100] : memref<2x128x128xbf16, #tpu.memory_space<vmem>>, vector<1x128x128xbf16>
    %127 = vector.shape_cast %126 : vector<1x128x128xbf16> to vector<128x128xbf16>
    %cst_101 = arith.constant dense<0.000000e+00> : vector<8x128xf32>
    %128 = tpu.matmul %125, %127, %cst_101 {dimension_numbers = #tpu.dot_dimension_numbers<[1], [0], [0], [1], [0, 0, 1, 1], [], []>} : vector<8x128xbf16>, vector<128x128xbf16>, vector<8x128xf32> -> vector<8x128xf32>
    %129 = vector.extract_strided_slice %95 {offsets = [1, 0], sizes = [1, 128], strides = [1, 1]} : vector<3x128xf32> to vector<1x128xf32>
    %130 = vector.broadcast %129 : vector<1x128xf32> to vector<8x128xf32>
    %131 = arith.addf %128, %130 : vector<8x128xf32>
    %cst_102 = arith.constant 0.000000e+00 : f32
    %132 = vector.broadcast %cst_102 : f32 to vector<8x128xf32>
    %133 = arith.maximumf %131, %132 : vector<8x128xf32>
    %134 = arith.truncf %133 : vector<8x128xf32> to vector<8x128xbf16>
    %c1_103 = arith.constant 1 : index
    %c0_104 = arith.constant 0 : index
    %c0_105 = arith.constant 0 : index
    %135 = vector.load %arg11[%c1_103, %c0_104, %c0_105] : memref<2x128x128xbf16, #tpu.memory_space<vmem>>, vector<1x128x128xbf16>
    %136 = vector.shape_cast %135 : vector<1x128x128xbf16> to vector<128x128xbf16>
    %cst_106 = arith.constant dense<0.000000e+00> : vector<8x128xf32>
    %137 = tpu.matmul %134, %136, %cst_106 {dimension_numbers = #tpu.dot_dimension_numbers<[1], [0], [0], [1], [0, 0, 1, 1], [], []>} : vector<8x128xbf16>, vector<128x128xbf16>, vector<8x128xf32> -> vector<8x128xf32>
    %138 = vector.extract_strided_slice %95 {offsets = [2, 0], sizes = [1, 128], strides = [1, 1]} : vector<3x128xf32> to vector<1x128xf32>
    %139 = vector.broadcast %138 : vector<1x128xf32> to vector<8x128xf32>
    %140 = arith.addf %137, %139 : vector<8x128xf32>
    %c0_107 = arith.constant 0 : index
    %c0_108 = arith.constant 0 : index
    %141 = vector.load %arg13[%c0_107, %c0_108] : memref<8x128xf32, #tpu.memory_space<vmem>>, vector<8x128xf32>
    tpu.vector_store %arg13[%c0_107, %c0_108], %140 {strides = array<i32>} : memref<8x128xf32, #tpu.memory_space<vmem>>, vector<8x128xf32>,
    return
  }
  func.func @transform_0(%arg0: i32) -> (i32, i32, i32) {
    %c0_i32 = arith.constant 0 : i32
    %c0_i32_0 = arith.constant 0 : i32
    %c0_i32_1 = arith.constant 0 : i32
    return %arg0, %c0_i32, %c0_i32_0 : i32, i32, i32
  }
  func.func @transform_1(%arg0: i32) -> (i32, i32, i32) {
    %c0_i32 = arith.constant 0 : i32
    %c0_i32_0 = arith.constant 0 : i32
    %c0_i32_1 = arith.constant 0 : i32
    %c0_i32_2 = arith.constant 0 : i32
    return %c0_i32, %c0_i32_0, %c0_i32_1 : i32, i32, i32
  }
  func.func @transform_2(%arg0: i32) -> (i32, i32) {
    %c0_i32 = arith.constant 0 : i32
    %c0_i32_0 = arith.constant 0 : i32
    %c0_i32_1 = arith.constant 0 : i32
    return %c0_i32, %c0_i32_0 : i32, i32
  }
  func.func @transform_3(%arg0: i32) -> (i32, i32, i32) {
    %c0_i32 = arith.constant 0 : i32
    %c0_i32_0 = arith.constant 0 : i32
    %c0_i32_1 = arith.constant 0 : i32
    %c0_i32_2 = arith.constant 0 : i32
    return %c0_i32, %c0_i32_0, %c0_i32_1 : i32, i32, i32
  }
  func.func @transform_4(%arg0: i32) -> (i32, i32, i32) {
    %c0_i32 = arith.constant 0 : i32
    %c0_i32_0 = arith.constant 0 : i32
    %c0_i32_1 = arith.constant 0 : i32
    %c0_i32_2 = arith.constant 0 : i32
    return %c0_i32, %c0_i32_0, %c0_i32_1 : i32, i32, i32
  }
  func.func @transform_5(%arg0: i32) -> (i32, i32, i32) {
    %c0_i32 = arith.constant 0 : i32
    %c0_i32_0 = arith.constant 0 : i32
    %c0_i32_1 = arith.constant 0 : i32
    %c0_i32_2 = arith.constant 0 : i32
    return %c0_i32, %c0_i32_0, %c0_i32_1 : i32, i32, i32
  }
  func.func @transform_6(%arg0: i32) -> (i32, i32) {
    %c0_i32 = arith.constant 0 : i32
    %c0_i32_0 = arith.constant 0 : i32
    %c0_i32_1 = arith.constant 0 : i32
    return %c0_i32, %c0_i32_0 : i32, i32
  }
  func.func @transform_7(%arg0: i32) -> (i32, i32, i32) {
    %c0_i32 = arith.constant 0 : i32
    %c0_i32_0 = arith.constant 0 : i32
    %c0_i32_1 = arith.constant 0 : i32
    %c0_i32_2 = arith.constant 0 : i32
    return %c0_i32, %c0_i32_0, %c0_i32_1 : i32, i32, i32
  }
  func.func @transform_8(%arg0: i32) -> (i32, i32, i32) {
    %c0_i32 = arith.constant 0 : i32
    %c0_i32_0 = arith.constant 0 : i32
    %c0_i32_1 = arith.constant 0 : i32
    %c0_i32_2 = arith.constant 0 : i32
    return %c0_i32, %c0_i32_0, %c0_i32_1 : i32, i32, i32
  }
  func.func @transform_9(%arg0: i32) -> (i32, i32, i32) {
    %c0_i32 = arith.constant 0 : i32
    %c0_i32_0 = arith.constant 0 : i32
    %c0_i32_1 = arith.constant 0 : i32
    %c0_i32_2 = arith.constant 0 : i32
    return %c0_i32, %c0_i32_0, %c0_i32_1 : i32, i32, i32
  }
  func.func @transform_10(%arg0: i32) -> (i32, i32, i32) {
    %c0_i32 = arith.constant 0 : i32
    %c0_i32_0 = arith.constant 0 : i32
    %c0_i32_1 = arith.constant 0 : i32
    %c0_i32_2 = arith.constant 0 : i32
    return %c0_i32, %c0_i32_0, %c0_i32_1 : i32, i32, i32
  }
  func.func @transform_11(%arg0: i32) -> (i32, i32) {
    %c0_i32 = arith.constant 0 : i32
    %c0_i32_0 = arith.constant 0 : i32
    %c0_i32_1 = arith.constant 0 : i32
    return %c0_i32, %c0_i32_0 : i32, i32
  }
  func.func @transform_12(%arg0: i32) -> (i32, i32) {
    %c0_i32 = arith.constant 0 : i32
    %c0_i32_0 = arith.constant 0 : i32
    return %arg0, %c0_i32 : i32, i32
  }
}

</mosaic_0001>

<llo_original>
// kernel: net_forward.1
$region0: #{net_forward.1}
  #allocation0 [shape = 'u32[]', space=smem, size = 0x4, offset = 0x4, fixed_abs, tag = 'smem constant byte address 0x4 - core index']
  #allocation1 [shape = 'u32[144,128]{1,0:T(1,128)}', space=vmem, size = 0x12000, scoped, tag = 'internal scratch']
  %s0 = inlined_call_operand.vmem [shape: f32[2,264,128], index: 0, kind: input, shape index: {}]
  %s1 = inlined_call_operand.vmem [shape: bf16[5,128,168], index: 1, kind: input, shape index: {}]
  %s2 = inlined_call_operand.vmem [shape: f32[1,168], index: 2, kind: input, shape index: {}]
  %s3 = inlined_call_operand.vmem [shape: bf16[2,120,256], index: 3, kind: input, shape index: {}]
  %s4 = inlined_call_operand.vmem [shape: bf16[2,168,84], index: 4, kind: input, shape index: {}]
  %s5 = inlined_call_operand.vmem [shape: bf16[5,84,160], index: 5, kind: input, shape index: {}]
  %s6 = inlined_call_operand.vmem [shape: f32[1,160], index: 6, kind: input, shape index: {}]
  %s7 = inlined_call_operand.vmem [shape: bf16[2,40,112], index: 7, kind: input, shape index: {}]
  %s8 = inlined_call_operand.vmem [shape: bf16[2,160,80], index: 8, kind: input, shape index: {}]
  %s9 = inlined_call_operand.vmem [shape: bf16[5,80,128], index: 9, kind: input, shape index: {}]
  %s10 = inlined_call_operand.vmem [shape: bf16[2,128,128], index: 10, kind: input, shape index: {}]
  %s11 = inlined_call_operand.vmem [shape: f32[3,128], index: 11, kind: input, shape index: {}]
  %s12 = inlined_call_operand.hbm [shape: f32[16,128], index: 12, kind: output, shape index: {}]
  %s13 = sld [smem:[#allocation0]]
  $region81: #{net_forward.1} parent=0
    _
  %s15 = ssub.s32 1, %s13
  %s16 = scalar_select 0, %s15, %s13
  $region1: #{net_forward.1} parent=0
    #allocation2 [shape = 'u8[8192]{0}', space=vmem, size = 0x2000, scoped, tag = 'output window, operand 0']
    #allocation3 [shape = 's32[2]{0}', space=sflag, size = 0x8, scoped, tag = 'scoped memory for net_forward.1']
    %17 = vsyncpa [#allocation3], 0
    %s18 = scalar_lea.sflag [#allocation3], 1
    %19 = vsyncpa %s18, 0
    loop: start=0, step=1, limit=4
    $region2: #{net_forward.1} parent=1 // loop_pre_header
      _
    $region3: #{net_forward.1} parent=1 // loop_header
      %s21 = sphi 0, %s25
      %p22 = scmp.ge.s32.totalorder %s21, 4
      %s31 = sphi 0, %s33
      %s34 = sphi 0, %s31
      %s35 = sphi 0, %s34
      %s51 = sphi 0, %s35
      %s55 = sphi 0, %s55
      %s57 = sphi 0, %s55
      %s58 = sphi 0, %s57
      %s72 = sphi 0, %s58
      %s76 = sphi 0, %s76
      %s78 = sphi 0, %s76
      %s79 = sphi 0, %s78
      %s93 = sphi 0, %s79
      %s97 = sphi 0, %s97
      %s99 = sphi 0, %s97
      %s100 = sphi 0, %s99
      %s114 = sphi 0, %s100
      %s118 = sphi 0, %s118
      %s120 = sphi 0, %s118
      %s121 = sphi 0, %s120
      %s135 = sphi 0, %s121
      %s139 = sphi 0, %s139
      %s141 = sphi 0, %s139
      %s142 = sphi 0, %s141
      %s156 = sphi 0, %s142
      %s160 = sphi 0, %s160
      %s162 = sphi 0, %s160
      %s163 = sphi 0, %s162
      %s177 = sphi 0, %s163
      %s181 = sphi 0, %s181
      %s183 = sphi 0, %s181
      %s184 = sphi 0, %s183
      %s198 = sphi 0, %s184
      %s202 = sphi 0, %s202
      %s204 = sphi 0, %s202
      %s205 = sphi 0, %s204
      %s219 = sphi 0, %s205
      %s223 = sphi 0, %s223
      %s225 = sphi 0, %s223
      %s226 = sphi 0, %s225
      %s240 = sphi 0, %s226
      %s244 = sphi 0, %s244
      %s246 = sphi 0, %s244
      %s247 = sphi 0, %s246
      %s261 = sphi 0, %s247
      %s265 = sphi 0, %s265
      %s267 = sphi 0, %s265
      %s268 = sphi 0, %s267
      %s282 = sphi 0, %s268
      %s288 = sphi 0, %s290
      %s291 = sphi 0, %s288
      %s292 = sphi 0, %s291
      %s308 = sphi 0, %s292
    $region4: #{net_forward.1} parent=1 // loop_header_branch
      %24 = sbr.rel (%p22) target = $region8
    $region5: #{net_forward.1} parent=1 // loop_body
      %s26 = ssub.s32 %s21, 1
      %s27 = ssub.s32 %s21, 2
      %s28 = sadd.s32 %s21, 1
      %s29 = ssub.s32 %s21, %s28
      %p30 = scmp.eq.s32.totalorder %s29, 0
      %s32 = sadd.s32 %s31, 1
      %s33 = scalar_select %p30, %s31, %s32
      %p36 = pneg %p30
      %p37 = scmp.eq.s32.totalorder %s21, 1
      %p38 = por %p36, %p37
      %p39 = scmp.ne.s32.totalorder %s31, %s34
      %p40 = scmp.eq.s32.totalorder %s21, 0
      %p41 = por %p39, %p40
      %p42 = scmp.ne.s32.totalorder %s31, %s34
      %p43 = scmp.eq.s32.totalorder %s26, 1
      %p44 = por %p42, %p43
      %p45 = scmp.ne.s32.totalorder %s34, %s35
      %p46 = scmp.eq.s32.totalorder %s26, 0
      %p47 = por %p45, %p46
      %p48 = scmp.ne.s32.totalorder %s34, %s35
      %p49 = scmp.eq.s32.totalorder %s27, 1
      %p50 = por %p48, %p49
      %p52 = scmp.ne.s32.totalorder %s35, %s51
      %p53 = scmp.eq.s32.totalorder %s27, 0
      %p54 = por %p52, %p53
      %s56 = sadd.s32 %s55, 1
      %p59 = scmp.eq.s32.totalorder %s21, 1
      %p60 = scmp.ne.s32.totalorder %s55, %s57
      %p61 = scmp.eq.s32.totalorder %s21, 0
      %p62 = por %p60, %p61
      %p63 = scmp.ne.s32.totalorder %s55, %s57
      %p64 = scmp.eq.s32.totalorder %s26, 1
      %p65 = por %p63, %p64
      %p66 = scmp.ne.s32.totalorder %s57, %s58
      %p67 = scmp.eq.s32.totalorder %s26, 0
      %p68 = por %p66, %p67
      %p69 = scmp.ne.s32.totalorder %s57, %s58
      %p70 = scmp.eq.s32.totalorder %s27, 1
      %p71 = por %p69, %p70
      %p73 = scmp.ne.s32.totalorder %s58, %s72
      %p74 = scmp.eq.s32.totalorder %s27, 0
      %p75 = por %p73, %p74
      %s77 = sadd.s32 %s76, 1
      %p80 = scmp.eq.s32.totalorder %s21, 1
      %p81 = scmp.ne.s32.totalorder %s76, %s78
      %p82 = scmp.eq.s32.totalorder %s21, 0
      %p83 = por %p81, %p82
      %p84 = scmp.ne.s32.totalorder %s76, %s78
      %p85 = scmp.eq.s32.totalorder %s26, 1
      %p86 = por %p84, %p85
      %p87 = scmp.ne.s32.totalorder %s78, %s79
      %p88 = scmp.eq.s32.totalorder %s26, 0
      %p89 = por %p87, %p88
      %p90 = scmp.ne.s32.totalorder %s78, %s79
      %p91 = scmp.eq.s32.totalorder %s27, 1
      %p92 = por %p90, %p91
      %p94 = scmp.ne.s32.totalorder %s79, %s93
      %p95 = scmp.eq.s32.totalorder %s27, 0
      %p96 = por %p94, %p95
      %s98 = sadd.s32 %s97, 1
      %p101 = scmp.eq.s32.totalorder %s21, 1
      %p102 = scmp.ne.s32.totalorder %s97, %s99
      %p103 = scmp.eq.s32.totalorder %s21, 0
      %p104 = por %p102, %p103
      %p105 = scmp.ne.s32.totalorder %s97, %s99
      %p106 = scmp.eq.s32.totalorder %s26, 1
      %p107 = por %p105, %p106
      %p108 = scmp.ne.s32.totalorder %s99, %s100
      %p109 = scmp.eq.s32.totalorder %s26, 0
      %p110 = por %p108, %p109
      %p111 = scmp.ne.s32.totalorder %s99, %s100
      %p112 = scmp.eq.s32.totalorder %s27, 1
      %p113 = por %p111, %p112
      %p115 = scmp.ne.s32.totalorder %s100, %s114
      %p116 = scmp.eq.s32.totalorder %s27, 0
      %p117 = por %p115, %p116
      %s119 = sadd.s32 %s118, 1
      %p122 = scmp.eq.s32.totalorder %s21, 1
      %p123 = scmp.ne.s32.totalorder %s118, %s120
      %p124 = scmp.eq.s32.totalorder %s21, 0
      %p125 = por %p123, %p124
      %p126 = scmp.ne.s32.totalorder %s118, %s120
      %p127 = scmp.eq.s32.totalorder %s26, 1
      %p128 = por %p126, %p127
      %p129 = scmp.ne.s32.totalorder %s120, %s121
      %p130 = scmp.eq.s32.totalorder %s26, 0
      %p131 = por %p129, %p130
      %p132 = scmp.ne.s32.totalorder %s120, %s121
      %p133 = scmp.eq.s32.totalorder %s27, 1
      %p134 = por %p132, %p133
      %p136 = scmp.ne.s32.totalorder %s121, %s135
      %p137 = scmp.eq.s32.totalorder %s27, 0
      %p138 = por %p136, %p137
      %s140 = sadd.s32 %s139, 1
      %p143 = scmp.eq.s32.totalorder %s21, 1
      %p144 = scmp.ne.s32.totalorder %s139, %s141
      %p145 = scmp.eq.s32.totalorder %s21, 0
      %p146 = por %p144, %p145
      %p147 = scmp.ne.s32.totalorder %s139, %s141
      %p148 = scmp.eq.s32.totalorder %s26, 1
      %p149 = por %p147, %p148
      %p150 = scmp.ne.s32.totalorder %s141, %s142
      %p151 = scmp.eq.s32.totalorder %s26, 0
      %p152 = por %p150, %p151
      %p153 = scmp.ne.s32.totalorder %s141, %s142
      %p154 = scmp.eq.s32.totalorder %s27, 1
      %p155 = por %p153, %p154
      %p157 = scmp.ne.s32.totalorder %s142, %s156
      %p158 = scmp.eq.s32.totalorder %s27, 0
      %p159 = por %p157, %p158
      %s161 = sadd.s32 %s160, 1
      %p164 = scmp.eq.s32.totalorder %s21, 1
      %p165 = scmp.ne.s32.totalorder %s160, %s162
      %p166 = scmp.eq.s32.totalorder %s21, 0
      %p167 = por %p165, %p166
      %p168 = scmp.ne.s32.totalorder %s160, %s162
      %p169 = scmp.eq.s32.totalorder %s26, 1
      %p170 = por %p168, %p169
      %p171 = scmp.ne.s32.totalorder %s162, %s163
      %p172 = scmp.eq.s32.totalorder %s26, 0
      %p173 = por %p171, %p172
      %p174 = scmp.ne.s32.totalorder %s162, %s163
      %p175 = scmp.eq.s32.totalorder %s27, 1
      %p176 = por %p174, %p175
      %p178 = scmp.ne.s32.totalorder %s163, %s177
      %p179 = scmp.eq.s32.totalorder %s27, 0
      %p180 = por %p178, %p179
      %s182 = sadd.s32 %s181, 1
      %p185 = scmp.eq.s32.totalorder %s21, 1
      %p186 = scmp.ne.s32.totalorder %s181, %s183
      %p187 = scmp.eq.s32.totalorder %s21, 0
      %p188 = por %p186, %p187
      %p189 = scmp.ne.s32.totalorder %s181, %s183
      %p190 = scmp.eq.s32.totalorder %s26, 1
      %p191 = por %p189, %p190
      %p192 = scmp.ne.s32.totalorder %s183, %s184
      %p193 = scmp.eq.s32.totalorder %s26, 0
      %p194 = por %p192, %p193
      %p195 = scmp.ne.s32.totalorder %s183, %s184
      %p196 = scmp.eq.s32.totalorder %s27, 1
      %p197 = por %p195, %p196
      %p199 = scmp.ne.s32.totalorder %s184, %s198
      %p200 = scmp.eq.s32.totalorder %s27, 0
      %p201 = por %p199, %p200
      %s203 = sadd.s32 %s202, 1
      %p206 = scmp.eq.s32.totalorder %s21, 1
      %p207 = scmp.ne.s32.totalorder %s202, %s204
      %p208 = scmp.eq.s32.totalorder %s21, 0
      %p209 = por %p207, %p208
      %p210 = scmp.ne.s32.totalorder %s202, %s204
      %p211 = scmp.eq.s32.totalorder %s26, 1
      %p212 = por %p210, %p211
      %p213 = scmp.ne.s32.totalorder %s204, %s205
      %p214 = scmp.eq.s32.totalorder %s26, 0
      %p215 = por %p213, %p214
      %p216 = scmp.ne.s32.totalorder %s204, %s205
      %p217 = scmp.eq.s32.totalorder %s27, 1
      %p218 = por %p216, %p217
      %p220 = scmp.ne.s32.totalorder %s205, %s219
      %p221 = scmp.eq.s32.totalorder %s27, 0
      %p222 = por %p220, %p221
      %s224 = sadd.s32 %s223, 1
      %p227 = scmp.eq.s32.totalorder %s21, 1
      %p228 = scmp.ne.s32.totalorder %s223, %s225
      %p229 = scmp.eq.s32.totalorder %s21, 0
      %p230 = por %p228, %p229
      %p231 = scmp.ne.s32.totalorder %s223, %s225
      %p232 = scmp.eq.s32.totalorder %s26, 1
      %p233 = por %p231, %p232
      %p234 = scmp.ne.s32.totalorder %s225, %s226
      %p235 = scmp.eq.s32.totalorder %s26, 0
      %p236 = por %p234, %p235
      %p237 = scmp.ne.s32.totalorder %s225, %s226
      %p238 = scmp.eq.s32.totalorder %s27, 1
      %p239 = por %p237, %p238
      %p241 = scmp.ne.s32.totalorder %s226, %s240
      %p242 = scmp.eq.s32.totalorder %s27, 0
      %p243 = por %p241, %p242
      %s245 = sadd.s32 %s244, 1
      %p248 = scmp.eq.s32.totalorder %s21, 1
      %p249 = scmp.ne.s32.totalorder %s244, %s246
      %p250 = scmp.eq.s32.totalorder %s21, 0
      %p251 = por %p249, %p250
      %p252 = scmp.ne.s32.totalorder %s244, %s246
      %p253 = scmp.eq.s32.totalorder %s26, 1
      %p254 = por %p252, %p253
      %p255 = scmp.ne.s32.totalorder %s246, %s247
      %p256 = scmp.eq.s32.totalorder %s26, 0
      %p257 = por %p255, %p256
      %p258 = scmp.ne.s32.totalorder %s246, %s247
      %p259 = scmp.eq.s32.totalorder %s27, 1
      %p260 = por %p258, %p259
      %p262 = scmp.ne.s32.totalorder %s247, %s261
      %p263 = scmp.eq.s32.totalorder %s27, 0
      %p264 = por %p262, %p263
      %s266 = sadd.s32 %s265, 1
      %p269 = scmp.eq.s32.totalorder %s21, 1
      %p270 = scmp.ne.s32.totalorder %s265, %s267
      %p271 = scmp.eq.s32.totalorder %s21, 0
      %p272 = por %p270, %p271
      %p273 = scmp.ne.s32.totalorder %s265, %s267
      %p274 = scmp.eq.s32.totalorder %s26, 1
      %p275 = por %p273, %p274
      %p276 = scmp.ne.s32.totalorder %s267, %s268
      %p277 = scmp.eq.s32.totalorder %s26, 0
      %p278 = por %p276, %p277
      %p279 = scmp.ne.s32.totalorder %s267, %s268
      %p280 = scmp.eq.s32.totalorder %s27, 1
      %p281 = por %p279, %p280
      %p283 = scmp.ne.s32.totalorder %s268, %s282
      %p284 = scmp.eq.s32.totalorder %s27, 0
      %p285 = por %p283, %p284
      %s286 = ssub.s32 %s21, %s28
      %p287 = scmp.eq.s32.totalorder %s286, 0
      %s289 = sadd.s32 %s288, 1
      %s290 = scalar_select %p287, %s288, %s289
      %p293 = pneg %p287
      %p294 = scmp.eq.s32.totalorder %s21, 1
      %p295 = por %p293, %p294
      %p296 = scmp.ne.s32.totalorder %s288, %s291
      %p297 = scmp.eq.s32.totalorder %s21, 0
      %p298 = por %p296, %p297
      %p299 = scmp.ne.s32.totalorder %s288, %s291
      %p300 = scmp.eq.s32.totalorder %s26, 1
      %p301 = por %p299, %p300
      %p302 = scmp.ne.s32.totalorder %s291, %s292
      %p303 = scmp.eq.s32.totalorder %s26, 0
      %p304 = por %p302, %p303
      %p305 = scmp.ne.s32.totalorder %s291, %s292
      %p306 = scmp.eq.s32.totalorder %s27, 1
      %p307 = por %p305, %p306
      %p309 = scmp.ne.s32.totalorder %s292, %s308
      %p310 = scmp.eq.s32.totalorder %s27, 0
      %p311 = por %p309, %p310
      %p312 = scmp.le.s32.totalorder 1, %s21
      %p313 = scmp.lt.s32.totalorder %s21, 3
      %p314 = pnand %p312, %p313
      %p315 = pneg %p314
      // Predicated region
      $region9: #{net_forward.1} parent=5 // pred_check
        _
      $region10: #{net_forward.1} parent=5 // pred_check_branch
        %317 = sbr.rel (%p314) target = $region12
      $region11: #{net_forward.1} parent=5 // pred_region
        %s318 = ssub.s32 %s21, 1
        // Predicated region
        $region13: #{net_forward.1} parent=11 // pred_check
          %p319 = pneg %p68
        $region14: #{net_forward.1} parent=11 // pred_check_branch
          %321 = sbr.rel (%p319) target = $region16
        $region15: #{net_forward.1} parent=11 // pred_region
          _
        $region16: #{net_forward.1} parent=11 // pred_fallthru
          _
        // Predicated region
        $region17: #{net_forward.1} parent=11 // pred_check
          %p322 = pneg %p89
        $region18: #{net_forward.1} parent=11 // pred_check_branch
          %324 = sbr.rel (%p322) target = $region20
        $region19: #{net_forward.1} parent=11 // pred_region
          _
        $region20: #{net_forward.1} parent=11 // pred_fallthru
          _
        // Predicated region
        $region21: #{net_forward.1} parent=11 // pred_check
          %p325 = pneg %p110
        $region22: #{net_forward.1} parent=11 // pred_check_branch
          %327 = sbr.rel (%p325) target = $region24
        $region23: #{net_forward.1} parent=11 // pred_region
          _
        $region24: #{net_forward.1} parent=11 // pred_fallthru
          _
        // Predicated region
        $region25: #{net_forward.1} parent=11 // pred_check
          %p328 = pneg %p131
        $region26: #{net_forward.1} parent=11 // pred_check_branch
          %330 = sbr.rel (%p328) target = $region28
        $region27: #{net_forward.1} parent=11 // pred_region
          _
        $region28: #{net_forward.1} parent=11 // pred_fallthru
          _
        // Predicated region
        $region29: #{net_forward.1} parent=11 // pred_check
          %p331 = pneg %p152
        $region30: #{net_forward.1} parent=11 // pred_check_branch
          %333 = sbr.rel (%p331) target = $region32
        $region31: #{net_forward.1} parent=11 // pred_region
          _
        $region32: #{net_forward.1} parent=11 // pred_fallthru
          _
        // Predicated region
        $region33: #{net_forward.1} parent=11 // pred_check
          %p334 = pneg %p173
        $region34: #{net_forward.1} parent=11 // pred_check_branch
          %336 = sbr.rel (%p334) target = $region36
        $region35: #{net_forward.1} parent=11 // pred_region
          _
        $region36: #{net_forward.1} parent=11 // pred_fallthru
          _
        // Predicated region
        $region37: #{net_forward.1} parent=11 // pred_check
          %p337 = pneg %p194
        $region38: #{net_forward.1} parent=11 // pred_check_branch
          %339 = sbr.rel (%p337) target = $region40
        $region39: #{net_forward.1} parent=11 // pred_region
          _
        $region40: #{net_forward.1} parent=11 // pred_fallthru
          _
        // Predicated region
        $region41: #{net_forward.1} parent=11 // pred_check
          %p340 = pneg %p215
        $region42: #{net_forward.1} parent=11 // pred_check_branch
          %342 = sbr.rel (%p340) target = $region44
        $region43: #{net_forward.1} parent=11 // pred_region
          _
        $region44: #{net_forward.1} parent=11 // pred_fallthru
          _
        // Predicated region
        $region45: #{net_forward.1} parent=11 // pred_check
          %p343 = pneg %p236
        $region46: #{net_forward.1} parent=11 // pred_check_branch
          %345 = sbr.rel (%p343) target = $region48
        $region47: #{net_forward.1} parent=11 // pred_region
          _
        $region48: #{net_forward.1} parent=11 // pred_fallthru
          _
        // Predicated region
        $region49: #{net_forward.1} parent=11 // pred_check
          %p346 = pneg %p257
        $region50: #{net_forward.1} parent=11 // pred_check_branch
          %348 = sbr.rel (%p346) target = $region52
        $region51: #{net_forward.1} parent=11 // pred_region
          _
        $region52: #{net_forward.1} parent=11 // pred_fallthru
          _
        // Predicated region
        $region53: #{net_forward.1} parent=11 // pred_check
          %p349 = pneg %p278
        $region54: #{net_forward.1} parent=11 // pred_check_branch
          %351 = sbr.rel (%p349) target = $region56
        $region55: #{net_forward.1} parent=11 // pred_region
          _
        $region56: #{net_forward.1} parent=11 // pred_fallthru
          _
      $region12: #{net_forward.1} parent=5 // pred_fallthru
        _
      %p352 = scmp.lt.s32.totalorder %s21, 2
      // Predicated region
      $region57: #{net_forward.1} parent=5 // pred_check
        %p353 = pneg %p352
      $region58: #{net_forward.1} parent=5 // pred_check_branch
        %355 = sbr.rel (%p353) target = $region60
      $region59: #{net_forward.1} parent=5 // pred_region
        // Predicated region
        $region61: #{net_forward.1} parent=59 // pred_check
          %p356 = pneg %p41
        $region62: #{net_forward.1} parent=59 // pred_check_branch
          %358 = sbr.rel (%p356) target = $region64
        $region63: #{net_forward.1} parent=59 // pred_region
          %p359 = scmp.lt.s32.totalorder %s21, 1
          %s360 = scalar_select %p359, %s21, 1
          %s361 = smul.addr %s360, 33
          %s362 = smul.addr %s361, 8
          %s363 = scalar_lea.vmem %s0, %s362
        $region64: #{net_forward.1} parent=59 // pred_fallthru
          _
      $region60: #{net_forward.1} parent=5 // pred_fallthru
        _
      %p364 = scmp.le.s32.totalorder 1, %s21
      %p365 = scmp.lt.s32.totalorder %s21, 3
      %p366 = pnand %p364, %p365
      %p367 = pneg %p366
      // Predicated region
      $region65: #{net_forward.1} parent=5 // pred_check
        _
      $region66: #{net_forward.1} parent=5 // pred_check_branch
        %369 = sbr.rel (%p366) target = $region68
      $region67: #{net_forward.1} parent=5 // pred_region
        %s370 = ssub.s32 %s21, 1
        %p371 = scmp.lt.s32.totalorder %s26, 1
        %s372 = scalar_select %p371, %s26, 1
        %s373 = smul.addr %s372, 33
        %s374 = smul.addr %s373, 8
        %s375 = scalar_lea.vmem %s0, %s374
        %p376 = pneg %p47
        %p377 = pneg %p44
        %p378 = pneg %p68
        %p379 = pneg %p65
        %p380 = pneg %p89
        %p381 = pneg %p86
        %p382 = pneg %p110
        %p383 = pneg %p107
        %p384 = pneg %p131
        %p385 = pneg %p128
        %p386 = pneg %p152
        %p387 = pneg %p149
        %p388 = pneg %p173
        %p389 = pneg %p170
        %p390 = pneg %p194
        %p391 = pneg %p191
        %p392 = pneg %p215
        %p393 = pneg %p212
        %p394 = pneg %p236
        %p395 = pneg %p233
        %p396 = pneg %p257
        %p397 = pneg %p254
        %p398 = pneg %p278
        %p399 = pneg %p275
        %p400 = pneg %p304
        %p401 = pneg %p301
        %s402 = sand.u32 %s291, 1
        %s403 = scalar_lea.sflag [#allocation3], %s402
        %s404 = sand.u32 %s291, 1
        %s405 = smul.addr %s404, 8
        %s406 = scalar_lea.vmem [#allocation2], %s405
        %p407 = scmp.lt.s32.totalorder %s26, 1
        %s408 = scalar_select %p407, %s26, 1
        %s409 = smul.addr %s408, 33
        %s410 = smul.addr %s409, 8
        %s411 = scalar_lea.vmem %s0, %s410
        %v413 = vld [vmem:[%s411] sm:$0xff]
        %v414 = vld [vmem:[%s411 + $0x8] sm:$0xff]
        %v415 = vld [vmem:[%s411 + $0x10] sm:$0xff]
        %v416 = vld [vmem:[%s411 + $0x18] sm:$0xff]
        %v417 = vld [vmem:[%s411 + $0x20] sm:$0xff]
        %v418 = vld [vmem:[%s411 + $0x28] sm:$0xff]
        %v419 = vld [vmem:[%s411 + $0x30] sm:$0xff]
        %v420 = vld [vmem:[%s411 + $0x38] sm:$0xff]
        %v421 = vld [vmem:[%s411 + $0x40] sm:$0xff]
        %v422 = vld [vmem:[%s411 + $0x48] sm:$0xff]
        %v423 = vld [vmem:[%s411 + $0x50] sm:$0xff]
        %v424 = vld [vmem:[%s411 + $0x58] sm:$0xff]
        %v425 = vld [vmem:[%s411 + $0x60] sm:$0xff]
        %v426 = vld [vmem:[%s411 + $0x68] sm:$0xff]
        %v427 = vld [vmem:[%s411 + $0x70] sm:$0xff]
        %v428 = vld [vmem:[%s411 + $0x78] sm:$0xff]
        %v429 = vld [vmem:[%s411 + $0x80] sm:$0xff]
        %v430 = vld [vmem:[%s411 + $0x88] sm:$0xff]
        %v431 = vld [vmem:[%s411 + $0x90] sm:$0xff]
        %v432 = vld [vmem:[%s411 + $0x98] sm:$0xff]
        %v433 = vld [vmem:[%s411 + $0xa0] sm:$0xff]
        %v434 = vld [vmem:[%s411 + $0xa8] sm:$0xff]
        %v435 = vld [vmem:[%s411 + $0xb0] sm:$0xff]
        %v436 = vld [vmem:[%s411 + $0xb8] sm:$0xff]
        %v437 = vld [vmem:[%s411 + $0xc0] sm:$0xff]
        %v438 = vld [vmem:[%s411 + $0xc8] sm:$0xff]
        %v439 = vld [vmem:[%s411 + $0xd0] sm:$0xff]
        %v440 = vld [vmem:[%s411 + $0xd8] sm:$0xff]
        %v441 = vld [vmem:[%s411 + $0xe0] sm:$0xff]
        %v442 = vld [vmem:[%s411 + $0xe8] sm:$0xff]
        %v443 = vld [vmem:[%s411 + $0xf0] sm:$0xff]
        %v444 = vld [vmem:[%s411 + $0xf8] sm:$0xff]
        %v445 = vld [vmem:[%s411 + $0x100] sm:$0xff]
        %v446 = vpack.c.bf16 %v414, %v413
        %v447 = vpack.c.bf16 %v416, %v415
        %v448 = vpack.c.bf16 %v418, %v417
        %v449 = vpack.c.bf16 %v420, %v419
        %v450 = vpack.c.bf16 %v422, %v421
        %v451 = vpack.c.bf16 %v424, %v423
        %v452 = vpack.c.bf16 %v426, %v425
        %v453 = vpack.c.bf16 %v428, %v427
        %v454 = vpack.c.bf16 %v430, %v429
        %v455 = vpack.c.bf16 %v432, %v431
        %v456 = vpack.c.bf16 %v434, %v433
        %v457 = vpack.c.bf16 %v436, %v435
        %v458 = vpack.c.bf16 %v438, %v437
        %v459 = vpack.c.bf16 %v440, %v439
        %v460 = vpack.c.bf16 %v442, %v441
        %v461 = vpack.c.bf16 %v444, %v443
        %v462 = vpack.c.bf16 %v445, %v445
        %v463 = vld [vmem:[%s1] sm:$0xff]
        %v464 = vld [vmem:[%s1 + $0x8] sm:$0xff]
        %v465 = vld [vmem:[%s1 + $0x10] sm:$0xff]
        %v466 = vld [vmem:[%s1 + $0x18] sm:$0xff]
        %v467 = vld [vmem:[%s1 + $0x20] sm:$0xff]
        %v468 = vld [vmem:[%s1 + $0x28] sm:$0xff]
        %v469 = vld [vmem:[%s1 + $0x30] sm:$0xff]
        %v470 = vld [vmem:[%s1 + $0x38] sm:$0xff]
        %v471 = vld [vmem:[%s1 + $0x40] sm:$0xff]
        %v472 = vld [vmem:[%s1 + $0x48] sm:$0xff]
        %v473 = vld [vmem:[%s1 + $0x50] sm:$0xff]
        %v474 = vld [vmem:[%s1 + $0x58] sm:$0xff]
        %v475 = vld [vmem:[%s1 + $0x60] sm:$0xff]
        %v476 = vld [vmem:[%s1 + $0x68] sm:$0xff]
        %v477 = vld [vmem:[%s1 + $0x70] sm:$0xff]
        %v478 = vld [vmem:[%s1 + $0x78] sm:$0xff]
        %s479 = scalar_lea.vmem %s1, 128
        %v480 = vld [vmem:[%s479] sm:$0xff]
        %v481 = vld [vmem:[%s479 + $0x8] sm:$0xff]
        %v482 = vld [vmem:[%s479 + $0x10] sm:$0xff]
        %v483 = vld [vmem:[%s479 + $0x18] sm:$0xff]
        %v484 = vld [vmem:[%s479 + $0x20] sm:$0xff]
        %v485 = vld [vmem:[%s479 + $0x28] sm:$0xff]
        %v486 = vld [vmem:[%s479 + $0x30] sm:$0xff]
        %v487 = vld [vmem:[%s479 + $0x38] sm:$0xff]
        %v488 = vld [vmem:[%s479 + $0x40] sm:$0xff]
        %v489 = vld [vmem:[%s479 + $0x48] sm:$0xff]
        %v490 = vld [vmem:[%s479 + $0x50] sm:$0xff]
        %v491 = vld [vmem:[%s479 + $0x58] sm:$0xff]
        %v492 = vld [vmem:[%s479 + $0x60] sm:$0xff]
        %v493 = vld [vmem:[%s479 + $0x68] sm:$0xff]
        %v494 = vld [vmem:[%s479 + $0x70] sm:$0xff]
        %v495 = vld [vmem:[%s479 + $0x78] sm:$0xff]
        %vm496 = vsmask.f32 7424
        %v498 = vshrl.u32 %v446, 16
        %v500 = vshll.u32 %v446, 16
        %v502 = vrot.slane %v500, 1
        %v503 = vor.u32 %v498, %v502
        %v505 = vshll.u32 %v447, 16
        %v507 = vrot.slane %v505, 1
        %v508 = vsel %vm496, %v503, %v507
        %v509 = vshrl.u32 %v447, 16
        %v511 = vor.u32 %v509, %v507
        %v513 = vshll.u32 %v448, 16
        %v515 = vrot.slane %v513, 1
        %v516 = vsel %vm496, %v511, %v515
        %v517 = vshrl.u32 %v448, 16
        %v519 = vor.u32 %v517, %v515
        %v521 = vshll.u32 %v449, 16
        %v523 = vrot.slane %v521, 1
        %v524 = vsel %vm496, %v519, %v523
        %v525 = vshrl.u32 %v449, 16
        %v527 = vor.u32 %v525, %v523
        %v529 = vshll.u32 %v450, 16
        %v531 = vrot.slane %v529, 1
        %v532 = vsel %vm496, %v527, %v531
        %v533 = vshrl.u32 %v450, 16
        %v535 = vor.u32 %v533, %v531
        %v537 = vshll.u32 %v451, 16
        %v539 = vrot.slane %v537, 1
        %v540 = vsel %vm496, %v535, %v539
        %v541 = vshrl.u32 %v451, 16
        %v543 = vor.u32 %v541, %v539
        %v545 = vshll.u32 %v452, 16
        %v547 = vrot.slane %v545, 1
        %v548 = vsel %vm496, %v543, %v547
        %v549 = vshrl.u32 %v452, 16
        %v551 = vor.u32 %v549, %v547
        %v553 = vshll.u32 %v453, 16
        %v555 = vrot.slane %v553, 1
        %v556 = vsel %vm496, %v551, %v555
        %v557 = vshrl.u32 %v453, 16
        %v559 = vor.u32 %v557, %v555
        %v561 = vshll.u32 %v454, 16
        %v563 = vrot.slane %v561, 1
        %v564 = vsel %vm496, %v559, %v563
        %v565 = vshrl.u32 %v454, 16
        %v567 = vor.u32 %v565, %v563
        %v569 = vshll.u32 %v455, 16
        %v571 = vrot.slane %v569, 1
        %v572 = vsel %vm496, %v567, %v571
        %v573 = vshrl.u32 %v455, 16
        %v575 = vor.u32 %v573, %v571
        %v577 = vshll.u32 %v456, 16
        %v579 = vrot.slane %v577, 1
        %v580 = vsel %vm496, %v575, %v579
        %v581 = vshrl.u32 %v456, 16
        %v583 = vor.u32 %v581, %v579
        %v585 = vshll.u32 %v457, 16
        %v587 = vrot.slane %v585, 1
        %v588 = vsel %vm496, %v583, %v587
        %v589 = vshrl.u32 %v457, 16
        %v591 = vor.u32 %v589, %v587
        %v593 = vshll.u32 %v458, 16
        %v595 = vrot.slane %v593, 1
        %v596 = vsel %vm496, %v591, %v595
        %v597 = vshrl.u32 %v458, 16
        %v599 = vor.u32 %v597, %v595
        %v601 = vshll.u32 %v459, 16
        %v603 = vrot.slane %v601, 1
        %v604 = vsel %vm496, %v599, %v603
        %v605 = vshrl.u32 %v459, 16
        %v607 = vor.u32 %v605, %v603
        %v609 = vshll.u32 %v460, 16
        %v611 = vrot.slane %v609, 1
        %v612 = vsel %vm496, %v607, %v611
        %v613 = vshrl.u32 %v460, 16
        %v615 = vor.u32 %v613, %v611
        %v617 = vshll.u32 %v461, 16
        %v619 = vrot.slane %v617, 1
        %v620 = vsel %vm496, %v615, %v619
        %v621 = vshrl.u32 %v461, 16
        %v623 = vor.u32 %v621, %v619
        %v625 = vshll.u32 %v462, 16
        %v627 = vrot.slane %v625, 1
        %v628 = vsel %vm496, %v623, %v627
        %v661 = vunpack.c.l.b16 %v480
        %v662 = vunpack.c.h.b16 %v480
        %v663 = vunpack.c.l.b16 %v481
        %v664 = vunpack.c.h.b16 %v481
        %v665 = vunpack.c.l.b16 %v482
        %v666 = vunpack.c.h.b16 %v482
        %v667 = vunpack.c.l.b16 %v483
        %v668 = vunpack.c.h.b16 %v483
        %v669 = vunpack.c.l.b16 %v484
        %v670 = vunpack.c.h.b16 %v484
        %v671 = vunpack.c.l.b16 %v485
        %v672 = vunpack.c.h.b16 %v485
        %v673 = vunpack.c.l.b16 %v486
        %v674 = vunpack.c.h.b16 %v486
        %v675 = vunpack.c.l.b16 %v487
        %v676 = vunpack.c.h.b16 %v487
        %v677 = vunpack.c.l.b16 %v488
        %v678 = vunpack.c.h.b16 %v488
        %v679 = vunpack.c.l.b16 %v489
        %v680 = vunpack.c.h.b16 %v489
        %v681 = vunpack.c.l.b16 %v490
        %v682 = vunpack.c.h.b16 %v490
        %v683 = vunpack.c.l.b16 %v491
        %v684 = vunpack.c.h.b16 %v491
        %v685 = vunpack.c.l.b16 %v492
        %v686 = vunpack.c.h.b16 %v492
        %v687 = vunpack.c.l.b16 %v493
        %v688 = vunpack.c.h.b16 %v493
        %v689 = vunpack.c.l.b16 %v494
        %v690 = vunpack.c.h.b16 %v494
        %v691 = vunpack.c.l.b16 %v495
        %v692 = vunpack.c.h.b16 %v495
        %v693 = vpack.c.b16 %v663, %v661
        %v694 = vpack.c.b16 %v664, %v662
        %v695 = vpack.c.b16 %v667, %v665
        %v696 = vpack.c.b16 %v668, %v666
        %v697 = vpack.c.b16 %v671, %v669
        %v698 = vpack.c.b16 %v672, %v670
        %v699 = vpack.c.b16 %v675, %v673
        %v700 = vpack.c.b16 %v676, %v674
        %v701 = vpack.c.b16 %v679, %v677
        %v702 = vpack.c.b16 %v680, %v678
        %v703 = vpack.c.b16 %v683, %v681
        %v704 = vpack.c.b16 %v684, %v682
        %v705 = vpack.c.b16 %v687, %v685
        %v706 = vpack.c.b16 %v688, %v686
        %v707 = vpack.c.b16 %v691, %v689
        %v708 = vpack.c.b16 %v692, %v690
        %725 = vmatprep.subr.bf16.mxu0 %v694
        %726 = vmatpush1.bf16.msra.mxu0 %v693
        %727 = vmatprep.subr.bf16.mxu0 %v696
        %728 = vmatpush1.bf16.msra.mxu0 %v695
        %729 = vmatprep.subr.bf16.mxu0 %v698
        %730 = vmatpush1.bf16.msra.mxu0 %v697
        %731 = vmatprep.subr.bf16.mxu0 %v700
        %732 = vmatpush1.bf16.msra.mxu0 %v699
        %733 = vmatprep.subr.bf16.mxu0 %v702
        %734 = vmatpush1.bf16.msra.mxu0 %v701
        %735 = vmatprep.subr.bf16.mxu0 %v704
        %736 = vmatpush1.bf16.msra.mxu0 %v703
        %737 = vmatprep.subr.bf16.mxu0 %v706
        %738 = vmatpush1.bf16.msra.mxu0 %v705
        %739 = vmatprep.subr.bf16.mxu0 %v708
        %740 = vmatpush1.bf16.msra.mxu0 %v707
        %741 = vmatprep.subr.bf16.mxu0 0
        %742 = vmatpush1.bf16.msra.mxu0 0
        %743 = vmatprep.subr.bf16.mxu0 0
        %744 = vmatpush1.bf16.msra.mxu0 0
        %745 = vmatprep.subr.bf16.mxu0 0
        %746 = vmatpush1.bf16.msra.mxu0 0
        %747 = vmatprep.subr.bf16.mxu0 0
        %748 = vmatpush1.bf16.msra.mxu0 0
        %749 = vmatprep.subr.bf16.mxu0 0
        %750 = vmatpush1.bf16.msra.mxu0 0
        %751 = vmatprep.subr.bf16.mxu0 0
        %752 = vmatpush1.bf16.msra.mxu0 0
        %753 = vmatprep.subr.bf16.mxu0 0
        %754 = vmatpush1.bf16.msra.mxu0 0
        %755 = vmatprep.subr.bf16.mxu0 0
        %756 = vmatpush1.bf16.msra.mxu0 0
        %757 = vmatprep.mubr.bf16.mxu0 0
        %758 = vmatmul.mubr.bf16.gmra.mrb[0].mxu0 %v508
        %v759 = vpop.f32.mrb[0].mxu0
        %v760 = vadd.f32 0.0, %v759
        %v761 = vpop.f32.mrb[0].mxu0
        %v762 = vadd.f32 0.0, %v761
        %v763 = vpop.f32.mrb[0].mxu0
        %v764 = vadd.f32 0.0, %v763
        %v765 = vpop.f32.mrb[0].mxu0
        %v766 = vadd.f32 0.0, %v765
        %767 = vmatprep.mubr.bf16.mxu0 0
        %768 = vmatmul.mubr.bf16.gmra.mrb[0].mxu0 %v516
        %v769 = vpop.f32.mrb[0].mxu0
        %v770 = vadd.f32 0.0, %v769
        %v771 = vpop.f32.mrb[0].mxu0
        %v772 = vadd.f32 0.0, %v771
        %v773 = vpop.f32.mrb[0].mxu0
        %v774 = vadd.f32 0.0, %v773
        %v775 = vpop.f32.mrb[0].mxu0
        %v776 = vadd.f32 0.0, %v775
        %777 = vmatprep.mubr.bf16.mxu0 0
        %778 = vmatmul.mubr.bf16.gmra.mrb[0].mxu0 %v524
        %v779 = vpop.f32.mrb[0].mxu0
        %v780 = vadd.f32 0.0, %v779
        %v781 = vpop.f32.mrb[0].mxu0
        %v782 = vadd.f32 0.0, %v781
        %v783 = vpop.f32.mrb[0].mxu0
        %v784 = vadd.f32 0.0, %v783
        %v785 = vpop.f32.mrb[0].mxu0
        %v786 = vadd.f32 0.0, %v785
        %787 = vmatprep.mubr.bf16.mxu0 0
        %788 = vmatmul.mubr.bf16.gmra.mrb[0].mxu0 %v532
        %v789 = vpop.f32.mrb[0].mxu0
        %v790 = vadd.f32 0.0, %v789
        %v791 = vpop.f32.mrb[0].mxu0
        %v792 = vadd.f32 0.0, %v791
        %v793 = vpop.f32.mrb[0].mxu0
        %v794 = vadd.f32 0.0, %v793
        %v795 = vpop.f32.mrb[0].mxu0
        %v796 = vadd.f32 0.0, %v795
        %797 = vmatprep.mubr.bf16.mxu0 0
        %798 = vmatmul.mubr.bf16.gmra.mrb[0].mxu0 %v540
        %v799 = vpop.f32.mrb[0].mxu0
        %v800 = vadd.f32 0.0, %v799
        %v801 = vpop.f32.mrb[0].mxu0
        %v802 = vadd.f32 0.0, %v801
        %v803 = vpop.f32.mrb[0].mxu0
        %v804 = vadd.f32 0.0, %v803
        %v805 = vpop.f32.mrb[0].mxu0
        %v806 = vadd.f32 0.0, %v805
        %807 = vmatprep.mubr.bf16.mxu0 0
        %808 = vmatmul.mubr.bf16.gmra.mrb[0].mxu0 %v548
        %v809 = vpop.f32.mrb[0].mxu0
        %v810 = vadd.f32 0.0, %v809
        %v811 = vpop.f32.mrb[0].mxu0
        %v812 = vadd.f32 0.0, %v811
        %v813 = vpop.f32.mrb[0].mxu0
        %v814 = vadd.f32 0.0, %v813
        %v815 = vpop.f32.mrb[0].mxu0
        %v816 = vadd.f32 0.0, %v815
        %817 = vmatprep.mubr.bf16.mxu0 0
        %818 = vmatmul.mubr.bf16.gmra.mrb[0].mxu0 %v556
        %v819 = vpop.f32.mrb[0].mxu0
        %v820 = vadd.f32 0.0, %v819
        %v821 = vpop.f32.mrb[0].mxu0
        %v822 = vadd.f32 0.0, %v821
        %v823 = vpop.f32.mrb[0].mxu0
        %v824 = vadd.f32 0.0, %v823
        %v825 = vpop.f32.mrb[0].mxu0
        %v826 = vadd.f32 0.0, %v825
        %827 = vmatprep.mubr.bf16.mxu0 0
        %828 = vmatmul.mubr.bf16.gmra.mrb[0].mxu0 %v564
        %v829 = vpop.f32.mrb[0].mxu0
        %v830 = vadd.f32 0.0, %v829
        %v831 = vpop.f32.mrb[0].mxu0
        %v832 = vadd.f32 0.0, %v831
        %v833 = vpop.f32.mrb[0].mxu0
        %v834 = vadd.f32 0.0, %v833
        %v835 = vpop.f32.mrb[0].mxu0
        %v836 = vadd.f32 0.0, %v835
        %837 = vmatprep.mubr.bf16.mxu0 0
        %838 = vmatmul.mubr.bf16.gmra.mrb[0].mxu0 %v572
        %v839 = vpop.f32.mrb[0].mxu0
        %v840 = vadd.f32 0.0, %v839
        %v841 = vpop.f32.mrb[0].mxu0
        %v842 = vadd.f32 0.0, %v841
        %v843 = vpop.f32.mrb[0].mxu0
        %v844 = vadd.f32 0.0, %v843
        %v845 = vpop.f32.mrb[0].mxu0
        %v846 = vadd.f32 0.0, %v845
        %847 = vmatprep.mubr.bf16.mxu0 0
        %848 = vmatmul.mubr.bf16.gmra.mrb[0].mxu0 %v580
        %v849 = vpop.f32.mrb[0].mxu0
        %v850 = vadd.f32 0.0, %v849
        %v851 = vpop.f32.mrb[0].mxu0
        %v852 = vadd.f32 0.0, %v851
        %v853 = vpop.f32.mrb[0].mxu0
        %v854 = vadd.f32 0.0, %v853
        %v855 = vpop.f32.mrb[0].mxu0
        %v856 = vadd.f32 0.0, %v855
        %857 = vmatprep.mubr.bf16.mxu0 0
        %858 = vmatmul.mubr.bf16.gmra.mrb[0].mxu0 %v588
        %v859 = vpop.f32.mrb[0].mxu0
        %v860 = vadd.f32 0.0, %v859
        %v861 = vpop.f32.mrb[0].mxu0
        %v862 = vadd.f32 0.0, %v861
        %v863 = vpop.f32.mrb[0].mxu0
        %v864 = vadd.f32 0.0, %v863
        %v865 = vpop.f32.mrb[0].mxu0
        %v866 = vadd.f32 0.0, %v865
        %867 = vmatprep.mubr.bf16.mxu0 0
        %868 = vmatmul.mubr.bf16.gmra.mrb[0].mxu0 %v596
        %v869 = vpop.f32.mrb[0].mxu0
        %v870 = vadd.f32 0.0, %v869
        %v871 = vpop.f32.mrb[0].mxu0
        %v872 = vadd.f32 0.0, %v871
        %v873 = vpop.f32.mrb[0].mxu0
        %v874 = vadd.f32 0.0, %v873
        %v875 = vpop.f32.mrb[0].mxu0
        %v876 = vadd.f32 0.0, %v875
        %877 = vmatprep.mubr.bf16.mxu0 0
        %878 = vmatmul.mubr.bf16.gmra.mrb[0].mxu0 %v604
        %v879 = vpop.f32.mrb[0].mxu0
        %v880 = vadd.f32 0.0, %v879
        %v881 = vpop.f32.mrb[0].mxu0
        %v882 = vadd.f32 0.0, %v881
        %v883 = vpop.f32.mrb[0].mxu0
        %v884 = vadd.f32 0.0, %v883
        %v885 = vpop.f32.mrb[0].mxu0
        %v886 = vadd.f32 0.0, %v885
        %887 = vmatprep.mubr.bf16.mxu0 0
        %888 = vmatmul.mubr.bf16.gmra.mrb[0].mxu0 %v612
        %v889 = vpop.f32.mrb[0].mxu0
        %v890 = vadd.f32 0.0, %v889
        %v891 = vpop.f32.mrb[0].mxu0
        %v892 = vadd.f32 0.0, %v891
        %v893 = vpop.f32.mrb[0].mxu0
        %v894 = vadd.f32 0.0, %v893
        %v895 = vpop.f32.mrb[0].mxu0
        %v896 = vadd.f32 0.0, %v895
        %897 = vmatprep.mubr.bf16.mxu0 0
        %898 = vmatmul.mubr.bf16.gmra.mrb[0].mxu0 %v620
        %v899 = vpop.f32.mrb[0].mxu0
        %v900 = vadd.f32 0.0, %v899
        %v901 = vpop.f32.mrb[0].mxu0
        %v902 = vadd.f32 0.0, %v901
        %v903 = vpop.f32.mrb[0].mxu0
        %v904 = vadd.f32 0.0, %v903
        %v905 = vpop.f32.mrb[0].mxu0
        %v906 = vadd.f32 0.0, %v905
        %907 = vmatprep.mubr.bf16.mxu0 0
        %908 = vmatmul.mubr.bf16.gmra.mrb[0].mxu0 %v628
        %v909 = vpop.f32.mrb[0].mxu0
        %v910 = vadd.f32 0.0, %v909
        %v911 = vpop.f32.mrb[0].mxu0
        %v912 = vadd.f32 0.0, %v911
        %v913 = vpop.f32.mrb[0].mxu0
        %v914 = vadd.f32 0.0, %v913
        %v915 = vpop.f32.mrb[0].mxu0
        %v916 = vadd.f32 0.0, %v915
        %917 = vdwg.mxu0
        %s918 = scalar_lea.vmem %s1, 256
        %v919 = vld [vmem:[%s918] sm:$0xff]
        %v920 = vld [vmem:[%s918 + $0x8] sm:$0xff]
        %v921 = vld [vmem:[%s918 + $0x10] sm:$0xff]
        %v922 = vld [vmem:[%s918 + $0x18] sm:$0xff]
        %v923 = vld [vmem:[%s918 + $0x20] sm:$0xff]
        %v924 = vld [vmem:[%s918 + $0x28] sm:$0xff]
        %v925 = vld [vmem:[%s918 + $0x30] sm:$0xff]
        %v926 = vld [vmem:[%s918 + $0x38] sm:$0xff]
        %v927 = vld [vmem:[%s918 + $0x40] sm:$0xff]
        %v928 = vld [vmem:[%s918 + $0x48] sm:$0xff]
        %v929 = vld [vmem:[%s918 + $0x50] sm:$0xff]
        %v930 = vld [vmem:[%s918 + $0x58] sm:$0xff]
        %v931 = vld [vmem:[%s918 + $0x60] sm:$0xff]
        %v932 = vld [vmem:[%s918 + $0x68] sm:$0xff]
        %v933 = vld [vmem:[%s918 + $0x70] sm:$0xff]
        %v934 = vld [vmem:[%s918 + $0x78] sm:$0xff]
        %s935 = scalar_lea.vmem %s1, 384
        %v936 = vld [vmem:[%s935] sm:$0xff]
        %v937 = vld [vmem:[%s935 + $0x8] sm:$0xff]
        %v938 = vld [vmem:[%s935 + $0x10] sm:$0xff]
        %v939 = vld [vmem:[%s935 + $0x18] sm:$0xff]
        %v940 = vld [vmem:[%s935 + $0x20] sm:$0xff]
        %v941 = vld [vmem:[%s935 + $0x28] sm:$0xff]
        %v942 = vld [vmem:[%s935 + $0x30] sm:$0xff]
        %v943 = vld [vmem:[%s935 + $0x38] sm:$0xff]
        %v944 = vld [vmem:[%s935 + $0x40] sm:$0xff]
        %v945 = vld [vmem:[%s935 + $0x48] sm:$0xff]
        %v946 = vld [vmem:[%s935 + $0x50] sm:$0xff]
        %v947 = vld [vmem:[%s935 + $0x58] sm:$0xff]
        %v948 = vld [vmem:[%s935 + $0x60] sm:$0xff]
        %v949 = vld [vmem:[%s935 + $0x68] sm:$0xff]
        %v950 = vld [vmem:[%s935 + $0x70] sm:$0xff]
        %v951 = vld [vmem:[%s935 + $0x78] sm:$0xff]
        %vm952 = vsmask.f32 6400
        %v953 = vrot.slane %v498, 1
        %v954 = vrot.slane %v500, 2
        %v955 = vor.u32 %v953, %v954
        %v956 = vrot.slane %v509, 1
        %v957 = vrot.slane %v505, 2
        %v958 = vor.u32 %v956, %v957
        %v959 = vsel %vm952, %v955, %v958
        %v960 = vrot.slane %v517, 1
        %v961 = vrot.slane %v513, 2
        %v962 = vor.u32 %v960, %v961
        %v963 = vsel %vm952, %v958, %v962
        %v964 = vrot.slane %v525, 1
        %v965 = vrot.slane %v521, 2
        %v966 = vor.u32 %v964, %v965
        %v967 = vsel %vm952, %v962, %v966
        %v968 = vrot.slane %v533, 1
        %v969 = vrot.slane %v529, 2
        %v970 = vor.u32 %v968, %v969
        %v971 = vsel %vm952, %v966, %v970
        %v972 = vrot.slane %v541, 1
        %v973 = vrot.slane %v537, 2
        %v974 = vor.u32 %v972, %v973
        %v975 = vsel %vm952, %v970, %v974
        %v976 = vrot.slane %v549, 1
        %v977 = vrot.slane %v545, 2
        %v978 = vor.u32 %v976, %v977
        %v979 = vsel %vm952, %v974, %v978
        %v980 = vrot.slane %v557, 1
        %v981 = vrot.slane %v553, 2
        %v982 = vor.u32 %v980, %v981
        %v983 = vsel %vm952, %v978, %v982
        %v984 = vrot.slane %v565, 1
        %v985 = vrot.slane %v561, 2
        %v986 = vor.u32 %v984, %v985
        %v987 = vsel %vm952, %v982, %v986
        %v988 = vrot.slane %v573, 1
        %v989 = vrot.slane %v569, 2
        %v990 = vor.u32 %v988, %v989
        %v991 = vsel %vm952, %v986, %v990
        %v992 = vrot.slane %v581, 1
        %v993 = vrot.slane %v577, 2
        %v994 = vor.u32 %v992, %v993
        %v995 = vsel %vm952, %v990, %v994
        %v996 = vrot.slane %v589, 1
        %v997 = vrot.slane %v585, 2
        %v998 = vor.u32 %v996, %v997
        %v999 = vsel %vm952, %v994, %v998
        %v1000 = vrot.slane %v597, 1
        %v1001 = vrot.slane %v593, 2
        %v1002 = vor.u32 %v1000, %v1001
        %v1003 = vsel %vm952, %v998, %v1002
        %v1004 = vrot.slane %v605, 1
        %v1005 = vrot.slane %v601, 2
        %v1006 = vor.u32 %v1004, %v1005
        %v1007 = vsel %vm952, %v1002, %v1006
        %v1008 = vrot.slane %v613, 1
        %v1009 = vrot.slane %v609, 2
        %v1010 = vor.u32 %v1008, %v1009
        %v1011 = vsel %vm952, %v1006, %v1010
        %v1012 = vrot.slane %v621, 1
        %v1013 = vrot.slane %v617, 2
        %v1014 = vor.u32 %v1012, %v1013
        %v1015 = vsel %vm952, %v1010, %v1014
        %v1016 = vshrl.u32 %v462, 16
        %v1018 = vrot.slane %v1016, 1
        %v1019 = vrot.slane %v625, 2
        %v1020 = vor.u32 %v1018, %v1019
        %v1021 = vsel %vm952, %v1014, %v1020
        %v1054 = vunpack.c.l.b16 %v936
        %v1055 = vunpack.c.h.b16 %v936
        %v1056 = vunpack.c.l.b16 %v937
        %v1057 = vunpack.c.h.b16 %v937
        %v1058 = vunpack.c.l.b16 %v938
        %v1059 = vunpack.c.h.b16 %v938
        %v1060 = vunpack.c.l.b16 %v939
        %v1061 = vunpack.c.h.b16 %v939
        %v1062 = vunpack.c.l.b16 %v940
        %v1063 = vunpack.c.h.b16 %v940
        %v1064 = vunpack.c.l.b16 %v941
        %v1065 = vunpack.c.h.b16 %v941
        %v1066 = vunpack.c.l.b16 %v942
        %v1067 = vunpack.c.h.b16 %v942
        %v1068 = vunpack.c.l.b16 %v943
        %v1069 = vunpack.c.h.b16 %v943
        %v1070 = vunpack.c.l.b16 %v944
        %v1071 = vunpack.c.h.b16 %v944
        %v1072 = vunpack.c.l.b16 %v945
        %v1073 = vunpack.c.h.b16 %v945
        %v1074 = vunpack.c.l.b16 %v946
        %v1075 = vunpack.c.h.b16 %v946
        %v1076 = vunpack.c.l.b16 %v947
        %v1077 = vunpack.c.h.b16 %v947
        %v1078 = vunpack.c.l.b16 %v948
        %v1079 = vunpack.c.h.b16 %v948
        %v1080 = vunpack.c.l.b16 %v949
        %v1081 = vunpack.c.h.b16 %v949
        %v1082 = vunpack.c.l.b16 %v950
        %v1083 = vunpack.c.h.b16 %v950
        %v1084 = vunpack.c.l.b16 %v951
        %v1085 = vunpack.c.h.b16 %v951
        %v1086 = vpack.c.b16 %v1056, %v1054
        %v1087 = vpack.c.b16 %v1057, %v1055
        %v1088 = vpack.c.b16 %v1060, %v1058
        %v1089 = vpack.c.b16 %v1061, %v1059
        %v1090 = vpack.c.b16 %v1064, %v1062
        %v1091 = vpack.c.b16 %v1065, %v1063
        %v1092 = vpack.c.b16 %v1068, %v1066
        %v1093 = vpack.c.b16 %v1069, %v1067
        %v1094 = vpack.c.b16 %v1072, %v1070
        %v1095 = vpack.c.b16 %v1073, %v1071
        %v1096 = vpack.c.b16 %v1076, %v1074
        %v1097 = vpack.c.b16 %v1077, %v1075
        %v1098 = vpack.c.b16 %v1080, %v1078
        %v1099 = vpack.c.b16 %v1081, %v1079
        %v1100 = vpack.c.b16 %v1084, %v1082
        %v1101 = vpack.c.b16 %v1085, %v1083
        %1118 = vmatprep.subr.bf16.mxu0 %v1087
        %1119 = vmatpush1.bf16.msra.mxu0 %v1086
        %1120 = vmatprep.subr.bf16.mxu0 %v1089
        %1121 = vmatpush1.bf16.msra.mxu0 %v1088
        %1122 = vmatprep.subr.bf16.mxu0 %v1091
        %1123 = vmatpush1.bf16.msra.mxu0 %v1090
        %1124 = vmatprep.subr.bf16.mxu0 %v1093
        %1125 = vmatpush1.bf16.msra.mxu0 %v1092
        %1126 = vmatprep.subr.bf16.mxu0 %v1095
        %1127 = vmatpush1.bf16.msra.mxu0 %v1094
        %1128 = vmatprep.subr.bf16.mxu0 %v1097
        %1129 = vmatpush1.bf16.msra.mxu0 %v1096
        %1130 = vmatprep.subr.bf16.mxu0 %v1099
        %1131 = vmatpush1.bf16.msra.mxu0 %v1098
        %1132 = vmatprep.subr.bf16.mxu0 %v1101
        %1133 = vmatpush1.bf16.msra.mxu0 %v1100
        %1134 = vmatprep.subr.bf16.mxu0 0
        %1135 = vmatpush1.bf16.msra.mxu0 0
        %1136 = vmatprep.subr.bf16.mxu0 0
        %1137 = vmatpush1.bf16.msra.mxu0 0
        %1138 = vmatprep.subr.bf16.mxu0 0
        %1139 = vmatpush1.bf16.msra.mxu0 0
        %1140 = vmatprep.subr.bf16.mxu0 0
        %1141 = vmatpush1.bf16.msra.mxu0 0
        %1142 = vmatprep.subr.bf16.mxu0 0
        %1143 = vmatpush1.bf16.msra.mxu0 0
        %1144 = vmatprep.subr.bf16.mxu0 0
        %1145 = vmatpush1.bf16.msra.mxu0 0
        %1146 = vmatprep.subr.bf16.mxu0 0
        %1147 = vmatpush1.bf16.msra.mxu0 0
        %1148 = vmatprep.subr.bf16.mxu0 0
        %1149 = vmatpush1.bf16.msra.mxu0 0
        %1150 = vmatprep.mubr.bf16.mxu0 0
        %1151 = vmatmul.mubr.bf16.gmra.mrb[0].mxu0 %v959
        %v1152 = vpop.f32.mrb[0].mxu0
        %v1153 = vadd.f32 0.0, %v1152
        %v1154 = vpop.f32.mrb[0].mxu0
        %v1155 = vadd.f32 0.0, %v1154
        %v1156 = vpop.f32.mrb[0].mxu0
        %v1157 = vadd.f32 0.0, %v1156
        %v1158 = vpop.f32.mrb[0].mxu0
        %v1159 = vadd.f32 0.0, %v1158
        %1160 = vmatprep.mubr.bf16.mxu0 0
        %1161 = vmatmul.mubr.bf16.gmra.mrb[0].mxu0 %v963
        %v1162 = vpop.f32.mrb[0].mxu0
        %v1163 = vadd.f32 0.0, %v1162
        %v1164 = vpop.f32.mrb[0].mxu0
        %v1165 = vadd.f32 0.0, %v1164
        %v1166 = vpop.f32.mrb[0].mxu0
        %v1167 = vadd.f32 0.0, %v1166
        %v1168 = vpop.f32.mrb[0].mxu0
        %v1169 = vadd.f32 0.0, %v1168
        %1170 = vmatprep.mubr.bf16.mxu0 0
        %1171 = vmatmul.mubr.bf16.gmra.mrb[0].mxu0 %v967
        %v1172 = vpop.f32.mrb[0].mxu0
        %v1173 = vadd.f32 0.0, %v1172
        %v1174 = vpop.f32.mrb[0].mxu0
        %v1175 = vadd.f32 0.0, %v1174
        %v1176 = vpop.f32.mrb[0].mxu0
        %v1177 = vadd.f32 0.0, %v1176
        %v1178 = vpop.f32.mrb[0].mxu0
        %v1179 = vadd.f32 0.0, %v1178
        %1180 = vmatprep.mubr.bf16.mxu0 0
        %1181 = vmatmul.mubr.bf16.gmra.mrb[0].mxu0 %v971
        %v1182 = vpop.f32.mrb[0].mxu0
        %v1183 = vadd.f32 0.0, %v1182
        %v1184 = vpop.f32.mrb[0].mxu0
        %v1185 = vadd.f32 0.0, %v1184
        %v1186 = vpop.f32.mrb[0].mxu0
        %v1187 = vadd.f32 0.0, %v1186
        %v1188 = vpop.f32.mrb[0].mxu0
        %v1189 = vadd.f32 0.0, %v1188
        %1190 = vmatprep.mubr.bf16.mxu0 0
        %1191 = vmatmul.mubr.bf16.gmra.mrb[0].mxu0 %v975
        %v1192 = vpop.f32.mrb[0].mxu0
        %v1193 = vadd.f32 0.0, %v1192
        %v1194 = vpop.f32.mrb[0].mxu0
        %v1195 = vadd.f32 0.0, %v1194
        %v1196 = vpop.f32.mrb[0].mxu0
        %v1197 = vadd.f32 0.0, %v1196
        %v1198 = vpop.f32.mrb[0].mxu0
        %v1199 = vadd.f32 0.0, %v1198
        %1200 = vmatprep.mubr.bf16.mxu0 0
        %1201 = vmatmul.mubr.bf16.gmra.mrb[0].mxu0 %v979
        %v1202 = vpop.f32.mrb[0].mxu0
        %v1203 = vadd.f32 0.0, %v1202
        %v1204 = vpop.f32.mrb[0].mxu0
        %v1205 = vadd.f32 0.0, %v1204
        %v1206 = vpop.f32.mrb[0].mxu0
        %v1207 = vadd.f32 0.0, %v1206
        %v1208 = vpop.f32.mrb[0].mxu0
        %v1209 = vadd.f32 0.0, %v1208
        %1210 = vmatprep.mubr.bf16.mxu0 0
        %1211 = vmatmul.mubr.bf16.gmra.mrb[0].mxu0 %v983
        %v1212 = vpop.f32.mrb[0].mxu0
        %v1213 = vadd.f32 0.0, %v1212
        %v1214 = vpop.f32.mrb[0].mxu0
        %v1215 = vadd.f32 0.0, %v1214
        %v1216 = vpop.f32.mrb[0].mxu0
        %v1217 = vadd.f32 0.0, %v1216
        %v1218 = vpop.f32.mrb[0].mxu0
        %v1219 = vadd.f32 0.0, %v1218
        %1220 = vmatprep.mubr.bf16.mxu0 0
        %1221 = vmatmul.mubr.bf16.gmra.mrb[0].mxu0 %v987
        %v1222 = vpop.f32.mrb[0].mxu0
        %v1223 = vadd.f32 0.0, %v1222
        %v1224 = vpop.f32.mrb[0].mxu0
        %v1225 = vadd.f32 0.0, %v1224
        %v1226 = vpop.f32.mrb[0].mxu0
        %v1227 = vadd.f32 0.0, %v1226
        %v1228 = vpop.f32.mrb[0].mxu0
        %v1229 = vadd.f32 0.0, %v1228
        %1230 = vmatprep.mubr.bf16.mxu0 0
        %1231 = vmatmul.mubr.bf16.gmra.mrb[0].mxu0 %v991
        %v1232 = vpop.f32.mrb[0].mxu0
        %v1233 = vadd.f32 0.0, %v1232
        %v1234 = vpop.f32.mrb[0].mxu0
        %v1235 = vadd.f32 0.0, %v1234
        %v1236 = vpop.f32.mrb[0].mxu0
        %v1237 = vadd.f32 0.0, %v1236
        %v1238 = vpop.f32.mrb[0].mxu0
        %v1239 = vadd.f32 0.0, %v1238
        %1240 = vmatprep.mubr.bf16.mxu0 0
        %1241 = vmatmul.mubr.bf16.gmra.mrb[0].mxu0 %v995
        %v1242 = vpop.f32.mrb[0].mxu0
        %v1243 = vadd.f32 0.0, %v1242
        %v1244 = vpop.f32.mrb[0].mxu0
        %v1245 = vadd.f32 0.0, %v1244
        %v1246 = vpop.f32.mrb[0].mxu0
        %v1247 = vadd.f32 0.0, %v1246
        %v1248 = vpop.f32.mrb[0].mxu0
        %v1249 = vadd.f32 0.0, %v1248
        %1250 = vmatprep.mubr.bf16.mxu0 0
        %1251 = vmatmul.mubr.bf16.gmra.mrb[0].mxu0 %v999
        %v1252 = vpop.f32.mrb[0].mxu0
        %v1253 = vadd.f32 0.0, %v1252
        %v1254 = vpop.f32.mrb[0].mxu0
        %v1255 = vadd.f32 0.0, %v1254
        %v1256 = vpop.f32.mrb[0].mxu0
        %v1257 = vadd.f32 0.0, %v1256
        %v1258 = vpop.f32.mrb[0].mxu0
        %v1259 = vadd.f32 0.0, %v1258
        %1260 = vmatprep.mubr.bf16.mxu0 0
        %1261 = vmatmul.mubr.bf16.gmra.mrb[0].mxu0 %v1003
        %v1262 = vpop.f32.mrb[0].mxu0
        %v1263 = vadd.f32 0.0, %v1262
        %v1264 = vpop.f32.mrb[0].mxu0
        %v1265 = vadd.f32 0.0, %v1264
        %v1266 = vpop.f32.mrb[0].mxu0
        %v1267 = vadd.f32 0.0, %v1266
        %v1268 = vpop.f32.mrb[0].mxu0
        %v1269 = vadd.f32 0.0, %v1268
        %1270 = vmatprep.mubr.bf16.mxu0 0
        %1271 = vmatmul.mubr.bf16.gmra.mrb[0].mxu0 %v1007
        %v1272 = vpop.f32.mrb[0].mxu0
        %v1273 = vadd.f32 0.0, %v1272
        %v1274 = vpop.f32.mrb[0].mxu0
        %v1275 = vadd.f32 0.0, %v1274
        %v1276 = vpop.f32.mrb[0].mxu0
        %v1277 = vadd.f32 0.0, %v1276
        %v1278 = vpop.f32.mrb[0].mxu0
        %v1279 = vadd.f32 0.0, %v1278
        %1280 = vmatprep.mubr.bf16.mxu0 0
        %1281 = vmatmul.mubr.bf16.gmra.mrb[0].mxu0 %v1011
        %v1282 = vpop.f32.mrb[0].mxu0
        %v1283 = vadd.f32 0.0, %v1282
        %v1284 = vpop.f32.mrb[0].mxu0
        %v1285 = vadd.f32 0.0, %v1284
        %v1286 = vpop.f32.mrb[0].mxu0
        %v1287 = vadd.f32 0.0, %v1286
        %v1288 = vpop.f32.mrb[0].mxu0
        %v1289 = vadd.f32 0.0, %v1288
        %1290 = vmatprep.mubr.bf16.mxu0 0
        %1291 = vmatmul.mubr.bf16.gmra.mrb[0].mxu0 %v1015
        %v1292 = vpop.f32.mrb[0].mxu0
        %v1293 = vadd.f32 0.0, %v1292
        %v1294 = vpop.f32.mrb[0].mxu0
        %v1295 = vadd.f32 0.0, %v1294
        %v1296 = vpop.f32.mrb[0].mxu0
        %v1297 = vadd.f32 0.0, %v1296
        %v1298 = vpop.f32.mrb[0].mxu0
        %v1299 = vadd.f32 0.0, %v1298
        %1300 = vmatprep.mubr.bf16.mxu0 0
        %1301 = vmatmul.mubr.bf16.gmra.mrb[0].mxu0 %v1021
        %v1302 = vpop.f32.mrb[0].mxu0
        %v1303 = vadd.f32 0.0, %v1302
        %v1304 = vpop.f32.mrb[0].mxu0
        %v1305 = vadd.f32 0.0, %v1304
        %v1306 = vpop.f32.mrb[0].mxu0
        %v1307 = vadd.f32 0.0, %v1306
        %v1308 = vpop.f32.mrb[0].mxu0
        %v1309 = vadd.f32 0.0, %v1308
        %1310 = vdwg.mxu0
        %s1311 = scalar_lea.vmem %s1, 512
        %v1312 = vld [vmem:[%s1311] sm:$0xff]
        %v1313 = vld [vmem:[%s1311 + $0x8] sm:$0xff]
        %v1314 = vld [vmem:[%s1311 + $0x10] sm:$0xff]
        %v1315 = vld [vmem:[%s1311 + $0x18] sm:$0xff]
        %v1316 = vld [vmem:[%s1311 + $0x20] sm:$0xff]
        %v1317 = vld [vmem:[%s1311 + $0x28] sm:$0xff]
        %v1318 = vld [vmem:[%s1311 + $0x30] sm:$0xff]
        %v1319 = vld [vmem:[%s1311 + $0x38] sm:$0xff]
        %v1320 = vld [vmem:[%s1311 + $0x40] sm:$0xff]
        %v1321 = vld [vmem:[%s1311 + $0x48] sm:$0xff]
        %v1322 = vld [vmem:[%s1311 + $0x50] sm:$0xff]
        %v1323 = vld [vmem:[%s1311 + $0x58] sm:$0xff]
        %v1324 = vld [vmem:[%s1311 + $0x60] sm:$0xff]
        %v1325 = vld [vmem:[%s1311 + $0x68] sm:$0xff]
        %v1326 = vld [vmem:[%s1311 + $0x70] sm:$0xff]
        %v1327 = vld [vmem:[%s1311 + $0x78] sm:$0xff]
        %vm1345 = vcmask 1045504
        %v1346 = vrot.slane %v446, 2
        %v1347 = vrot.slane %v447, 2
        %v1348 = vsel %vm1345, %v1346, %v1347
        %v1349 = vrot.slane %v448, 2
        %v1350 = vsel %vm1345, %v1347, %v1349
        %v1351 = vrot.slane %v449, 2
        %v1352 = vsel %vm1345, %v1349, %v1351
        %v1353 = vrot.slane %v450, 2
        %v1354 = vsel %vm1345, %v1351, %v1353
        %v1355 = vrot.slane %v451, 2
        %v1356 = vsel %vm1345, %v1353, %v1355
        %v1357 = vrot.slane %v452, 2
        %v1358 = vsel %vm1345, %v1355, %v1357
        %v1359 = vrot.slane %v453, 2
        %v1360 = vsel %vm1345, %v1357, %v1359
        %v1361 = vrot.slane %v454, 2
        %v1362 = vsel %vm1345, %v1359, %v1361
        %v1363 = vrot.slane %v455, 2
        %v1364 = vsel %vm1345, %v1361, %v1363
        %v1365 = vrot.slane %v456, 2
        %v1366 = vsel %vm1345, %v1363, %v1365
        %v1367 = vrot.slane %v457, 2
        %v1368 = vsel %vm1345, %v1365, %v1367
        %v1369 = vrot.slane %v458, 2
        %v1370 = vsel %vm1345, %v1367, %v1369
        %v1371 = vrot.slane %v459, 2
        %v1372 = vsel %vm1345, %v1369, %v1371
        %v1373 = vrot.slane %v460, 2
        %v1374 = vsel %vm1345, %v1371, %v1373
        %v1375 = vrot.slane %v461, 2
        %v1376 = vsel %vm1345, %v1373, %v1375
        %v1377 = vrot.slane %v462, 2
        %v1378 = vsel %vm1345, %v1375, %v1377
        %v1411 = vunpack.c.l.b16 %v1312
        %v1412 = vunpack.c.h.b16 %v1312
        %v1413 = vunpack.c.l.b16 %v1313
        %v1414 = vunpack.c.h.b16 %v1313
        %v1415 = vunpack.c.l.b16 %v1314
        %v1416 = vunpack.c.h.b16 %v1314
        %v1417 = vunpack.c.l.b16 %v1315
        %v1418 = vunpack.c.h.b16 %v1315
        %v1419 = vunpack.c.l.b16 %v1316
        %v1420 = vunpack.c.h.b16 %v1316
        %v1421 = vunpack.c.l.b16 %v1317
        %v1422 = vunpack.c.h.b16 %v1317
        %v1423 = vunpack.c.l.b16 %v1318
        %v1424 = vunpack.c.h.b16 %v1318
        %v1425 = vunpack.c.l.b16 %v1319
        %v1426 = vunpack.c.h.b16 %v1319
        %v1427 = vunpack.c.l.b16 %v1320
        %v1428 = vunpack.c.h.b16 %v1320
        %v1429 = vunpack.c.l.b16 %v1321
        %v1430 = vunpack.c.h.b16 %v1321
        %v1431 = vunpack.c.l.b16 %v1322
        %v1432 = vunpack.c.h.b16 %v1322
        %v1433 = vunpack.c.l.b16 %v1323
        %v1434 = vunpack.c.h.b16 %v1323
        %v1435 = vunpack.c.l.b16 %v1324
        %v1436 = vunpack.c.h.b16 %v1324
        %v1437 = vunpack.c.l.b16 %v1325
        %v1438 = vunpack.c.h.b16 %v1325
        %v1439 = vunpack.c.l.b16 %v1326
        %v1440 = vunpack.c.h.b16 %v1326
        %v1441 = vunpack.c.l.b16 %v1327
        %v1442 = vunpack.c.h.b16 %v1327
        %v1443 = vpack.c.b16 %v1413, %v1411
        %v1444 = vpack.c.b16 %v1414, %v1412
        %v1445 = vpack.c.b16 %v1417, %v1415
        %v1446 = vpack.c.b16 %v1418, %v1416
        %v1447 = vpack.c.b16 %v1421, %v1419
        %v1448 = vpack.c.b16 %v1422, %v1420
        %v1449 = vpack.c.b16 %v1425, %v1423
        %v1450 = vpack.c.b16 %v1426, %v1424
        %v1451 = vpack.c.b16 %v1429, %v1427
        %v1452 = vpack.c.b16 %v1430, %v1428
        %v1453 = vpack.c.b16 %v1433, %v1431
        %v1454 = vpack.c.b16 %v1434, %v1432
        %v1455 = vpack.c.b16 %v1437, %v1435
        %v1456 = vpack.c.b16 %v1438, %v1436
        %v1457 = vpack.c.b16 %v1441, %v1439
        %v1458 = vpack.c.b16 %v1442, %v1440
        %1475 = vmatprep.subr.bf16.mxu0 %v1444
        %1476 = vmatpush1.bf16.msra.mxu0 %v1443
        %1477 = vmatprep.subr.bf16.mxu0 %v1446
        %1478 = vmatpush1.bf16.msra.mxu0 %v1445
        %1479 = vmatprep.subr.bf16.mxu0 %v1448
        %1480 = vmatpush1.bf16.msra.mxu0 %v1447
        %1481 = vmatprep.subr.bf16.mxu0 %v1450
        %1482 = vmatpush1.bf16.msra.mxu0 %v1449
        %1483 = vmatprep.subr.bf16.mxu0 %v1452
        %1484 = vmatpush1.bf16.msra.mxu0 %v1451
        %1485 = vmatprep.subr.bf16.mxu0 %v1454
        %1486 = vmatpush1.bf16.msra.mxu0 %v1453
        %1487 = vmatprep.subr.bf16.mxu0 %v1456
        %1488 = vmatpush1.bf16.msra.mxu0 %v1455
        %1489 = vmatprep.subr.bf16.mxu0 %v1458
        %1490 = vmatpush1.bf16.msra.mxu0 %v1457
        %1491 = vmatprep.subr.bf16.mxu0 0
        %1492 = vmatpush1.bf16.msra.mxu0 0
        %1493 = vmatprep.subr.bf16.mxu0 0
        %1494 = vmatpush1.bf16.msra.mxu0 0
        %1495 = vmatprep.subr.bf16.mxu0 0
        %1496 = vmatpush1.bf16.msra.mxu0 0
        %1497 = vmatprep.subr.bf16.mxu0 0
        %1498 = vmatpush1.bf16.msra.mxu0 0
        %1499 = vmatprep.subr.bf16.mxu0 0
        %1500 = vmatpush1.bf16.msra.mxu0 0
        %1501 = vmatprep.subr.bf16.mxu0 0
        %1502 = vmatpush1.bf16.msra.mxu0 0
        %1503 = vmatprep.subr.bf16.mxu0 0
        %1504 = vmatpush1.bf16.msra.mxu0 0
        %1505 = vmatprep.subr.bf16.mxu0 0
        %1506 = vmatpush1.bf16.msra.mxu0 0
        %1507 = vmatprep.mubr.bf16.mxu0 0
        %1508 = vmatmul.mubr.bf16.gmra.mrb[0].mxu0 %v1348
        %v1509 = vpop.f32.mrb[0].mxu0
        %v1510 = vadd.f32 0.0, %v1509
        %v1511 = vpop.f32.mrb[0].mxu0
        %v1512 = vadd.f32 0.0, %v1511
        %v1513 = vpop.f32.mrb[0].mxu0
        %v1514 = vadd.f32 0.0, %v1513
        %v1515 = vpop.f32.mrb[0].mxu0
        %v1516 = vadd.f32 0.0, %v1515
        %1517 = vmatprep.mubr.bf16.mxu0 0
        %1518 = vmatmul.mubr.bf16.gmra.mrb[0].mxu0 %v1350
        %v1519 = vpop.f32.mrb[0].mxu0
        %v1520 = vadd.f32 0.0, %v1519
        %v1521 = vpop.f32.mrb[0].mxu0
        %v1522 = vadd.f32 0.0, %v1521
        %v1523 = vpop.f32.mrb[0].mxu0
        %v1524 = vadd.f32 0.0, %v1523
        %v1525 = vpop.f32.mrb[0].mxu0
        %v1526 = vadd.f32 0.0, %v1525
        %1527 = vmatprep.mubr.bf16.mxu0 0
        %1528 = vmatmul.mubr.bf16.gmra.mrb[0].mxu0 %v1352
        %v1529 = vpop.f32.mrb[0].mxu0
        %v1530 = vadd.f32 0.0, %v1529
        %v1531 = vpop.f32.mrb[0].mxu0
        %v1532 = vadd.f32 0.0, %v1531
        %v1533 = vpop.f32.mrb[0].mxu0
        %v1534 = vadd.f32 0.0, %v1533
        %v1535 = vpop.f32.mrb[0].mxu0
        %v1536 = vadd.f32 0.0, %v1535
        %1537 = vmatprep.mubr.bf16.mxu0 0
        %1538 = vmatmul.mubr.bf16.gmra.mrb[0].mxu0 %v1354
        %v1539 = vpop.f32.mrb[0].mxu0
        %v1540 = vadd.f32 0.0, %v1539
        %v1541 = vpop.f32.mrb[0].mxu0
        %v1542 = vadd.f32 0.0, %v1541
        %v1543 = vpop.f32.mrb[0].mxu0
        %v1544 = vadd.f32 0.0, %v1543
        %v1545 = vpop.f32.mrb[0].mxu0
        %v1546 = vadd.f32 0.0, %v1545
        %1547 = vmatprep.mubr.bf16.mxu0 0
        %1548 = vmatmul.mubr.bf16.gmra.mrb[0].mxu0 %v1356
        %v1549 = vpop.f32.mrb[0].mxu0
        %v1550 = vadd.f32 0.0, %v1549
        %v1551 = vpop.f32.mrb[0].mxu0
        %v1552 = vadd.f32 0.0, %v1551
        %v1553 = vpop.f32.mrb[0].mxu0
        %v1554 = vadd.f32 0.0, %v1553
        %v1555 = vpop.f32.mrb[0].mxu0
        %v1556 = vadd.f32 0.0, %v1555
        %1557 = vmatprep.mubr.bf16.mxu0 0
        %1558 = vmatmul.mubr.bf16.gmra.mrb[0].mxu0 %v1358
        %v1559 = vpop.f32.mrb[0].mxu0
        %v1560 = vadd.f32 0.0, %v1559
        %v1561 = vpop.f32.mrb[0].mxu0
        %v1562 = vadd.f32 0.0, %v1561
        %v1563 = vpop.f32.mrb[0].mxu0
        %v1564 = vadd.f32 0.0, %v1563
        %v1565 = vpop.f32.mrb[0].mxu0
        %v1566 = vadd.f32 0.0, %v1565
        %1567 = vmatprep.mubr.bf16.mxu0 0
        %1568 = vmatmul.mubr.bf16.gmra.mrb[0].mxu0 %v1360
        %v1569 = vpop.f32.mrb[0].mxu0
        %v1570 = vadd.f32 0.0, %v1569
        %v1571 = vpop.f32.mrb[0].mxu0
        %v1572 = vadd.f32 0.0, %v1571
        %v1573 = vpop.f32.mrb[0].mxu0
        %v1574 = vadd.f32 0.0, %v1573
        %v1575 = vpop.f32.mrb[0].mxu0
        %v1576 = vadd.f32 0.0, %v1575
        %1577 = vmatprep.mubr.bf16.mxu0 0
        %1578 = vmatmul.mubr.bf16.gmra.mrb[0].mxu0 %v1362
        %v1579 = vpop.f32.mrb[0].mxu0
        %v1580 = vadd.f32 0.0, %v1579
        %v1581 = vpop.f32.mrb[0].mxu0
        %v1582 = vadd.f32 0.0, %v1581
        %v1583 = vpop.f32.mrb[0].mxu0
        %v1584 = vadd.f32 0.0, %v1583
        %v1585 = vpop.f32.mrb[0].mxu0
        %v1586 = vadd.f32 0.0, %v1585
        %1587 = vmatprep.mubr.bf16.mxu0 0
        %1588 = vmatmul.mubr.bf16.gmra.mrb[0].mxu0 %v1364
        %v1589 = vpop.f32.mrb[0].mxu0
        %v1590 = vadd.f32 0.0, %v1589
        %v1591 = vpop.f32.mrb[0].mxu0
        %v1592 = vadd.f32 0.0, %v1591
        %v1593 = vpop.f32.mrb[0].mxu0
        %v1594 = vadd.f32 0.0, %v1593
        %v1595 = vpop.f32.mrb[0].mxu0
        %v1596 = vadd.f32 0.0, %v1595
        %1597 = vmatprep.mubr.bf16.mxu0 0
        %1598 = vmatmul.mubr.bf16.gmra.mrb[0].mxu0 %v1366
        %v1599 = vpop.f32.mrb[0].mxu0
        %v1600 = vadd.f32 0.0, %v1599
        %v1601 = vpop.f32.mrb[0].mxu0
        %v1602 = vadd.f32 0.0, %v1601
        %v1603 = vpop.f32.mrb[0].mxu0
        %v1604 = vadd.f32 0.0, %v1603
        %v1605 = vpop.f32.mrb[0].mxu0
        %v1606 = vadd.f32 0.0, %v1605
        %1607 = vmatprep.mubr.bf16.mxu0 0
        %1608 = vmatmul.mubr.bf16.gmra.mrb[0].mxu0 %v1368
        %v1609 = vpop.f32.mrb[0].mxu0
        %v1610 = vadd.f32 0.0, %v1609
        %v1611 = vpop.f32.mrb[0].mxu0
        %v1612 = vadd.f32 0.0, %v1611
        %v1613 = vpop.f32.mrb[0].mxu0
        %v1614 = vadd.f32 0.0, %v1613
        %v1615 = vpop.f32.mrb[0].mxu0
        %v1616 = vadd.f32 0.0, %v1615
        %1617 = vmatprep.mubr.bf16.mxu0 0
        %1618 = vmatmul.mubr.bf16.gmra.mrb[0].mxu0 %v1370
        %v1619 = vpop.f32.mrb[0].mxu0
        %v1620 = vadd.f32 0.0, %v1619
        %v1621 = vpop.f32.mrb[0].mxu0
        %v1622 = vadd.f32 0.0, %v1621
        %v1623 = vpop.f32.mrb[0].mxu0
        %v1624 = vadd.f32 0.0, %v1623
        %v1625 = vpop.f32.mrb[0].mxu0
        %v1626 = vadd.f32 0.0, %v1625
        %1627 = vmatprep.mubr.bf16.mxu0 0
        %1628 = vmatmul.mubr.bf16.gmra.mrb[0].mxu0 %v1372
        %v1629 = vpop.f32.mrb[0].mxu0
        %v1630 = vadd.f32 0.0, %v1629
        %v1631 = vpop.f32.mrb[0].mxu0
        %v1632 = vadd.f32 0.0, %v1631
        %v1633 = vpop.f32.mrb[0].mxu0
        %v1634 = vadd.f32 0.0, %v1633
        %v1635 = vpop.f32.mrb[0].mxu0
        %v1636 = vadd.f32 0.0, %v1635
        %1637 = vmatprep.mubr.bf16.mxu0 0
        %1638 = vmatmul.mubr.bf16.gmra.mrb[0].mxu0 %v1374
        %v1639 = vpop.f32.mrb[0].mxu0
        %v1640 = vadd.f32 0.0, %v1639
        %v1641 = vpop.f32.mrb[0].mxu0
        %v1642 = vadd.f32 0.0, %v1641
        %v1643 = vpop.f32.mrb[0].mxu0
        %v1644 = vadd.f32 0.0, %v1643
        %v1645 = vpop.f32.mrb[0].mxu0
        %v1646 = vadd.f32 0.0, %v1645
        %1647 = vmatprep.mubr.bf16.mxu0 0
        %1648 = vmatmul.mubr.bf16.gmra.mrb[0].mxu0 %v1376
        %v1649 = vpop.f32.mrb[0].mxu0
        %v1650 = vadd.f32 0.0, %v1649
        %v1651 = vpop.f32.mrb[0].mxu0
        %v1652 = vadd.f32 0.0, %v1651
        %v1653 = vpop.f32.mrb[0].mxu0
        %v1654 = vadd.f32 0.0, %v1653
        %v1655 = vpop.f32.mrb[0].mxu0
        %v1656 = vadd.f32 0.0, %v1655
        %1657 = vmatprep.mubr.bf16.mxu0 0
        %1658 = vmatmul.mubr.bf16.gmra.mrb[0].mxu0 %v1378
        %v1659 = vpop.f32.mrb[0].mxu0
        %v1660 = vadd.f32 0.0, %v1659
        %v1661 = vpop.f32.mrb[0].mxu0
        %v1662 = vadd.f32 0.0, %v1661
        %v1663 = vpop.f32.mrb[0].mxu0
        %v1664 = vadd.f32 0.0, %v1663
        %v1665 = vpop.f32.mrb[0].mxu0
        %v1666 = vadd.f32 0.0, %v1665
        %1667 = vdwg.mxu0
        %v1684 = vunpack.c.l.b16 %v463
        %v1685 = vunpack.c.h.b16 %v463
        %v1686 = vunpack.c.l.b16 %v464
        %v1687 = vunpack.c.h.b16 %v464
        %v1688 = vunpack.c.l.b16 %v465
        %v1689 = vunpack.c.h.b16 %v465
        %v1690 = vunpack.c.l.b16 %v466
        %v1691 = vunpack.c.h.b16 %v466
        %v1692 = vunpack.c.l.b16 %v467
        %v1693 = vunpack.c.h.b16 %v467
        %v1694 = vunpack.c.l.b16 %v468
        %v1695 = vunpack.c.h.b16 %v468
        %v1696 = vunpack.c.l.b16 %v469
        %v1697 = vunpack.c.h.b16 %v469
        %v1698 = vunpack.c.l.b16 %v470
        %v1699 = vunpack.c.h.b16 %v470
        %v1700 = vunpack.c.l.b16 %v471
        %v1701 = vunpack.c.h.b16 %v471
        %v1702 = vunpack.c.l.b16 %v472
        %v1703 = vunpack.c.h.b16 %v472
        %v1704 = vunpack.c.l.b16 %v473
        %v1705 = vunpack.c.h.b16 %v473
        %v1706 = vunpack.c.l.b16 %v474
        %v1707 = vunpack.c.h.b16 %v474
        %v1708 = vunpack.c.l.b16 %v475
        %v1709 = vunpack.c.h.b16 %v475
        %v1710 = vunpack.c.l.b16 %v476
        %v1711 = vunpack.c.h.b16 %v476
        %v1712 = vunpack.c.l.b16 %v477
        %v1713 = vunpack.c.h.b16 %v477
        %v1714 = vunpack.c.l.b16 %v478
        %v1715 = vunpack.c.h.b16 %v478
        %v1716 = vpack.c.b16 %v1686, %v1684
        %v1717 = vpack.c.b16 %v1687, %v1685
        %v1718 = vpack.c.b16 %v1690, %v1688
        %v1719 = vpack.c.b16 %v1691, %v1689
        %v1720 = vpack.c.b16 %v1694, %v1692
        %v1721 = vpack.c.b16 %v1695, %v1693
        %v1722 = vpack.c.b16 %v1698, %v1696
        %v1723 = vpack.c.b16 %v1699, %v1697
        %v1724 = vpack.c.b16 %v1702, %v1700
        %v1725 = vpack.c.b16 %v1703, %v1701
        %v1726 = vpack.c.b16 %v1706, %v1704
        %v1727 = vpack.c.b16 %v1707, %v1705
        %v1728 = vpack.c.b16 %v1710, %v1708
        %v1729 = vpack.c.b16 %v1711, %v1709
        %v1730 = vpack.c.b16 %v1714, %v1712
        %v1731 = vpack.c.b16 %v1715, %v1713
        %1748 = vmatprep.subr.bf16.mxu0 %v1717
        %1749 = vmatpush1.bf16.msra.mxu0 %v1716
        %1750 = vmatprep.subr.bf16.mxu0 %v1719
        %1751 = vmatpush1.bf16.msra.mxu0 %v1718
        %1752 = vmatprep.subr.bf16.mxu0 %v1721
        %1753 = vmatpush1.bf16.msra.mxu0 %v1720
        %1754 = vmatprep.subr.bf16.mxu0 %v1723
        %1755 = vmatpush1.bf16.msra.mxu0 %v1722
        %1756 = vmatprep.subr.bf16.mxu0 %v1725
        %1757 = vmatpush1.bf16.msra.mxu0 %v1724
        %1758 = vmatprep.subr.bf16.mxu0 %v1727
        %1759 = vmatpush1.bf16.msra.mxu0 %v1726
        %1760 = vmatprep.subr.bf16.mxu0 %v1729
        %1761 = vmatpush1.bf16.msra.mxu0 %v1728
        %1762 = vmatprep.subr.bf16.mxu0 %v1731
        %1763 = vmatpush1.bf16.msra.mxu0 %v1730
        %1764 = vmatprep.subr.bf16.mxu0 0
        %1765 = vmatpush1.bf16.msra.mxu0 0
        %1766 = vmatprep.subr.bf16.mxu0 0
        %1767 = vmatpush1.bf16.msra.mxu0 0
        %1768 = vmatprep.subr.bf16.mxu0 0
        %1769 = vmatpush1.bf16.msra.mxu0 0
        %1770 = vmatprep.subr.bf16.mxu0 0
        %1771 = vmatpush1.bf16.msra.mxu0 0
        %1772 = vmatprep.subr.bf16.mxu0 0
        %1773 = vmatpush1.bf16.msra.mxu0 0
        %1774 = vmatprep.subr.bf16.mxu0 0
        %1775 = vmatpush1.bf16.msra.mxu0 0
        %1776 = vmatprep.subr.bf16.mxu0 0
        %1777 = vmatpush1.bf16.msra.mxu0 0
        %1778 = vmatprep.subr.bf16.mxu0 0
        %1779 = vmatpush1.bf16.msra.mxu0 0
        %1780 = vmatprep.mubr.bf16.mxu0 0
        %1781 = vmatmul.mubr.bf16.gmra.mrb[0].mxu0 %v446
        %v1782 = vpop.f32.mrb[0].mxu0
        %v1783 = vadd.f32 %v760, %v1782
        %v1784 = vpop.f32.mrb[0].mxu0
        %v1785 = vadd.f32 %v762, %v1784
        %v1786 = vpop.f32.mrb[0].mxu0
        %v1787 = vadd.f32 %v764, %v1786
        %v1788 = vpop.f32.mrb[0].mxu0
        %v1789 = vadd.f32 %v766, %v1788
        %1790 = vmatprep.mubr.bf16.mxu0 0
        %1791 = vmatmul.mubr.bf16.gmra.mrb[0].mxu0 %v447
        %v1792 = vpop.f32.mrb[0].mxu0
        %v1793 = vadd.f32 %v770, %v1792
        %v1794 = vpop.f32.mrb[0].mxu0
        %v1795 = vadd.f32 %v772, %v1794
        %v1796 = vpop.f32.mrb[0].mxu0
        %v1797 = vadd.f32 %v774, %v1796
        %v1798 = vpop.f32.mrb[0].mxu0
        %v1799 = vadd.f32 %v776, %v1798
        %1800 = vmatprep.mubr.bf16.mxu0 0
        %1801 = vmatmul.mubr.bf16.gmra.mrb[0].mxu0 %v448
        %v1802 = vpop.f32.mrb[0].mxu0
        %v1803 = vadd.f32 %v780, %v1802
        %v1804 = vpop.f32.mrb[0].mxu0
        %v1805 = vadd.f32 %v782, %v1804
        %v1806 = vpop.f32.mrb[0].mxu0
        %v1807 = vadd.f32 %v784, %v1806
        %v1808 = vpop.f32.mrb[0].mxu0
        %v1809 = vadd.f32 %v786, %v1808
        %1810 = vmatprep.mubr.bf16.mxu0 0
        %1811 = vmatmul.mubr.bf16.gmra.mrb[0].mxu0 %v449
        %v1812 = vpop.f32.mrb[0].mxu0
        %v1813 = vadd.f32 %v790, %v1812
        %v1814 = vpop.f32.mrb[0].mxu0
        %v1815 = vadd.f32 %v792, %v1814
        %v1816 = vpop.f32.mrb[0].mxu0
        %v1817 = vadd.f32 %v794, %v1816
        %v1818 = vpop.f32.mrb[0].mxu0
        %v1819 = vadd.f32 %v796, %v1818
        %1820 = vmatprep.mubr.bf16.mxu0 0
        %1821 = vmatmul.mubr.bf16.gmra.mrb[0].mxu0 %v450
        %v1822 = vpop.f32.mrb[0].mxu0
        %v1823 = vadd.f32 %v800, %v1822
        %v1824 = vpop.f32.mrb[0].mxu0
        %v1825 = vadd.f32 %v802, %v1824
        %v1826 = vpop.f32.mrb[0].mxu0
        %v1827 = vadd.f32 %v804, %v1826
        %v1828 = vpop.f32.mrb[0].mxu0
        %v1829 = vadd.f32 %v806, %v1828
        %1830 = vmatprep.mubr.bf16.mxu0 0
        %1831 = vmatmul.mubr.bf16.gmra.mrb[0].mxu0 %v451
        %v1832 = vpop.f32.mrb[0].mxu0
        %v1833 = vadd.f32 %v810, %v1832
        %v1834 = vpop.f32.mrb[0].mxu0
        %v1835 = vadd.f32 %v812, %v1834
        %v1836 = vpop.f32.mrb[0].mxu0
        %v1837 = vadd.f32 %v814, %v1836
        %v1838 = vpop.f32.mrb[0].mxu0
        %v1839 = vadd.f32 %v816, %v1838
        %1840 = vmatprep.mubr.bf16.mxu0 0
        %1841 = vmatmul.mubr.bf16.gmra.mrb[0].mxu0 %v452
        %v1842 = vpop.f32.mrb[0].mxu0
        %v1843 = vadd.f32 %v820, %v1842
        %v1844 = vpop.f32.mrb[0].mxu0
        %v1845 = vadd.f32 %v822, %v1844
        %v1846 = vpop.f32.mrb[0].mxu0
        %v1847 = vadd.f32 %v824, %v1846
        %v1848 = vpop.f32.mrb[0].mxu0
        %v1849 = vadd.f32 %v826, %v1848
        %1850 = vmatprep.mubr.bf16.mxu0 0
        %1851 = vmatmul.mubr.bf16.gmra.mrb[0].mxu0 %v453
        %v1852 = vpop.f32.mrb[0].mxu0
        %v1853 = vadd.f32 %v830, %v1852
        %v1854 = vpop.f32.mrb[0].mxu0
        %v1855 = vadd.f32 %v832, %v1854
        %v1856 = vpop.f32.mrb[0].mxu0
        %v1857 = vadd.f32 %v834, %v1856
        %v1858 = vpop.f32.mrb[0].mxu0
        %v1859 = vadd.f32 %v836, %v1858
        %1860 = vmatprep.mubr.bf16.mxu0 0
        %1861 = vmatmul.mubr.bf16.gmra.mrb[0].mxu0 %v454
        %v1862 = vpop.f32.mrb[0].mxu0
        %v1863 = vadd.f32 %v840, %v1862
        %v1864 = vpop.f32.mrb[0].mxu0
        %v1865 = vadd.f32 %v842, %v1864
        %v1866 = vpop.f32.mrb[0].mxu0
        %v1867 = vadd.f32 %v844, %v1866
        %v1868 = vpop.f32.mrb[0].mxu0
        %v1869 = vadd.f32 %v846, %v1868
        %1870 = vmatprep.mubr.bf16.mxu0 0
        %1871 = vmatmul.mubr.bf16.gmra.mrb[0].mxu0 %v455
        %v1872 = vpop.f32.mrb[0].mxu0
        %v1873 = vadd.f32 %v850, %v1872
        %v1874 = vpop.f32.mrb[0].mxu0
        %v1875 = vadd.f32 %v852, %v1874
        %v1876 = vpop.f32.mrb[0].mxu0
        %v1877 = vadd.f32 %v854, %v1876
        %v1878 = vpop.f32.mrb[0].mxu0
        %v1879 = vadd.f32 %v856, %v1878
        %1880 = vmatprep.mubr.bf16.mxu0 0
        %1881 = vmatmul.mubr.bf16.gmra.mrb[0].mxu0 %v456
        %v1882 = vpop.f32.mrb[0].mxu0
        %v1883 = vadd.f32 %v860, %v1882
        %v1884 = vpop.f32.mrb[0].mxu0
        %v1885 = vadd.f32 %v862, %v1884
        %v1886 = vpop.f32.mrb[0].mxu0
        %v1887 = vadd.f32 %v864, %v1886
        %v1888 = vpop.f32.mrb[0].mxu0
        %v1889 = vadd.f32 %v866, %v1888
        %1890 = vmatprep.mubr.bf16.mxu0 0
        %1891 = vmatmul.mubr.bf16.gmra.mrb[0].mxu0 %v457
        %v1892 = vpop.f32.mrb[0].mxu0
        %v1893 = vadd.f32 %v870, %v1892
        %v1894 = vpop.f32.mrb[0].mxu0
        %v1895 = vadd.f32 %v872, %v1894
        %v1896 = vpop.f32.mrb[0].mxu0
        %v1897 = vadd.f32 %v874, %v1896
        %v1898 = vpop.f32.mrb[0].mxu0
        %v1899 = vadd.f32 %v876, %v1898
        %1900 = vmatprep.mubr.bf16.mxu0 0
        %1901 = vmatmul.mubr.bf16.gmra.mrb[0].mxu0 %v458
        %v1902 = vpop.f32.mrb[0].mxu0
        %v1903 = vadd.f32 %v880, %v1902
        %v1904 = vpop.f32.mrb[0].mxu0
        %v1905 = vadd.f32 %v882, %v1904
        %v1906 = vpop.f32.mrb[0].mxu0
        %v1907 = vadd.f32 %v884, %v1906
        %v1908 = vpop.f32.mrb[0].mxu0
        %v1909 = vadd.f32 %v886, %v1908
        %1910 = vmatprep.mubr.bf16.mxu0 0
        %1911 = vmatmul.mubr.bf16.gmra.mrb[0].mxu0 %v459
        %v1912 = vpop.f32.mrb[0].mxu0
        %v1913 = vadd.f32 %v890, %v1912
        %v1914 = vpop.f32.mrb[0].mxu0
        %v1915 = vadd.f32 %v892, %v1914
        %v1916 = vpop.f32.mrb[0].mxu0
        %v1917 = vadd.f32 %v894, %v1916
        %v1918 = vpop.f32.mrb[0].mxu0
        %v1919 = vadd.f32 %v896, %v1918
        %1920 = vmatprep.mubr.bf16.mxu0 0
        %1921 = vmatmul.mubr.bf16.gmra.mrb[0].mxu0 %v460
        %v1922 = vpop.f32.mrb[0].mxu0
        %v1923 = vadd.f32 %v900, %v1922
        %v1924 = vpop.f32.mrb[0].mxu0
        %v1925 = vadd.f32 %v902, %v1924
        %v1926 = vpop.f32.mrb[0].mxu0
        %v1927 = vadd.f32 %v904, %v1926
        %v1928 = vpop.f32.mrb[0].mxu0
        %v1929 = vadd.f32 %v906, %v1928
        %1930 = vmatprep.mubr.bf16.mxu0 0
        %1931 = vmatmul.mubr.bf16.gmra.mrb[0].mxu0 %v461
        %v1932 = vpop.f32.mrb[0].mxu0
        %v1933 = vadd.f32 %v910, %v1932
        %v1934 = vpop.f32.mrb[0].mxu0
        %v1935 = vadd.f32 %v912, %v1934
        %v1936 = vpop.f32.mrb[0].mxu0
        %v1937 = vadd.f32 %v914, %v1936
        %v1938 = vpop.f32.mrb[0].mxu0
        %v1939 = vadd.f32 %v916, %v1938
        %1940 = vdwg.mxu0
        %vm1941 = vcmask 1046528
        %v1942 = vrot.slane %v446, 1
        %v1943 = vrot.slane %v447, 1
        %v1944 = vsel %vm1941, %v1942, %v1943
        %v1945 = vrot.slane %v448, 1
        %v1946 = vsel %vm1941, %v1943, %v1945
        %v1947 = vrot.slane %v449, 1
        %v1948 = vsel %vm1941, %v1945, %v1947
        %v1949 = vrot.slane %v450, 1
        %v1950 = vsel %vm1941, %v1947, %v1949
        %v1951 = vrot.slane %v451, 1
        %v1952 = vsel %vm1941, %v1949, %v1951
        %v1953 = vrot.slane %v452, 1
        %v1954 = vsel %vm1941, %v1951, %v1953
        %v1955 = vrot.slane %v453, 1
        %v1956 = vsel %vm1941, %v1953, %v1955
        %v1957 = vrot.slane %v454, 1
        %v1958 = vsel %vm1941, %v1955, %v1957
        %v1959 = vrot.slane %v455, 1
        %v1960 = vsel %vm1941, %v1957, %v1959
        %v1961 = vrot.slane %v456, 1
        %v1962 = vsel %vm1941, %v1959, %v1961
        %v1963 = vrot.slane %v457, 1
        %v1964 = vsel %vm1941, %v1961, %v1963
        %v1965 = vrot.slane %v458, 1
        %v1966 = vsel %vm1941, %v1963, %v1965
        %v1967 = vrot.slane %v459, 1
        %v1968 = vsel %vm1941, %v1965, %v1967
        %v1969 = vrot.slane %v460, 1
        %v1970 = vsel %vm1941, %v1967, %v1969
        %v1971 = vrot.slane %v461, 1
        %v1972 = vsel %vm1941, %v1969, %v1971
        %v1973 = vrot.slane %v462, 1
        %v1974 = vsel %vm1941, %v1971, %v1973
        %v2007 = vunpack.c.l.b16 %v919
        %v2008 = vunpack.c.h.b16 %v919
        %v2009 = vunpack.c.l.b16 %v920
        %v2010 = vunpack.c.h.b16 %v920
        %v2011 = vunpack.c.l.b16 %v921
        %v2012 = vunpack.c.h.b16 %v921
        %v2013 = vunpack.c.l.b16 %v922
        %v2014 = vunpack.c.h.b16 %v922
        %v2015 = vunpack.c.l.b16 %v923
        %v2016 = vunpack.c.h.b16 %v923
        %v2017 = vunpack.c.l.b16 %v924
        %v2018 = vunpack.c.h.b16 %v924
        %v2019 = vunpack.c.l.b16 %v925
        %v2020 = vunpack.c.h.b16 %v925
        %v2021 = vunpack.c.l.b16 %v926
        %v2022 = vunpack.c.h.b16 %v926
        %v2023 = vunpack.c.l.b16 %v927
        %v2024 = vunpack.c.h.b16 %v927
        %v2025 = vunpack.c.l.b16 %v928
        %v2026 = vunpack.c.h.b16 %v928
        %v2027 = vunpack.c.l.b16 %v929
        %v2028 = vunpack.c.h.b16 %v929
        %v2029 = vunpack.c.l.b16 %v930
        %v2030 = vunpack.c.h.b16 %v930
        %v2031 = vunpack.c.l.b16 %v931
        %v2032 = vunpack.c.h.b16 %v931
        %v2033 = vunpack.c.l.b16 %v932
        %v2034 = vunpack.c.h.b16 %v932
        %v2035 = vunpack.c.l.b16 %v933
        %v2036 = vunpack.c.h.b16 %v933
        %v2037 = vunpack.c.l.b16 %v934
        %v2038 = vunpack.c.h.b16 %v934
        %v2039 = vpack.c.b16 %v2009, %v2007
        %v2040 = vpack.c.b16 %v2010, %v2008
        %v2041 = vpack.c.b16 %v2013, %v2011
        %v2042 = vpack.c.b16 %v2014, %v2012
        %v2043 = vpack.c.b16 %v2017, %v2015
        %v2044 = vpack.c.b16 %v2018, %v2016
        %v2045 = vpack.c.b16 %v2021, %v2019
        %v2046 = vpack.c.b16 %v2022, %v2020
        %v2047 = vpack.c.b16 %v2025, %v2023
        %v2048 = vpack.c.b16 %v2026, %v2024
        %v2049 = vpack.c.b16 %v2029, %v2027
        %v2050 = vpack.c.b16 %v2030, %v2028
        %v2051 = vpack.c.b16 %v2033, %v2031
        %v2052 = vpack.c.b16 %v2034, %v2032
        %v2053 = vpack.c.b16 %v2037, %v2035
        %v2054 = vpack.c.b16 %v2038, %v2036
        %2071 = vmatprep.subr.bf16.mxu0 %v2040
        %2072 = vmatpush1.bf16.msra.mxu0 %v2039
        %2073 = vmatprep.subr.bf16.mxu0 %v2042
        %2074 = vmatpush1.bf16.msra.mxu0 %v2041
        %2075 = vmatprep.subr.bf16.mxu0 %v2044
        %2076 = vmatpush1.bf16.msra.mxu0 %v2043
        %2077 = vmatprep.subr.bf16.mxu0 %v2046
        %2078 = vmatpush1.bf16.msra.mxu0 %v2045
        %2079 = vmatprep.subr.bf16.mxu0 %v2048
        %2080 = vmatpush1.bf16.msra.mxu0 %v2047
        %2081 = vmatprep.subr.bf16.mxu0 %v2050
        %2082 = vmatpush1.bf16.msra.mxu0 %v2049
        %2083 = vmatprep.subr.bf16.mxu0 %v2052
        %2084 = vmatpush1.bf16.msra.mxu0 %v2051
        %2085 = vmatprep.subr.bf16.mxu0 %v2054
        %2086 = vmatpush1.bf16.msra.mxu0 %v2053
        %2087 = vmatprep.subr.bf16.mxu0 0
        %2088 = vmatpush1.bf16.msra.mxu0 0
        %2089 = vmatprep.subr.bf16.mxu0 0
        %2090 = vmatpush1.bf16.msra.mxu0 0
        %2091 = vmatprep.subr.bf16.mxu0 0
        %2092 = vmatpush1.bf16.msra.mxu0 0
        %2093 = vmatprep.subr.bf16.mxu0 0
        %2094 = vmatpush1.bf16.msra.mxu0 0
        %2095 = vmatprep.subr.bf16.mxu0 0
        %2096 = vmatpush1.bf16.msra.mxu0 0
        %2097 = vmatprep.subr.bf16.mxu0 0
        %2098 = vmatpush1.bf16.msra.mxu0 0
        %2099 = vmatprep.subr.bf16.mxu0 0
        %2100 = vmatpush1.bf16.msra.mxu0 0
        %2101 = vmatprep.subr.bf16.mxu0 0
        %2102 = vmatpush1.bf16.msra.mxu0 0
        %2103 = vmatprep.mubr.bf16.mxu0 0
        %2104 = vmatmul.mubr.bf16.gmra.mrb[0].mxu0 %v1944
        %v2105 = vpop.f32.mrb[0].mxu0
        %v2106 = vadd.f32 %v1153, %v2105
        %v2107 = vpop.f32.mrb[0].mxu0
        %v2108 = vadd.f32 %v1155, %v2107
        %v2109 = vpop.f32.mrb[0].mxu0
        %v2110 = vadd.f32 %v1157, %v2109
        %v2111 = vpop.f32.mrb[0].mxu0
        %v2112 = vadd.f32 %v1159, %v2111
        %2113 = vmatprep.mubr.bf16.mxu0 0
        %2114 = vmatmul.mubr.bf16.gmra.mrb[0].mxu0 %v1946
        %v2115 = vpop.f32.mrb[0].mxu0
        %v2116 = vadd.f32 %v1163, %v2115
        %v2117 = vpop.f32.mrb[0].mxu0
        %v2118 = vadd.f32 %v1165, %v2117
        %v2119 = vpop.f32.mrb[0].mxu0
        %v2120 = vadd.f32 %v1167, %v2119
        %v2121 = vpop.f32.mrb[0].mxu0
        %v2122 = vadd.f32 %v1169, %v2121
        %2123 = vmatprep.mubr.bf16.mxu0 0
        %2124 = vmatmul.mubr.bf16.gmra.mrb[0].mxu0 %v1948
        %v2125 = vpop.f32.mrb[0].mxu0
        %v2126 = vadd.f32 %v1173, %v2125
        %v2127 = vpop.f32.mrb[0].mxu0
        %v2128 = vadd.f32 %v1175, %v2127
        %v2129 = vpop.f32.mrb[0].mxu0
        %v2130 = vadd.f32 %v1177, %v2129
        %v2131 = vpop.f32.mrb[0].mxu0
        %v2132 = vadd.f32 %v1179, %v2131
        %2133 = vmatprep.mubr.bf16.mxu0 0
        %2134 = vmatmul.mubr.bf16.gmra.mrb[0].mxu0 %v1950
        %v2135 = vpop.f32.mrb[0].mxu0
        %v2136 = vadd.f32 %v1183, %v2135
        %v2137 = vpop.f32.mrb[0].mxu0
        %v2138 = vadd.f32 %v1185, %v2137
        %v2139 = vpop.f32.mrb[0].mxu0
        %v2140 = vadd.f32 %v1187, %v2139
        %v2141 = vpop.f32.mrb[0].mxu0
        %v2142 = vadd.f32 %v1189, %v2141
        %2143 = vmatprep.mubr.bf16.mxu0 0
        %2144 = vmatmul.mubr.bf16.gmra.mrb[0].mxu0 %v1952
        %v2145 = vpop.f32.mrb[0].mxu0
        %v2146 = vadd.f32 %v1193, %v2145
        %v2147 = vpop.f32.mrb[0].mxu0
        %v2148 = vadd.f32 %v1195, %v2147
        %v2149 = vpop.f32.mrb[0].mxu0
        %v2150 = vadd.f32 %v1197, %v2149
        %v2151 = vpop.f32.mrb[0].mxu0
        %v2152 = vadd.f32 %v1199, %v2151
        %2153 = vmatprep.mubr.bf16.mxu0 0
        %2154 = vmatmul.mubr.bf16.gmra.mrb[0].mxu0 %v1954
        %v2155 = vpop.f32.mrb[0].mxu0
        %v2156 = vadd.f32 %v1203, %v2155
        %v2157 = vpop.f32.mrb[0].mxu0
        %v2158 = vadd.f32 %v1205, %v2157
        %v2159 = vpop.f32.mrb[0].mxu0
        %v2160 = vadd.f32 %v1207, %v2159
        %v2161 = vpop.f32.mrb[0].mxu0
        %v2162 = vadd.f32 %v1209, %v2161
        %2163 = vmatprep.mubr.bf16.mxu0 0
        %2164 = vmatmul.mubr.bf16.gmra.mrb[0].mxu0 %v1956
        %v2165 = vpop.f32.mrb[0].mxu0
        %v2166 = vadd.f32 %v1213, %v2165
        %v2167 = vpop.f32.mrb[0].mxu0
        %v2168 = vadd.f32 %v1215, %v2167
        %v2169 = vpop.f32.mrb[0].mxu0
        %v2170 = vadd.f32 %v1217, %v2169
        %v2171 = vpop.f32.mrb[0].mxu0
        %v2172 = vadd.f32 %v1219, %v2171
        %2173 = vmatprep.mubr.bf16.mxu0 0
        %2174 = vmatmul.mubr.bf16.gmra.mrb[0].mxu0 %v1958
        %v2175 = vpop.f32.mrb[0].mxu0
        %v2176 = vadd.f32 %v1223, %v2175
        %v2177 = vpop.f32.mrb[0].mxu0
        %v2178 = vadd.f32 %v1225, %v2177
        %v2179 = vpop.f32.mrb[0].mxu0
        %v2180 = vadd.f32 %v1227, %v2179
        %v2181 = vpop.f32.mrb[0].mxu0
        %v2182 = vadd.f32 %v1229, %v2181
        %2183 = vmatprep.mubr.bf16.mxu0 0
        %2184 = vmatmul.mubr.bf16.gmra.mrb[0].mxu0 %v1960
        %v2185 = vpop.f32.mrb[0].mxu0
        %v2186 = vadd.f32 %v1233, %v2185
        %v2187 = vpop.f32.mrb[0].mxu0
        %v2188 = vadd.f32 %v1235, %v2187
        %v2189 = vpop.f32.mrb[0].mxu0
        %v2190 = vadd.f32 %v1237, %v2189
        %v2191 = vpop.f32.mrb[0].mxu0
        %v2192 = vadd.f32 %v1239, %v2191
        %2193 = vmatprep.mubr.bf16.mxu0 0
        %2194 = vmatmul.mubr.bf16.gmra.mrb[0].mxu0 %v1962
        %v2195 = vpop.f32.mrb[0].mxu0
        %v2196 = vadd.f32 %v1243, %v2195
        %v2197 = vpop.f32.mrb[0].mxu0
        %v2198 = vadd.f32 %v1245, %v2197
        %v2199 = vpop.f32.mrb[0].mxu0
        %v2200 = vadd.f32 %v1247, %v2199
        %v2201 = vpop.f32.mrb[0].mxu0
        %v2202 = vadd.f32 %v1249, %v2201
        %2203 = vmatprep.mubr.bf16.mxu0 0
        %2204 = vmatmul.mubr.bf16.gmra.mrb[0].mxu0 %v1964
        %v2205 = vpop.f32.mrb[0].mxu0
        %v2206 = vadd.f32 %v1253, %v2205
        %v2207 = vpop.f32.mrb[0].mxu0
        %v2208 = vadd.f32 %v1255, %v2207
        %v2209 = vpop.f32.mrb[0].mxu0
        %v2210 = vadd.f32 %v1257, %v2209
        %v2211 = vpop.f32.mrb[0].mxu0
        %v2212 = vadd.f32 %v1259, %v2211
        %2213 = vmatprep.mubr.bf16.mxu0 0
        %2214 = vmatmul.mubr.bf16.gmra.mrb[0].mxu0 %v1966
        %v2215 = vpop.f32.mrb[0].mxu0
        %v2216 = vadd.f32 %v1263, %v2215
        %v2217 = vpop.f32.mrb[0].mxu0
        %v2218 = vadd.f32 %v1265, %v2217
        %v2219 = vpop.f32.mrb[0].mxu0
        %v2220 = vadd.f32 %v1267, %v2219
        %v2221 = vpop.f32.mrb[0].mxu0
        %v2222 = vadd.f32 %v1269, %v2221
        %2223 = vmatprep.mubr.bf16.mxu0 0
        %2224 = vmatmul.mubr.bf16.gmra.mrb[0].mxu0 %v1968
        %v2225 = vpop.f32.mrb[0].mxu0
        %v2226 = vadd.f32 %v1273, %v2225
        %v2227 = vpop.f32.mrb[0].mxu0
        %v2228 = vadd.f32 %v1275, %v2227
        %v2229 = vpop.f32.mrb[0].mxu0
        %v2230 = vadd.f32 %v1277, %v2229
        %v2231 = vpop.f32.mrb[0].mxu0
        %v2232 = vadd.f32 %v1279, %v2231
        %2233 = vmatprep.mubr.bf16.mxu0 0
        %2234 = vmatmul.mubr.bf16.gmra.mrb[0].mxu0 %v1970
        %v2235 = vpop.f32.mrb[0].mxu0
        %v2236 = vadd.f32 %v1283, %v2235
        %v2237 = vpop.f32.mrb[0].mxu0
        %v2238 = vadd.f32 %v1285, %v2237
        %v2239 = vpop.f32.mrb[0].mxu0
        %v2240 = vadd.f32 %v1287, %v2239
        %v2241 = vpop.f32.mrb[0].mxu0
        %v2242 = vadd.f32 %v1289, %v2241
        %2243 = vmatprep.mubr.bf16.mxu0 0
        %2244 = vmatmul.mubr.bf16.gmra.mrb[0].mxu0 %v1972
        %v2245 = vpop.f32.mrb[0].mxu0
        %v2246 = vadd.f32 %v1293, %v2245
        %v2247 = vpop.f32.mrb[0].mxu0
        %v2248 = vadd.f32 %v1295, %v2247
        %v2249 = vpop.f32.mrb[0].mxu0
        %v2250 = vadd.f32 %v1297, %v2249
        %v2251 = vpop.f32.mrb[0].mxu0
        %v2252 = vadd.f32 %v1299, %v2251
        %2253 = vmatprep.mubr.bf16.mxu0 0
        %2254 = vmatmul.mubr.bf16.gmra.mrb[0].mxu0 %v1974
        %v2255 = vpop.f32.mrb[0].mxu0
        %v2256 = vadd.f32 %v1303, %v2255
        %v2257 = vpop.f32.mrb[0].mxu0
        %v2258 = vadd.f32 %v1305, %v2257
        %v2259 = vpop.f32.mrb[0].mxu0
        %v2260 = vadd.f32 %v1307, %v2259
        %v2261 = vpop.f32.mrb[0].mxu0
        %v2262 = vadd.f32 %v1309, %v2261
        %2263 = vdwg.mxu0
        %v2264 = vadd.f32 %v1783, %v2106
        %v2265 = vadd.f32 %v1785, %v2108
        %v2266 = vadd.f32 %v1787, %v2110
        %v2267 = vadd.f32 %v1789, %v2112
        %v2268 = vadd.f32 %v1793, %v2116
        %v2269 = vadd.f32 %v1795, %v2118
        %v2270 = vadd.f32 %v1797, %v2120
        %v2271 = vadd.f32 %v1799, %v2122
        %v2272 = vadd.f32 %v1803, %v2126
        %v2273 = vadd.f32 %v1805, %v2128
        %v2274 = vadd.f32 %v1807, %v2130
        %v2275 = vadd.f32 %v1809, %v2132
        %v2276 = vadd.f32 %v1813, %v2136
        %v2277 = vadd.f32 %v1815, %v2138
        %v2278 = vadd.f32 %v1817, %v2140
        %v2279 = vadd.f32 %v1819, %v2142
        %v2280 = vadd.f32 %v1823, %v2146
        %v2281 = vadd.f32 %v1825, %v2148
        %v2282 = vadd.f32 %v1827, %v2150
        %v2283 = vadd.f32 %v1829, %v2152
        %v2284 = vadd.f32 %v1833, %v2156
        %v2285 = vadd.f32 %v1835, %v2158
        %v2286 = vadd.f32 %v1837, %v2160
        %v2287 = vadd.f32 %v1839, %v2162
        %v2288 = vadd.f32 %v1843, %v2166
        %v2289 = vadd.f32 %v1845, %v2168
        %v2290 = vadd.f32 %v1847, %v2170
        %v2291 = vadd.f32 %v1849, %v2172
        %v2292 = vadd.f32 %v1853, %v2176
        %v2293 = vadd.f32 %v1855, %v2178
        %v2294 = vadd.f32 %v1857, %v2180
        %v2295 = vadd.f32 %v1859, %v2182
        %v2296 = vadd.f32 %v1863, %v2186
        %v2297 = vadd.f32 %v1865, %v2188
        %v2298 = vadd.f32 %v1867, %v2190
        %v2299 = vadd.f32 %v1869, %v2192
        %v2300 = vadd.f32 %v1873, %v2196
        %v2301 = vadd.f32 %v1875, %v2198
        %v2302 = vadd.f32 %v1877, %v2200
        %v2303 = vadd.f32 %v1879, %v2202
        %v2304 = vadd.f32 %v1883, %v2206
        %v2305 = vadd.f32 %v1885, %v2208
        %v2306 = vadd.f32 %v1887, %v2210
        %v2307 = vadd.f32 %v1889, %v2212
        %v2308 = vadd.f32 %v1893, %v2216
        %v2309 = vadd.f32 %v1895, %v2218
        %v2310 = vadd.f32 %v1897, %v2220
        %v2311 = vadd.f32 %v1899, %v2222
        %v2312 = vadd.f32 %v1903, %v2226
        %v2313 = vadd.f32 %v1905, %v2228
        %v2314 = vadd.f32 %v1907, %v2230
        %v2315 = vadd.f32 %v1909, %v2232
        %v2316 = vadd.f32 %v1913, %v2236
        %v2317 = vadd.f32 %v1915, %v2238
        %v2318 = vadd.f32 %v1917, %v2240
        %v2319 = vadd.f32 %v1919, %v2242
        %v2320 = vadd.f32 %v1923, %v2246
        %v2321 = vadd.f32 %v1925, %v2248
        %v2322 = vadd.f32 %v1927, %v2250
        %v2323 = vadd.f32 %v1929, %v2252
        %v2324 = vadd.f32 %v1933, %v2256
        %v2325 = vadd.f32 %v1935, %v2258
        %v2326 = vadd.f32 %v1937, %v2260
        %v2327 = vadd.f32 %v1939, %v2262
        %v2328 = vadd.f32 %v2264, %v1510
        %v2329 = vadd.f32 %v2265, %v1512
        %v2330 = vadd.f32 %v2266, %v1514
        %v2331 = vadd.f32 %v2267, %v1516
        %v2332 = vadd.f32 %v2268, %v1520
        %v2333 = vadd.f32 %v2269, %v1522
        %v2334 = vadd.f32 %v2270, %v1524
        %v2335 = vadd.f32 %v2271, %v1526
        %v2336 = vadd.f32 %v2272, %v1530
        %v2337 = vadd.f32 %v2273, %v1532
        %v2338 = vadd.f32 %v2274, %v1534
        %v2339 = vadd.f32 %v2275, %v1536
        %v2340 = vadd.f32 %v2276, %v1540
        %v2341 = vadd.f32 %v2277, %v1542
        %v2342 = vadd.f32 %v2278, %v1544
        %v2343 = vadd.f32 %v2279, %v1546
        %v2344 = vadd.f32 %v2280, %v1550
        %v2345 = vadd.f32 %v2281, %v1552
        %v2346 = vadd.f32 %v2282, %v1554
        %v2347 = vadd.f32 %v2283, %v1556
        %v2348 = vadd.f32 %v2284, %v1560
        %v2349 = vadd.f32 %v2285, %v1562
        %v2350 = vadd.f32 %v2286, %v1564
        %v2351 = vadd.f32 %v2287, %v1566
        %v2352 = vadd.f32 %v2288, %v1570
        %v2353 = vadd.f32 %v2289, %v1572
        %v2354 = vadd.f32 %v2290, %v1574
        %v2355 = vadd.f32 %v2291, %v1576
        %v2356 = vadd.f32 %v2292, %v1580
        %v2357 = vadd.f32 %v2293, %v1582
        %v2358 = vadd.f32 %v2294, %v1584
        %v2359 = vadd.f32 %v2295, %v1586
        %v2360 = vadd.f32 %v2296, %v1590
        %v2361 = vadd.f32 %v2297, %v1592
        %v2362 = vadd.f32 %v2298, %v1594
        %v2363 = vadd.f32 %v2299, %v1596
        %v2364 = vadd.f32 %v2300, %v1600
        %v2365 = vadd.f32 %v2301, %v1602
        %v2366 = vadd.f32 %v2302, %v1604
        %v2367 = vadd.f32 %v2303, %v1606
        %v2368 = vadd.f32 %v2304, %v1610
        %v2369 = vadd.f32 %v2305, %v1612
        %v2370 = vadd.f32 %v2306, %v1614
        %v2371 = vadd.f32 %v2307, %v1616
        %v2372 = vadd.f32 %v2308, %v1620
        %v2373 = vadd.f32 %v2309, %v1622
        %v2374 = vadd.f32 %v2310, %v1624
        %v2375 = vadd.f32 %v2311, %v1626
        %v2376 = vadd.f32 %v2312, %v1630
        %v2377 = vadd.f32 %v2313, %v1632
        %v2378 = vadd.f32 %v2314, %v1634
        %v2379 = vadd.f32 %v2315, %v1636
        %v2380 = vadd.f32 %v2316, %v1640
        %v2381 = vadd.f32 %v2317, %v1642
        %v2382 = vadd.f32 %v2318, %v1644
        %v2383 = vadd.f32 %v2319, %v1646
        %v2384 = vadd.f32 %v2320, %v1650
        %v2385 = vadd.f32 %v2321, %v1652
        %v2386 = vadd.f32 %v2322, %v1654
        %v2387 = vadd.f32 %v2323, %v1656
        %v2388 = vadd.f32 %v2324, %v1660
        %v2389 = vadd.f32 %v2325, %v1662
        %v2390 = vadd.f32 %v2326, %v1664
        %v2391 = vadd.f32 %v2327, %v1666
        %v2392 = vld [vmem:[%s2] sm:$0x3]
        %v2394 = vlaneseq
        %v2395 = vshrl.u32 %v2394, 7
        %v2396 = vsub.s32 0, %v2395
        %v2397 = vrot.slane %v2392, %v2396
        %v2398 = vlaneseq
        %v2399 = vshrl.u32 %v2398, 7
        %v2400 = vsub.s32 1, %v2399
        %v2401 = vrot.slane %v2392, %v2400
        %v2404 = vadd.f32 %v2328, %v2397
        %v2405 = vadd.f32 %v2329, %v2401
        %v2406 = vadd.f32 %v2330, %v2397
        %v2407 = vadd.f32 %v2331, %v2401
        %v2408 = vadd.f32 %v2332, %v2397
        %v2409 = vadd.f32 %v2333, %v2401
        %v2410 = vadd.f32 %v2334, %v2397
        %v2411 = vadd.f32 %v2335, %v2401
        %v2412 = vadd.f32 %v2336, %v2397
        %v2413 = vadd.f32 %v2337, %v2401
        %v2414 = vadd.f32 %v2338, %v2397
        %v2415 = vadd.f32 %v2339, %v2401
        %v2416 = vadd.f32 %v2340, %v2397
        %v2417 = vadd.f32 %v2341, %v2401
        %v2418 = vadd.f32 %v2342, %v2397
        %v2419 = vadd.f32 %v2343, %v2401
        %v2420 = vadd.f32 %v2344, %v2397
        %v2421 = vadd.f32 %v2345, %v2401
        %v2422 = vadd.f32 %v2346, %v2397
        %v2423 = vadd.f32 %v2347, %v2401
        %v2424 = vadd.f32 %v2348, %v2397
        %v2425 = vadd.f32 %v2349, %v2401
        %v2426 = vadd.f32 %v2350, %v2397
        %v2427 = vadd.f32 %v2351, %v2401
        %v2428 = vadd.f32 %v2352, %v2397
        %v2429 = vadd.f32 %v2353, %v2401
        %v2430 = vadd.f32 %v2354, %v2397
        %v2431 = vadd.f32 %v2355, %v2401
        %v2432 = vadd.f32 %v2356, %v2397
        %v2433 = vadd.f32 %v2357, %v2401
        %v2434 = vadd.f32 %v2358, %v2397
        %v2435 = vadd.f32 %v2359, %v2401
        %v2436 = vadd.f32 %v2360, %v2397
        %v2437 = vadd.f32 %v2361, %v2401
        %v2438 = vadd.f32 %v2362, %v2397
        %v2439 = vadd.f32 %v2363, %v2401
        %v2440 = vadd.f32 %v2364, %v2397
        %v2441 = vadd.f32 %v2365, %v2401
        %v2442 = vadd.f32 %v2366, %v2397
        %v2443 = vadd.f32 %v2367, %v2401
        %v2444 = vadd.f32 %v2368, %v2397
        %v2445 = vadd.f32 %v2369, %v2401
        %v2446 = vadd.f32 %v2370, %v2397
        %v2447 = vadd.f32 %v2371, %v2401
        %v2448 = vadd.f32 %v2372, %v2397
        %v2449 = vadd.f32 %v2373, %v2401
        %v2450 = vadd.f32 %v2374, %v2397
        %v2451 = vadd.f32 %v2375, %v2401
        %v2452 = vadd.f32 %v2376, %v2397
        %v2453 = vadd.f32 %v2377, %v2401
        %v2454 = vadd.f32 %v2378, %v2397
        %v2455 = vadd.f32 %v2379, %v2401
        %v2456 = vadd.f32 %v2380, %v2397
        %v2457 = vadd.f32 %v2381, %v2401
        %v2458 = vadd.f32 %v2382, %v2397
        %v2459 = vadd.f32 %v2383, %v2401
        %v2460 = vadd.f32 %v2384, %v2397
        %v2461 = vadd.f32 %v2385, %v2401
        %v2462 = vadd.f32 %v2386, %v2397
        %v2463 = vadd.f32 %v2387, %v2401
        %v2464 = vadd.f32 %v2388, %v2397
        %v2465 = vadd.f32 %v2389, %v2401
        %v2466 = vadd.f32 %v2390, %v2397
        %v2467 = vadd.f32 %v2391, %v2401
        %v2468 = vmax.f32 %v2404, 0.0
        %v2469 = vmax.f32 %v2405, 0.0
        %v2470 = vmax.f32 %v2406, 0.0
        %v2471 = vmax.f32 %v2407, 0.0
        %v2472 = vmax.f32 %v2408, 0.0
        %v2473 = vmax.f32 %v2409, 0.0
        %v2474 = vmax.f32 %v2410, 0.0
        %v2475 = vmax.f32 %v2411, 0.0
        %v2476 = vmax.f32 %v2412, 0.0
        %v2477 = vmax.f32 %v2413, 0.0
        %v2478 = vmax.f32 %v2414, 0.0
        %v2479 = vmax.f32 %v2415, 0.0
        %v2480 = vmax.f32 %v2416, 0.0
        %v2481 = vmax.f32 %v2417, 0.0
        %v2482 = vmax.f32 %v2418, 0.0
        %v2483 = vmax.f32 %v2419, 0.0
        %v2484 = vmax.f32 %v2420, 0.0
        %v2485 = vmax.f32 %v2421, 0.0
        %v2486 = vmax.f32 %v2422, 0.0
        %v2487 = vmax.f32 %v2423, 0.0
        %v2488 = vmax.f32 %v2424, 0.0
        %v2489 = vmax.f32 %v2425, 0.0
        %v2490 = vmax.f32 %v2426, 0.0
        %v2491 = vmax.f32 %v2427, 0.0
        %v2492 = vmax.f32 %v2428, 0.0
        %v2493 = vmax.f32 %v2429, 0.0
        %v2494 = vmax.f32 %v2430, 0.0
        %v2495 = vmax.f32 %v2431, 0.0
        %v2496 = vmax.f32 %v2432, 0.0
        %v2497 = vmax.f32 %v2433, 0.0
        %v2498 = vmax.f32 %v2434, 0.0
        %v2499 = vmax.f32 %v2435, 0.0
        %v2500 = vmax.f32 %v2436, 0.0
        %v2501 = vmax.f32 %v2437, 0.0
        %v2502 = vmax.f32 %v2438, 0.0
        %v2503 = vmax.f32 %v2439, 0.0
        %v2504 = vmax.f32 %v2440, 0.0
        %v2505 = vmax.f32 %v2441, 0.0
        %v2506 = vmax.f32 %v2442, 0.0
        %v2507 = vmax.f32 %v2443, 0.0
        %v2508 = vmax.f32 %v2444, 0.0
        %v2509 = vmax.f32 %v2445, 0.0
        %v2510 = vmax.f32 %v2446, 0.0
        %v2511 = vmax.f32 %v2447, 0.0
        %v2512 = vmax.f32 %v2448, 0.0
        %v2513 = vmax.f32 %v2449, 0.0
        %v2514 = vmax.f32 %v2450, 0.0
        %v2515 = vmax.f32 %v2451, 0.0
        %v2516 = vmax.f32 %v2452, 0.0
        %v2517 = vmax.f32 %v2453, 0.0
        %v2518 = vmax.f32 %v2454, 0.0
        %v2519 = vmax.f32 %v2455, 0.0
        %v2520 = vmax.f32 %v2456, 0.0
        %v2521 = vmax.f32 %v2457, 0.0
        %v2522 = vmax.f32 %v2458, 0.0
        %v2523 = vmax.f32 %v2459, 0.0
        %v2524 = vmax.f32 %v2460, 0.0
        %v2525 = vmax.f32 %v2461, 0.0
        %v2526 = vmax.f32 %v2462, 0.0
        %v2527 = vmax.f32 %v2463, 0.0
        %v2528 = vmax.f32 %v2464, 0.0
        %v2529 = vmax.f32 %v2465, 0.0
        %v2530 = vmax.f32 %v2466, 0.0
        %v2531 = vmax.f32 %v2467, 0.0
        %v2532 = vpack.c.bf16 %v2470, %v2468
        %v2533 = vpack.c.bf16 %v2471, %v2469
        %v2534 = vpack.c.bf16 %v2474, %v2472
        %v2535 = vpack.c.bf16 %v2475, %v2473
        %v2536 = vpack.c.bf16 %v2478, %v2476
        %v2537 = vpack.c.bf16 %v2479, %v2477
        %v2538 = vpack.c.bf16 %v2482, %v2480
        %v2539 = vpack.c.bf16 %v2483, %v2481
        %v2540 = vpack.c.bf16 %v2486, %v2484
        %v2541 = vpack.c.bf16 %v2487, %v2485
        %v2542 = vpack.c.bf16 %v2490, %v2488
        %v2543 = vpack.c.bf16 %v2491, %v2489
        %v2544 = vpack.c.bf16 %v2494, %v2492
        %v2545 = vpack.c.bf16 %v2495, %v2493
        %v2546 = vpack.c.bf16 %v2498, %v2496
        %v2547 = vpack.c.bf16 %v2499, %v2497
        %v2548 = vpack.c.bf16 %v2502, %v2500
        %v2549 = vpack.c.bf16 %v2503, %v2501
        %v2550 = vpack.c.bf16 %v2506, %v2504
        %v2551 = vpack.c.bf16 %v2507, %v2505
        %v2552 = vpack.c.bf16 %v2510, %v2508
        %v2553 = vpack.c.bf16 %v2511, %v2509
        %v2554 = vpack.c.bf16 %v2514, %v2512
        %v2555 = vpack.c.bf16 %v2515, %v2513
        %v2556 = vpack.c.bf16 %v2518, %v2516
        %v2557 = vpack.c.bf16 %v2519, %v2517
        %v2558 = vpack.c.bf16 %v2522, %v2520
        %v2559 = vpack.c.bf16 %v2523, %v2521
        %v2560 = vpack.c.bf16 %v2526, %v2524
        %v2561 = vpack.c.bf16 %v2527, %v2525
        %v2562 = vpack.c.bf16 %v2530, %v2528
        %v2563 = vpack.c.bf16 %v2531, %v2529
        %v2564 = vld [vmem:[%s3] sm:$0xff]
        %v2565 = vld [vmem:[%s3 + $0x8] sm:$0xff]
        %v2566 = vld [vmem:[%s3 + $0x10] sm:$0xff]
        %v2567 = vld [vmem:[%s3 + $0x18] sm:$0xff]
        %v2568 = vld [vmem:[%s3 + $0x20] sm:$0xff]
        %v2569 = vld [vmem:[%s3 + $0x28] sm:$0xff]
        %v2570 = vld [vmem:[%s3 + $0x30] sm:$0xff]
        %v2571 = vld [vmem:[%s3 + $0x38] sm:$0xff]
        %v2572 = vld [vmem:[%s3 + $0x40] sm:$0xff]
        %v2573 = vld [vmem:[%s3 + $0x48] sm:$0xff]
        %v2574 = vld [vmem:[%s3 + $0x50] sm:$0xff]
        %v2575 = vld [vmem:[%s3 + $0x58] sm:$0xff]
        %v2576 = vld [vmem:[%s3 + $0x60] sm:$0xff]
        %v2577 = vld [vmem:[%s3 + $0x68] sm:$0xff]
        %v2578 = vld [vmem:[%s3 + $0x70] sm:$0xff]
        %v2594 = vunpack.c.l.b16 %v2564
        %v2595 = vunpack.c.h.b16 %v2564
        %v2596 = vunpack.c.l.b16 %v2565
        %v2597 = vunpack.c.h.b16 %v2565
        %v2598 = vunpack.c.l.b16 %v2566
        %v2599 = vunpack.c.h.b16 %v2566
        %v2600 = vunpack.c.l.b16 %v2567
        %v2601 = vunpack.c.h.b16 %v2567
        %v2602 = vunpack.c.l.b16 %v2568
        %v2603 = vunpack.c.h.b16 %v2568
        %v2604 = vunpack.c.l.b16 %v2569
        %v2605 = vunpack.c.h.b16 %v2569
        %v2606 = vunpack.c.l.b16 %v2570
        %v2607 = vunpack.c.h.b16 %v2570
        %v2608 = vunpack.c.l.b16 %v2571
        %v2609 = vunpack.c.h.b16 %v2571
        %v2610 = vunpack.c.l.b16 %v2572
        %v2611 = vunpack.c.h.b16 %v2572
        %v2612 = vunpack.c.l.b16 %v2573
        %v2613 = vunpack.c.h.b16 %v2573
        %v2614 = vunpack.c.l.b16 %v2574
        %v2615 = vunpack.c.h.b16 %v2574
        %v2616 = vunpack.c.l.b16 %v2575
        %v2617 = vunpack.c.h.b16 %v2575
        %v2618 = vunpack.c.l.b16 %v2576
        %v2619 = vunpack.c.h.b16 %v2576
        %v2620 = vunpack.c.l.b16 %v2577
        %v2621 = vunpack.c.h.b16 %v2577
        %v2622 = vunpack.c.l.b16 %v2578
        %v2623 = vunpack.c.h.b16 %v2578
        %v2624 = vpack.c.b16 %v2596, %v2594
        %v2625 = vpack.c.b16 %v2597, %v2595
        %v2626 = vpack.c.b16 %v2600, %v2598
        %v2627 = vpack.c.b16 %v2601, %v2599
        %v2628 = vpack.c.b16 %v2604, %v2602
        %v2629 = vpack.c.b16 %v2605, %v2603
        %v2630 = vpack.c.b16 %v2608, %v2606
        %v2631 = vpack.c.b16 %v2609, %v2607
        %v2632 = vpack.c.b16 %v2612, %v2610
        %v2633 = vpack.c.b16 %v2613, %v2611
        %v2634 = vpack.c.b16 %v2616, %v2614
        %v2635 = vpack.c.b16 %v2617, %v2615
        %v2636 = vpack.c.b16 %v2620, %v2618
        %v2637 = vpack.c.b16 %v2621, %v2619
        %v2638 = vpack.c.b16 %v2622, %v2622
        %v2639 = vpack.c.b16 %v2623, %v2623
        %2656 = vmatprep.subr.bf16.mxu0 %v2533
        %2657 = vmatpush1.bf16.msra.mxu0 %v2532
        %2658 = vmatprep.subr.bf16.mxu0 %v2535
        %2659 = vmatpush1.bf16.msra.mxu0 %v2534
        %2660 = vmatprep.subr.bf16.mxu0 %v2537
        %2661 = vmatpush1.bf16.msra.mxu0 %v2536
        %2662 = vmatprep.subr.bf16.mxu0 %v2539
        %2663 = vmatpush1.bf16.msra.mxu0 %v2538
        %2664 = vmatprep.subr.bf16.mxu0 %v2541
        %2665 = vmatpush1.bf16.msra.mxu0 %v2540
        %2666 = vmatprep.subr.bf16.mxu0 %v2543
        %2667 = vmatpush1.bf16.msra.mxu0 %v2542
        %2668 = vmatprep.subr.bf16.mxu0 %v2545
        %2669 = vmatpush1.bf16.msra.mxu0 %v2544
        %2670 = vmatprep.subr.bf16.mxu0 %v2547
        %2671 = vmatpush1.bf16.msra.mxu0 %v2546
        %2672 = vmatprep.subr.bf16.mxu0 %v2549
        %2673 = vmatpush1.bf16.msra.mxu0 %v2548
        %2674 = vmatprep.subr.bf16.mxu0 %v2551
        %2675 = vmatpush1.bf16.msra.mxu0 %v2550
        %2676 = vmatprep.subr.bf16.mxu0 %v2553
        %2677 = vmatpush1.bf16.msra.mxu0 %v2552
        %2678 = vmatprep.subr.bf16.mxu0 %v2555
        %2679 = vmatpush1.bf16.msra.mxu0 %v2554
        %2680 = vmatprep.subr.bf16.mxu0 %v2557
        %2681 = vmatpush1.bf16.msra.mxu0 %v2556
        %2682 = vmatprep.subr.bf16.mxu0 %v2559
        %2683 = vmatpush1.bf16.msra.mxu0 %v2558
        %2684 = vmatprep.subr.bf16.mxu0 %v2561
        %2685 = vmatpush1.bf16.msra.mxu0 %v2560
        %2686 = vmatprep.subr.bf16.mxu0 %v2563
        %2687 = vmatpush1.bf16.msra.mxu0 %v2562
        %2688 = vmatprep.mubr.bf16.mxu0 %v2625
        %2689 = vmatmul.mubr.bf16.gmra.mrb[0].mxu0 %v2624
        %v2690 = vpop.f32.mrb[0].mxu0
        %v2691 = vadd.f32 0.0, %v2690
        %v2692 = vpop.f32.mrb[0].mxu0
        %v2693 = vadd.f32 0.0, %v2692
        %v2694 = vpop.f32.mrb[0].mxu0
        %v2695 = vadd.f32 0.0, %v2694
        %v2696 = vpop.f32.mrb[0].mxu0
        %v2697 = vadd.f32 0.0, %v2696
        %2698 = vmatprep.mubr.bf16.mxu0 %v2627
        %2699 = vmatmul.mubr.bf16.gmra.mrb[0].mxu0 %v2626
        %v2700 = vpop.f32.mrb[0].mxu0
        %v2701 = vadd.f32 0.0, %v2700
        %v2702 = vpop.f32.mrb[0].mxu0
        %v2703 = vadd.f32 0.0, %v2702
        %v2704 = vpop.f32.mrb[0].mxu0
        %v2705 = vadd.f32 0.0, %v2704
        %v2706 = vpop.f32.mrb[0].mxu0
        %v2707 = vadd.f32 0.0, %v2706
        %2708 = vmatprep.mubr.bf16.mxu0 %v2629
        %2709 = vmatmul.mubr.bf16.gmra.mrb[0].mxu0 %v2628
        %v2710 = vpop.f32.mrb[0].mxu0
        %v2711 = vadd.f32 0.0, %v2710
        %v2712 = vpop.f32.mrb[0].mxu0
        %v2713 = vadd.f32 0.0, %v2712
        %v2714 = vpop.f32.mrb[0].mxu0
        %v2715 = vadd.f32 0.0, %v2714
        %v2716 = vpop.f32.mrb[0].mxu0
        %v2717 = vadd.f32 0.0, %v2716
        %2718 = vmatprep.mubr.bf16.mxu0 %v2631
        %2719 = vmatmul.mubr.bf16.gmra.mrb[0].mxu0 %v2630
        %v2720 = vpop.f32.mrb[0].mxu0
        %v2721 = vadd.f32 0.0, %v2720
        %v2722 = vpop.f32.mrb[0].mxu0
        %v2723 = vadd.f32 0.0, %v2722
        %v2724 = vpop.f32.mrb[0].mxu0
        %v2725 = vadd.f32 0.0, %v2724
        %v2726 = vpop.f32.mrb[0].mxu0
        %v2727 = vadd.f32 0.0, %v2726
        %2728 = vmatprep.mubr.bf16.mxu0 %v2633
        %2729 = vmatmul.mubr.bf16.gmra.mrb[0].mxu0 %v2632
        %v2730 = vpop.f32.mrb[0].mxu0
        %v2731 = vadd.f32 0.0, %v2730
        %v2732 = vpop.f32.mrb[0].mxu0
        %v2733 = vadd.f32 0.0, %v2732
        %v2734 = vpop.f32.mrb[0].mxu0
        %v2735 = vadd.f32 0.0, %v2734
        %v2736 = vpop.f32.mrb[0].mxu0
        %v2737 = vadd.f32 0.0, %v2736
        %2738 = vmatprep.mubr.bf16.mxu0 %v2635
        %2739 = vmatmul.mubr.bf16.gmra.mrb[0].mxu0 %v2634
        %v2740 = vpop.f32.mrb[0].mxu0
        %v2741 = vadd.f32 0.0, %v2740
        %v2742 = vpop.f32.mrb[0].mxu0
        %v2743 = vadd.f32 0.0, %v2742
        %v2744 = vpop.f32.mrb[0].mxu0
        %v2745 = vadd.f32 0.0, %v2744
        %v2746 = vpop.f32.mrb[0].mxu0
        %v2747 = vadd.f32 0.0, %v2746
        %2748 = vmatprep.mubr.bf16.mxu0 %v2637
        %2749 = vmatmul.mubr.bf16.gmra.mrb[0].mxu0 %v2636
        %v2750 = vpop.f32.mrb[0].mxu0
        %v2751 = vadd.f32 0.0, %v2750
        %v2752 = vpop.f32.mrb[0].mxu0
        %v2753 = vadd.f32 0.0, %v2752
        %v2754 = vpop.f32.mrb[0].mxu0
        %v2755 = vadd.f32 0.0, %v2754
        %v2756 = vpop.f32.mrb[0].mxu0
        %v2757 = vadd.f32 0.0, %v2756
        %2758 = vmatprep.mubr.bf16.mxu0 %v2639
        %2759 = vmatmul.mubr.bf16.gmra.mrb[0].mxu0 %v2638
        %v2760 = vpop.f32.mrb[0].mxu0
        %v2761 = vadd.f32 0.0, %v2760
        %v2762 = vpop.f32.mrb[0].mxu0
        %v2763 = vadd.f32 0.0, %v2762
        %v2764 = vpop.f32.mrb[0].mxu0
        %v2765 = vpop.f32.mrb[0].mxu0
        %2766 = vdwg.mxu0
        %s2767 = scalar_lea.vmem %s3, 120
        %v2768 = vld [vmem:[%s2767] sm:$0xff]
        %v2769 = vld [vmem:[%s2767 + $0x8] sm:$0xff]
        %v2770 = vld [vmem:[%s2767 + $0x10] sm:$0xff]
        %v2771 = vld [vmem:[%s2767 + $0x18] sm:$0xff]
        %v2772 = vld [vmem:[%s2767 + $0x20] sm:$0xff]
        %v2773 = vld [vmem:[%s2767 + $0x28] sm:$0xff]
        %v2774 = vld [vmem:[%s2767 + $0x30] sm:$0xff]
        %v2775 = vld [vmem:[%s2767 + $0x38] sm:$0xff]
        %v2776 = vld [vmem:[%s2767 + $0x40] sm:$0xff]
        %v2777 = vld [vmem:[%s2767 + $0x48] sm:$0xff]
        %v2778 = vld [vmem:[%s2767 + $0x50] sm:$0xff]
        %v2779 = vld [vmem:[%s2767 + $0x58] sm:$0xff]
        %v2780 = vld [vmem:[%s2767 + $0x60] sm:$0xff]
        %v2781 = vld [vmem:[%s2767 + $0x68] sm:$0xff]
        %v2782 = vld [vmem:[%s2767 + $0x70] sm:$0xff]
        %v2798 = vunpack.c.l.b16 %v2768
        %v2799 = vunpack.c.h.b16 %v2768
        %v2800 = vunpack.c.l.b16 %v2769
        %v2801 = vunpack.c.h.b16 %v2769
        %v2802 = vunpack.c.l.b16 %v2770
        %v2803 = vunpack.c.h.b16 %v2770
        %v2804 = vunpack.c.l.b16 %v2771
        %v2805 = vunpack.c.h.b16 %v2771
        %v2806 = vunpack.c.l.b16 %v2772
        %v2807 = vunpack.c.h.b16 %v2772
        %v2808 = vunpack.c.l.b16 %v2773
        %v2809 = vunpack.c.h.b16 %v2773
        %v2810 = vunpack.c.l.b16 %v2774
        %v2811 = vunpack.c.h.b16 %v2774
        %v2812 = vunpack.c.l.b16 %v2775
        %v2813 = vunpack.c.h.b16 %v2775
        %v2814 = vunpack.c.l.b16 %v2776
        %v2815 = vunpack.c.h.b16 %v2776
        %v2816 = vunpack.c.l.b16 %v2777
        %v2817 = vunpack.c.h.b16 %v2777
        %v2818 = vunpack.c.l.b16 %v2778
        %v2819 = vunpack.c.h.b16 %v2778
        %v2820 = vunpack.c.l.b16 %v2779
        %v2821 = vunpack.c.h.b16 %v2779
        %v2822 = vunpack.c.l.b16 %v2780
        %v2823 = vunpack.c.h.b16 %v2780
        %v2824 = vunpack.c.l.b16 %v2781
        %v2825 = vunpack.c.h.b16 %v2781
        %v2826 = vunpack.c.l.b16 %v2782
        %v2827 = vunpack.c.h.b16 %v2782
        %v2828 = vpack.c.b16 %v2800, %v2798
        %v2829 = vpack.c.b16 %v2801, %v2799
        %v2830 = vpack.c.b16 %v2804, %v2802
        %v2831 = vpack.c.b16 %v2805, %v2803
        %v2832 = vpack.c.b16 %v2808, %v2806
        %v2833 = vpack.c.b16 %v2809, %v2807
        %v2834 = vpack.c.b16 %v2812, %v2810
        %v2835 = vpack.c.b16 %v2813, %v2811
        %v2836 = vpack.c.b16 %v2816, %v2814
        %v2837 = vpack.c.b16 %v2817, %v2815
        %v2838 = vpack.c.b16 %v2820, %v2818
        %v2839 = vpack.c.b16 %v2821, %v2819
        %v2840 = vpack.c.b16 %v2824, %v2822
        %v2841 = vpack.c.b16 %v2825, %v2823
        %v2842 = vpack.c.b16 %v2826, %v2826
        %v2843 = vpack.c.b16 %v2827, %v2827
        %2860 = vmatprep.subr.bf16.mxu0 %v2533
        %2861 = vmatpush1.bf16.msra.mxu0 %v2532
        %2862 = vmatprep.subr.bf16.mxu0 %v2535
        %2863 = vmatpush1.bf16.msra.mxu0 %v2534
        %2864 = vmatprep.subr.bf16.mxu0 %v2537
        %2865 = vmatpush1.bf16.msra.mxu0 %v2536
        %2866 = vmatprep.subr.bf16.mxu0 %v2539
        %2867 = vmatpush1.bf16.msra.mxu0 %v2538
        %2868 = vmatprep.subr.bf16.mxu0 %v2541
        %2869 = vmatpush1.bf16.msra.mxu0 %v2540
        %2870 = vmatprep.subr.bf16.mxu0 %v2543
        %2871 = vmatpush1.bf16.msra.mxu0 %v2542
        %2872 = vmatprep.subr.bf16.mxu0 %v2545
        %2873 = vmatpush1.bf16.msra.mxu0 %v2544
        %2874 = vmatprep.subr.bf16.mxu0 %v2547
        %2875 = vmatpush1.bf16.msra.mxu0 %v2546
        %2876 = vmatprep.subr.bf16.mxu0 %v2549
        %2877 = vmatpush1.bf16.msra.mxu0 %v2548
        %2878 = vmatprep.subr.bf16.mxu0 %v2551
        %2879 = vmatpush1.bf16.msra.mxu0 %v2550
        %2880 = vmatprep.subr.bf16.mxu0 %v2553
        %2881 = vmatpush1.bf16.msra.mxu0 %v2552
        %2882 = vmatprep.subr.bf16.mxu0 %v2555
        %2883 = vmatpush1.bf16.msra.mxu0 %v2554
        %2884 = vmatprep.subr.bf16.mxu0 %v2557
        %2885 = vmatpush1.bf16.msra.mxu0 %v2556
        %2886 = vmatprep.subr.bf16.mxu0 %v2559
        %2887 = vmatpush1.bf16.msra.mxu0 %v2558
        %2888 = vmatprep.subr.bf16.mxu0 %v2561
        %2889 = vmatpush1.bf16.msra.mxu0 %v2560
        %2890 = vmatprep.subr.bf16.mxu0 %v2563
        %2891 = vmatpush1.bf16.msra.mxu0 %v2562
        %2892 = vmatprep.mubr.bf16.mxu0 %v2829
        %2893 = vmatmul.mubr.bf16.gmra.mrb[0].mxu0 %v2828
        %v2894 = vpop.f32.mrb[0].mxu0
        %v2895 = vadd.f32 0.0, %v2894
        %v2896 = vpop.f32.mrb[0].mxu0
        %v2897 = vadd.f32 0.0, %v2896
        %v2898 = vpop.f32.mrb[0].mxu0
        %v2899 = vadd.f32 0.0, %v2898
        %v2900 = vpop.f32.mrb[0].mxu0
        %v2901 = vadd.f32 0.0, %v2900
        %2902 = vmatprep.mubr.bf16.mxu0 %v2831
        %2903 = vmatmul.mubr.bf16.gmra.mrb[0].mxu0 %v2830
        %v2904 = vpop.f32.mrb[0].mxu0
        %v2905 = vadd.f32 0.0, %v2904
        %v2906 = vpop.f32.mrb[0].mxu0
        %v2907 = vadd.f32 0.0, %v2906
        %v2908 = vpop.f32.mrb[0].mxu0
        %v2909 = vadd.f32 0.0, %v2908
        %v2910 = vpop.f32.mrb[0].mxu0
        %v2911 = vadd.f32 0.0, %v2910
        %2912 = vmatprep.mubr.bf16.mxu0 %v2833
        %2913 = vmatmul.mubr.bf16.gmra.mrb[0].mxu0 %v2832
        %v2914 = vpop.f32.mrb[0].mxu0
        %v2915 = vadd.f32 0.0, %v2914
        %v2916 = vpop.f32.mrb[0].mxu0
        %v2917 = vadd.f32 0.0, %v2916
        %v2918 = vpop.f32.mrb[0].mxu0
        %v2919 = vadd.f32 0.0, %v2918
        %v2920 = vpop.f32.mrb[0].mxu0
        %v2921 = vadd.f32 0.0, %v2920
        %2922 = vmatprep.mubr.bf16.mxu0 %v2835
        %2923 = vmatmul.mubr.bf16.gmra.mrb[0].mxu0 %v2834
        %v2924 = vpop.f32.mrb[0].mxu0
        %v2925 = vadd.f32 0.0, %v2924
        %v2926 = vpop.f32.mrb[0].mxu0
        %v2927 = vadd.f32 0.0, %v2926
        %v2928 = vpop.f32.mrb[0].mxu0
        %v2929 = vadd.f32 0.0, %v2928
        %v2930 = vpop.f32.mrb[0].mxu0
        %v2931 = vadd.f32 0.0, %v2930
        %2932 = vmatprep.mubr.bf16.mxu0 %v2837
        %2933 = vmatmul.mubr.bf16.gmra.mrb[0].mxu0 %v2836
        %v2934 = vpop.f32.mrb[0].mxu0
        %v2935 = vadd.f32 0.0, %v2934
        %v2936 = vpop.f32.mrb[0].mxu0
        %v2937 = vadd.f32 0.0, %v2936
        %v2938 = vpop.f32.mrb[0].mxu0
        %v2939 = vadd.f32 0.0, %v2938
        %v2940 = vpop.f32.mrb[0].mxu0
        %v2941 = vadd.f32 0.0, %v2940
        %2942 = vmatprep.mubr.bf16.mxu0 %v2839
        %2943 = vmatmul.mubr.bf16.gmra.mrb[0].mxu0 %v2838
        %v2944 = vpop.f32.mrb[0].mxu0
        %v2945 = vadd.f32 0.0, %v2944
        %v2946 = vpop.f32.mrb[0].mxu0
        %v2947 = vadd.f32 0.0, %v2946
        %v2948 = vpop.f32.mrb[0].mxu0
        %v2949 = vadd.f32 0.0, %v2948
        %v2950 = vpop.f32.mrb[0].mxu0
        %v2951 = vadd.f32 0.0, %v2950
        %2952 = vmatprep.mubr.bf16.mxu0 %v2841
        %2953 = vmatmul.mubr.bf16.gmra.mrb[0].mxu0 %v2840
        %v2954 = vpop.f32.mrb[0].mxu0
        %v2955 = vadd.f32 0.0, %v2954
        %v2956 = vpop.f32.mrb[0].mxu0
        %v2957 = vadd.f32 0.0, %v2956
        %v2958 = vpop.f32.mrb[0].mxu0
        %v2959 = vadd.f32 0.0, %v2958
        %v2960 = vpop.f32.mrb[0].mxu0
        %v2961 = vadd.f32 0.0, %v2960
        %2962 = vmatprep.mubr.bf16.mxu0 %v2843
        %2963 = vmatmul.mubr.bf16.gmra.mrb[0].mxu0 %v2842
        %v2964 = vpop.f32.mrb[0].mxu0
        %v2965 = vadd.f32 0.0, %v2964
        %v2966 = vpop.f32.mrb[0].mxu0
        %v2967 = vadd.f32 0.0, %v2966
        %v2968 = vpop.f32.mrb[0].mxu0
        %v2969 = vpop.f32.mrb[0].mxu0
        %2970 = vdwg.mxu0
        %v2971 = vmax.f32 %v2691, %v2895
        %v2972 = vmax.f32 %v2693, %v2897
        %v2973 = vmax.f32 %v2695, %v2899
        %v2974 = vmax.f32 %v2697, %v2901
        %v2975 = vmax.f32 %v2701, %v2905
        %v2976 = vmax.f32 %v2703, %v2907
        %v2977 = vmax.f32 %v2705, %v2909
        %v2978 = vmax.f32 %v2707, %v2911
        %v2979 = vmax.f32 %v2711, %v2915
        %v2980 = vmax.f32 %v2713, %v2917
        %v2981 = vmax.f32 %v2715, %v2919
        %v2982 = vmax.f32 %v2717, %v2921
        %v2983 = vmax.f32 %v2721, %v2925
        %v2984 = vmax.f32 %v2723, %v2927
        %v2985 = vmax.f32 %v2725, %v2929
        %v2986 = vmax.f32 %v2727, %v2931
        %v2987 = vmax.f32 %v2731, %v2935
        %v2988 = vmax.f32 %v2733, %v2937
        %v2989 = vmax.f32 %v2735, %v2939
        %v2990 = vmax.f32 %v2737, %v2941
        %v2991 = vmax.f32 %v2741, %v2945
        %v2992 = vmax.f32 %v2743, %v2947
        %v2993 = vmax.f32 %v2745, %v2949
        %v2994 = vmax.f32 %v2747, %v2951
        %v2995 = vmax.f32 %v2751, %v2955
        %v2996 = vmax.f32 %v2753, %v2957
        %v2997 = vmax.f32 %v2755, %v2959
        %v2998 = vmax.f32 %v2757, %v2961
        %v2999 = vmax.f32 %v2761, %v2965
        %v3000 = vmax.f32 %v2763, %v2967
        %v3001 = vpack.c.bf16 %v2973, %v2971
        %v3002 = vpack.c.bf16 %v2974, %v2972
        %v3003 = vpack.c.bf16 %v2977, %v2975
        %v3004 = vpack.c.bf16 %v2978, %v2976
        %v3005 = vpack.c.bf16 %v2981, %v2979
        %v3006 = vpack.c.bf16 %v2982, %v2980
        %v3007 = vpack.c.bf16 %v2985, %v2983
        %v3008 = vpack.c.bf16 %v2986, %v2984
        %v3009 = vpack.c.bf16 %v2989, %v2987
        %v3010 = vpack.c.bf16 %v2990, %v2988
        %v3011 = vpack.c.bf16 %v2993, %v2991
        %v3012 = vpack.c.bf16 %v2994, %v2992
        %v3013 = vpack.c.bf16 %v2997, %v2995
        %v3014 = vpack.c.bf16 %v2998, %v2996
        %v3015 = vpack.c.bf16 %v2999, %v2999
        %v3016 = vpack.c.bf16 %v3000, %v3000
        %v3017 = vld [vmem:[%s4] sm:$0xf]
        %v3018 = vld [vmem:[%s4 + $0x4] sm:$0xf]
        %v3019 = vld [vmem:[%s4 + $0x8] sm:$0xf]
        %v3020 = vld [vmem:[%s4 + $0xc] sm:$0xf]
        %v3021 = vld [vmem:[%s4 + $0x10] sm:$0xf]
        %v3022 = vld [vmem:[%s4 + $0x14] sm:$0xf]
        %v3023 = vld [vmem:[%s4 + $0x18] sm:$0xf]
        %v3024 = vld [vmem:[%s4 + $0x1c] sm:$0xf]
        %v3025 = vld [vmem:[%s4 + $0x20] sm:$0xf]
        %v3026 = vld [vmem:[%s4 + $0x24] sm:$0xf]
        %v3027 = vld [vmem:[%s4 + $0x28] sm:$0xf]
        %v3028 = vld [vmem:[%s4 + $0x2c] sm:$0xf]
        %v3029 = vld [vmem:[%s4 + $0x30] sm:$0xf]
        %v3030 = vld [vmem:[%s4 + $0x34] sm:$0xf]
        %v3031 = vld [vmem:[%s4 + $0x38] sm:$0xf]
        %v3032 = vld [vmem:[%s4 + $0x3c] sm:$0xf]
        %v3033 = vld [vmem:[%s4 + $0x40] sm:$0xf]
        %v3034 = vld [vmem:[%s4 + $0x44] sm:$0xf]
        %v3035 = vld [vmem:[%s4 + $0x48] sm:$0xf]
        %v3036 = vld [vmem:[%s4 + $0x4c] sm:$0xf]
        %v3037 = vld [vmem:[%s4 + $0x50] sm:$0xf]
        %v3059 = vunpack.c.l.b16 %v3017
        %v3060 = vunpack.c.l.b16 %v3018
        %v3061 = vunpack.c.l.b16 %v3019
        %v3062 = vunpack.c.l.b16 %v3020
        %v3063 = vunpack.c.l.b16 %v3021
        %v3064 = vunpack.c.l.b16 %v3022
        %v3065 = vunpack.c.l.b16 %v3023
        %v3066 = vunpack.c.l.b16 %v3024
        %v3067 = vunpack.c.l.b16 %v3025
        %v3068 = vunpack.c.l.b16 %v3026
        %v3069 = vunpack.c.l.b16 %v3027
        %v3070 = vunpack.c.l.b16 %v3028
        %v3071 = vunpack.c.l.b16 %v3029
        %v3072 = vunpack.c.l.b16 %v3030
        %v3073 = vunpack.c.l.b16 %v3031
        %v3074 = vunpack.c.l.b16 %v3032
        %v3075 = vunpack.c.l.b16 %v3033
        %v3076 = vunpack.c.l.b16 %v3034
        %v3077 = vunpack.c.l.b16 %v3035
        %v3078 = vunpack.c.l.b16 %v3036
        %v3079 = vunpack.c.l.b16 %v3037
        %v3080 = vpack.c.b16 %v3060, %v3059
        %v3081 = vpack.c.b16 %v3062, %v3061
        %v3082 = vpack.c.b16 %v3064, %v3063
        %v3083 = vpack.c.b16 %v3066, %v3065
        %v3084 = vpack.c.b16 %v3068, %v3067
        %v3085 = vpack.c.b16 %v3070, %v3069
        %v3086 = vpack.c.b16 %v3072, %v3071
        %v3087 = vpack.c.b16 %v3074, %v3073
        %v3088 = vpack.c.b16 %v3076, %v3075
        %v3089 = vpack.c.b16 %v3078, %v3077
        %v3090 = vpack.c.b16 %v3079, %v3079
        %vm3101 = vcmask 326656
        %v3103 = vsel %vm3101, %v3002, 0
        %v3106 = vsel %vm3101, %v3004, 0
        %v3109 = vsel %vm3101, %v3006, 0
        %v3112 = vsel %vm3101, %v3008, 0
        %v3115 = vsel %vm3101, %v3010, 0
        %v3118 = vsel %vm3101, %v3012, 0
        %v3121 = vsel %vm3101, %v3014, 0
        %v3124 = vsel %vm3101, %v3016, 0
        %vm3126 = vcmask 1043456
        %v3128 = vsel %vm3126, %v3090, 0
        %3130 = vmatprep.subr.bf16.mxu0 0
        %3131 = vmatpush1.bf16.msra.mxu0 %v3080
        %3132 = vmatprep.subr.bf16.mxu0 0
        %3133 = vmatpush1.bf16.msra.mxu0 %v3081
        %3134 = vmatprep.subr.bf16.mxu0 0
        %3135 = vmatpush1.bf16.msra.mxu0 %v3082
        %3136 = vmatprep.subr.bf16.mxu0 0
        %3137 = vmatpush1.bf16.msra.mxu0 %v3083
        %3138 = vmatprep.subr.bf16.mxu0 0
        %3139 = vmatpush1.bf16.msra.mxu0 %v3084
        %3140 = vmatprep.subr.bf16.mxu0 0
        %3141 = vmatpush1.bf16.msra.mxu0 %v3085
        %3142 = vmatprep.subr.bf16.mxu0 0
        %3143 = vmatpush1.bf16.msra.mxu0 %v3086
        %3144 = vmatprep.subr.bf16.mxu0 0
        %3145 = vmatpush1.bf16.msra.mxu0 %v3087
        %3146 = vmatprep.subr.bf16.mxu0 0
        %3147 = vmatpush1.bf16.msra.mxu0 %v3088
        %3148 = vmatprep.subr.bf16.mxu0 0
        %3149 = vmatpush1.bf16.msra.mxu0 %v3089
        %3150 = vmatprep.subr.bf16.mxu0 0
        %3151 = vmatpush1.bf16.msra.mxu0 %v3128
        %3152 = vmatprep.subr.bf16.mxu0 0
        %3153 = vmatpush1.bf16.msra.mxu0 0
        %3154 = vmatprep.subr.bf16.mxu0 0
        %3155 = vmatpush1.bf16.msra.mxu0 0
        %3156 = vmatprep.subr.bf16.mxu0 0
        %3157 = vmatpush1.bf16.msra.mxu0 0
        %3158 = vmatprep.subr.bf16.mxu0 0
        %3159 = vmatpush1.bf16.msra.mxu0 0
        %3160 = vmatprep.subr.bf16.mxu0 0
        %3161 = vmatpush1.bf16.msra.mxu0 0
        %3162 = vmatprep.mubr.bf16.mxu0 %v3103
        %3163 = vmatmul.mubr.bf16.gmra.mrb[0].mxu0 %v3001
        %v3164 = vpop.f32.mrb[0].mxu0
        %v3165 = vadd.f32 0.0, %v3164
        %v3166 = vpop.f32.mrb[0].mxu0
        %v3167 = vpop.f32.mrb[0].mxu0
        %v3168 = vadd.f32 0.0, %v3167
        %v3169 = vpop.f32.mrb[0].mxu0
        %3170 = vmatprep.mubr.bf16.mxu0 %v3106
        %3171 = vmatmul.mubr.bf16.gmra.mrb[0].mxu0 %v3003
        %v3172 = vpop.f32.mrb[0].mxu0
        %v3173 = vadd.f32 0.0, %v3172
        %v3174 = vpop.f32.mrb[0].mxu0
        %v3175 = vpop.f32.mrb[0].mxu0
        %v3176 = vadd.f32 0.0, %v3175
        %v3177 = vpop.f32.mrb[0].mxu0
        %3178 = vmatprep.mubr.bf16.mxu0 %v3109
        %3179 = vmatmul.mubr.bf16.gmra.mrb[0].mxu0 %v3005
        %v3180 = vpop.f32.mrb[0].mxu0
        %v3181 = vadd.f32 0.0, %v3180
        %v3182 = vpop.f32.mrb[0].mxu0
        %v3183 = vpop.f32.mrb[0].mxu0
        %v3184 = vadd.f32 0.0, %v3183
        %v3185 = vpop.f32.mrb[0].mxu0
        %3186 = vmatprep.mubr.bf16.mxu0 %v3112
        %3187 = vmatmul.mubr.bf16.gmra.mrb[0].mxu0 %v3007
        %v3188 = vpop.f32.mrb[0].mxu0
        %v3189 = vadd.f32 0.0, %v3188
        %v3190 = vpop.f32.mrb[0].mxu0
        %v3191 = vpop.f32.mrb[0].mxu0
        %v3192 = vadd.f32 0.0, %v3191
        %v3193 = vpop.f32.mrb[0].mxu0
        %3194 = vmatprep.mubr.bf16.mxu0 %v3115
        %3195 = vmatmul.mubr.bf16.gmra.mrb[0].mxu0 %v3009
        %v3196 = vpop.f32.mrb[0].mxu0
        %v3197 = vadd.f32 0.0, %v3196
        %v3198 = vpop.f32.mrb[0].mxu0
        %v3199 = vpop.f32.mrb[0].mxu0
        %v3200 = vadd.f32 0.0, %v3199
        %v3201 = vpop.f32.mrb[0].mxu0
        %3202 = vmatprep.mubr.bf16.mxu0 %v3118
        %3203 = vmatmul.mubr.bf16.gmra.mrb[0].mxu0 %v3011
        %v3204 = vpop.f32.mrb[0].mxu0
        %v3205 = vadd.f32 0.0, %v3204
        %v3206 = vpop.f32.mrb[0].mxu0
        %v3207 = vpop.f32.mrb[0].mxu0
        %v3208 = vadd.f32 0.0, %v3207
        %v3209 = vpop.f32.mrb[0].mxu0
        %3210 = vmatprep.mubr.bf16.mxu0 %v3121
        %3211 = vmatmul.mubr.bf16.gmra.mrb[0].mxu0 %v3013
        %v3212 = vpop.f32.mrb[0].mxu0
        %v3213 = vadd.f32 0.0, %v3212
        %v3214 = vpop.f32.mrb[0].mxu0
        %v3215 = vpop.f32.mrb[0].mxu0
        %v3216 = vadd.f32 0.0, %v3215
        %v3217 = vpop.f32.mrb[0].mxu0
        %3218 = vmatprep.mubr.bf16.mxu0 %v3124
        %3219 = vmatmul.mubr.bf16.gmra.mrb[0].mxu0 %v3015
        %v3220 = vpop.f32.mrb[0].mxu0
        %v3221 = vadd.f32 0.0, %v3220
        %v3222 = vpop.f32.mrb[0].mxu0
        %v3223 = vpop.f32.mrb[0].mxu0
        %v3224 = vpop.f32.mrb[0].mxu0
        %3225 = vdwg.mxu0
        %s3226 = scalar_lea.vmem %s4, 84
        %v3227 = vld [vmem:[%s3226] sm:$0xf]
        %v3228 = vld [vmem:[%s3226 + $0x4] sm:$0xf]
        %v3229 = vld [vmem:[%s3226 + $0x8] sm:$0xf]
        %v3230 = vld [vmem:[%s3226 + $0xc] sm:$0xf]
        %v3231 = vld [vmem:[%s3226 + $0x10] sm:$0xf]
        %v3232 = vld [vmem:[%s3226 + $0x14] sm:$0xf]
        %v3233 = vld [vmem:[%s3226 + $0x18] sm:$0xf]
        %v3234 = vld [vmem:[%s3226 + $0x1c] sm:$0xf]
        %v3235 = vld [vmem:[%s3226 + $0x20] sm:$0xf]
        %v3236 = vld [vmem:[%s3226 + $0x24] sm:$0xf]
        %v3237 = vld [vmem:[%s3226 + $0x28] sm:$0xf]
        %v3238 = vld [vmem:[%s3226 + $0x2c] sm:$0xf]
        %v3239 = vld [vmem:[%s3226 + $0x30] sm:$0xf]
        %v3240 = vld [vmem:[%s3226 + $0x34] sm:$0xf]
        %v3241 = vld [vmem:[%s3226 + $0x38] sm:$0xf]
        %v3242 = vld [vmem:[%s3226 + $0x3c] sm:$0xf]
        %v3243 = vld [vmem:[%s3226 + $0x40] sm:$0xf]
        %v3244 = vld [vmem:[%s3226 + $0x44] sm:$0xf]
        %v3245 = vld [vmem:[%s3226 + $0x48] sm:$0xf]
        %v3246 = vld [vmem:[%s3226 + $0x4c] sm:$0xf]
        %v3247 = vld [vmem:[%s3226 + $0x50] sm:$0xf]
        %v3269 = vunpack.c.l.b16 %v3227
        %v3270 = vunpack.c.l.b16 %v3228
        %v3271 = vunpack.c.l.b16 %v3229
        %v3272 = vunpack.c.l.b16 %v3230
        %v3273 = vunpack.c.l.b16 %v3231
        %v3274 = vunpack.c.l.b16 %v3232
        %v3275 = vunpack.c.l.b16 %v3233
        %v3276 = vunpack.c.l.b16 %v3234
        %v3277 = vunpack.c.l.b16 %v3235
        %v3278 = vunpack.c.l.b16 %v3236
        %v3279 = vunpack.c.l.b16 %v3237
        %v3280 = vunpack.c.l.b16 %v3238
        %v3281 = vunpack.c.l.b16 %v3239
        %v3282 = vunpack.c.l.b16 %v3240
        %v3283 = vunpack.c.l.b16 %v3241
        %v3284 = vunpack.c.l.b16 %v3242
        %v3285 = vunpack.c.l.b16 %v3243
        %v3286 = vunpack.c.l.b16 %v3244
        %v3287 = vunpack.c.l.b16 %v3245
        %v3288 = vunpack.c.l.b16 %v3246
        %v3289 = vunpack.c.l.b16 %v3247
        %v3290 = vpack.c.b16 %v3270, %v3269
        %v3291 = vpack.c.b16 %v3272, %v3271
        %v3292 = vpack.c.b16 %v3274, %v3273
        %v3293 = vpack.c.b16 %v3276, %v3275
        %v3294 = vpack.c.b16 %v3278, %v3277
        %v3295 = vpack.c.b16 %v3280, %v3279
        %v3296 = vpack.c.b16 %v3282, %v3281
        %v3297 = vpack.c.b16 %v3284, %v3283
        %v3298 = vpack.c.b16 %v3286, %v3285
        %v3299 = vpack.c.b16 %v3288, %v3287
        %v3300 = vpack.c.b16 %v3289, %v3289
        %v3312 = vsel %vm3126, %v3300, 0
        %3314 = vmatprep.subr.bf16.mxu0 0
        %3315 = vmatpush1.bf16.msra.mxu0 %v3290
        %3316 = vmatprep.subr.bf16.mxu0 0
        %3317 = vmatpush1.bf16.msra.mxu0 %v3291
        %3318 = vmatprep.subr.bf16.mxu0 0
        %3319 = vmatpush1.bf16.msra.mxu0 %v3292
        %3320 = vmatprep.subr.bf16.mxu0 0
        %3321 = vmatpush1.bf16.msra.mxu0 %v3293
        %3322 = vmatprep.subr.bf16.mxu0 0
        %3323 = vmatpush1.bf16.msra.mxu0 %v3294
        %3324 = vmatprep.subr.bf16.mxu0 0
        %3325 = vmatpush1.bf16.msra.mxu0 %v3295
        %3326 = vmatprep.subr.bf16.mxu0 0
        %3327 = vmatpush1.bf16.msra.mxu0 %v3296
        %3328 = vmatprep.subr.bf16.mxu0 0
        %3329 = vmatpush1.bf16.msra.mxu0 %v3297
        %3330 = vmatprep.subr.bf16.mxu0 0
        %3331 = vmatpush1.bf16.msra.mxu0 %v3298
        %3332 = vmatprep.subr.bf16.mxu0 0
        %3333 = vmatpush1.bf16.msra.mxu0 %v3299
        %3334 = vmatprep.subr.bf16.mxu0 0
        %3335 = vmatpush1.bf16.msra.mxu0 %v3312
        %3336 = vmatprep.subr.bf16.mxu0 0
        %3337 = vmatpush1.bf16.msra.mxu0 0
        %3338 = vmatprep.subr.bf16.mxu0 0
        %3339 = vmatpush1.bf16.msra.mxu0 0
        %3340 = vmatprep.subr.bf16.mxu0 0
        %3341 = vmatpush1.bf16.msra.mxu0 0
        %3342 = vmatprep.subr.bf16.mxu0 0
        %3343 = vmatpush1.bf16.msra.mxu0 0
        %3344 = vmatprep.subr.bf16.mxu0 0
        %3345 = vmatpush1.bf16.msra.mxu0 0
        %3346 = vmatprep.mubr.bf16.mxu0 %v3103
        %3347 = vmatmul.mubr.bf16.gmra.mrb[0].mxu0 %v3001
        %v3348 = vpop.f32.mrb[0].mxu0
        %v3349 = vadd.f32 0.0, %v3348
        %v3350 = vpop.f32.mrb[0].mxu0
        %v3351 = vpop.f32.mrb[0].mxu0
        %v3352 = vadd.f32 0.0, %v3351
        %v3353 = vpop.f32.mrb[0].mxu0
        %3354 = vmatprep.mubr.bf16.mxu0 %v3106
        %3355 = vmatmul.mubr.bf16.gmra.mrb[0].mxu0 %v3003
        %v3356 = vpop.f32.mrb[0].mxu0
        %v3357 = vadd.f32 0.0, %v3356
        %v3358 = vpop.f32.mrb[0].mxu0
        %v3359 = vpop.f32.mrb[0].mxu0
        %v3360 = vadd.f32 0.0, %v3359
        %v3361 = vpop.f32.mrb[0].mxu0
        %3362 = vmatprep.mubr.bf16.mxu0 %v3109
        %3363 = vmatmul.mubr.bf16.gmra.mrb[0].mxu0 %v3005
        %v3364 = vpop.f32.mrb[0].mxu0
        %v3365 = vadd.f32 0.0, %v3364
        %v3366 = vpop.f32.mrb[0].mxu0
        %v3367 = vpop.f32.mrb[0].mxu0
        %v3368 = vadd.f32 0.0, %v3367
        %v3369 = vpop.f32.mrb[0].mxu0
        %3370 = vmatprep.mubr.bf16.mxu0 %v3112
        %3371 = vmatmul.mubr.bf16.gmra.mrb[0].mxu0 %v3007
        %v3372 = vpop.f32.mrb[0].mxu0
        %v3373 = vadd.f32 0.0, %v3372
        %v3374 = vpop.f32.mrb[0].mxu0
        %v3375 = vpop.f32.mrb[0].mxu0
        %v3376 = vadd.f32 0.0, %v3375
        %v3377 = vpop.f32.mrb[0].mxu0
        %3378 = vmatprep.mubr.bf16.mxu0 %v3115
        %3379 = vmatmul.mubr.bf16.gmra.mrb[0].mxu0 %v3009
        %v3380 = vpop.f32.mrb[0].mxu0
        %v3381 = vadd.f32 0.0, %v3380
        %v3382 = vpop.f32.mrb[0].mxu0
        %v3383 = vpop.f32.mrb[0].mxu0
        %v3384 = vadd.f32 0.0, %v3383
        %v3385 = vpop.f32.mrb[0].mxu0
        %3386 = vmatprep.mubr.bf16.mxu0 %v3118
        %3387 = vmatmul.mubr.bf16.gmra.mrb[0].mxu0 %v3011
        %v3388 = vpop.f32.mrb[0].mxu0
        %v3389 = vadd.f32 0.0, %v3388
        %v3390 = vpop.f32.mrb[0].mxu0
        %v3391 = vpop.f32.mrb[0].mxu0
        %v3392 = vadd.f32 0.0, %v3391
        %v3393 = vpop.f32.mrb[0].mxu0
        %3394 = vmatprep.mubr.bf16.mxu0 %v3121
        %3395 = vmatmul.mubr.bf16.gmra.mrb[0].mxu0 %v3013
        %v3396 = vpop.f32.mrb[0].mxu0
        %v3397 = vadd.f32 0.0, %v3396
        %v3398 = vpop.f32.mrb[0].mxu0
        %v3399 = vpop.f32.mrb[0].mxu0
        %v3400 = vadd.f32 0.0, %v3399
        %v3401 = vpop.f32.mrb[0].mxu0
        %3402 = vmatprep.mubr.bf16.mxu0 %v3124
        %3403 = vmatmul.mubr.bf16.gmra.mrb[0].mxu0 %v3015
        %v3404 = vpop.f32.mrb[0].mxu0
        %v3405 = vadd.f32 0.0, %v3404
        %v3406 = vpop.f32.mrb[0].mxu0
        %v3407 = vpop.f32.mrb[0].mxu0
        %v3408 = vpop.f32.mrb[0].mxu0
        %3409 = vdwg.mxu0
        %v3410 = vmax.f32 %v3165, %v3349
        %v3411 = vmax.f32 %v3168, %v3352
        %v3412 = vmax.f32 %v3173, %v3357
        %v3413 = vmax.f32 %v3176, %v3360
        %v3414 = vmax.f32 %v3181, %v3365
        %v3415 = vmax.f32 %v3184, %v3368
        %v3416 = vmax.f32 %v3189, %v3373
        %v3417 = vmax.f32 %v3192, %v3376
        %v3418 = vmax.f32 %v3197, %v3381
        %v3419 = vmax.f32 %v3200, %v3384
        %v3420 = vmax.f32 %v3205, %v3389
        %v3421 = vmax.f32 %v3208, %v3392
        %v3422 = vmax.f32 %v3213, %v3397
        %v3423 = vmax.f32 %v3216, %v3400
        %v3424 = vmax.f32 %v3221, %v3405
        %v3425 = vpack.c.bf16 %v3411, %v3410
        %v3426 = vpack.c.bf16 %v3413, %v3412
        %v3427 = vpack.c.bf16 %v3415, %v3414
        %v3428 = vpack.c.bf16 %v3417, %v3416
        %v3429 = vpack.c.bf16 %v3419, %v3418
        %v3430 = vpack.c.bf16 %v3421, %v3420
        %v3431 = vpack.c.bf16 %v3423, %v3422
        %v3432 = vpack.c.bf16 %v3424, %v3424
        %v3433 = vld [vmem:[%s5] sm:$0xff]
        %v3434 = vld [vmem:[%s5 + $0x8] sm:$0xff]
        %v3435 = vld [vmem:[%s5 + $0x10] sm:$0xff]
        %v3436 = vld [vmem:[%s5 + $0x18] sm:$0xff]
        %v3437 = vld [vmem:[%s5 + $0x20] sm:$0xff]
        %v3438 = vld [vmem:[%s5 + $0x28] sm:$0xff]
        %v3439 = vld [vmem:[%s5 + $0x30] sm:$0xff]
        %v3440 = vld [vmem:[%s5 + $0x38] sm:$0xff]
        %v3441 = vld [vmem:[%s5 + $0x40] sm:$0xff]
        %v3442 = vld [vmem:[%s5 + $0x48] sm:$0xff]
        %v3443 = vld [vmem:[%s5 + $0x50] sm:$0x33]
        %s3444 = scalar_lea.vmem %s5, 88
        %v3445 = vld [vmem:[%s3444] sm:$0xff]
        %v3446 = vld [vmem:[%s3444 + $0x8] sm:$0xff]
        %v3447 = vld [vmem:[%s3444 + $0x10] sm:$0xff]
        %v3448 = vld [vmem:[%s3444 + $0x18] sm:$0xff]
        %v3449 = vld [vmem:[%s3444 + $0x20] sm:$0xff]
        %v3450 = vld [vmem:[%s3444 + $0x28] sm:$0xff]
        %v3451 = vld [vmem:[%s3444 + $0x30] sm:$0xff]
        %v3452 = vld [vmem:[%s3444 + $0x38] sm:$0xff]
        %v3453 = vld [vmem:[%s3444 + $0x40] sm:$0xff]
        %v3454 = vld [vmem:[%s3444 + $0x48] sm:$0xff]
        %v3455 = vld [vmem:[%s3444 + $0x50] sm:$0x33]
        %v3457 = vshrl.u32 %v3425, 16
        %v3459 = vshll.u32 %v3425, 16
        %v3461 = vrot.slane %v3459, 1
        %v3462 = vor.u32 %v3457, %v3461
        %v3464 = vshll.u32 %v3426, 16
        %v3466 = vrot.slane %v3464, 1
        %v3467 = vsel %vm496, %v3462, %v3466
        %v3468 = vshrl.u32 %v3426, 16
        %v3470 = vor.u32 %v3468, %v3466
        %v3472 = vshll.u32 %v3427, 16
        %v3474 = vrot.slane %v3472, 1
        %v3475 = vsel %vm496, %v3470, %v3474
        %v3476 = vshrl.u32 %v3427, 16
        %v3478 = vor.u32 %v3476, %v3474
        %v3480 = vshll.u32 %v3428, 16
        %v3482 = vrot.slane %v3480, 1
        %v3483 = vsel %vm496, %v3478, %v3482
        %v3484 = vshrl.u32 %v3428, 16
        %v3486 = vor.u32 %v3484, %v3482
        %v3488 = vshll.u32 %v3429, 16
        %v3490 = vrot.slane %v3488, 1
        %v3491 = vsel %vm496, %v3486, %v3490
        %v3492 = vshrl.u32 %v3429, 16
        %v3494 = vor.u32 %v3492, %v3490
        %v3496 = vshll.u32 %v3430, 16
        %v3498 = vrot.slane %v3496, 1
        %v3499 = vsel %vm496, %v3494, %v3498
        %v3500 = vshrl.u32 %v3430, 16
        %v3502 = vor.u32 %v3500, %v3498
        %v3504 = vshll.u32 %v3431, 16
        %v3506 = vrot.slane %v3504, 1
        %v3507 = vsel %vm496, %v3502, %v3506
        %v3508 = vshrl.u32 %v3431, 16
        %v3510 = vor.u32 %v3508, %v3506
        %v3512 = vshll.u32 %v3432, 16
        %v3514 = vrot.slane %v3512, 1
        %v3515 = vsel %vm496, %v3510, %v3514
        %v3527 = vunpack.c.l.b16 %v3445
        %v3528 = vunpack.c.h.b16 %v3445
        %v3529 = vunpack.c.l.b16 %v3446
        %v3530 = vunpack.c.h.b16 %v3446
        %v3531 = vunpack.c.l.b16 %v3447
        %v3532 = vunpack.c.h.b16 %v3447
        %v3533 = vunpack.c.l.b16 %v3448
        %v3534 = vunpack.c.h.b16 %v3448
        %v3535 = vunpack.c.l.b16 %v3449
        %v3536 = vunpack.c.h.b16 %v3449
        %v3537 = vunpack.c.l.b16 %v3450
        %v3538 = vunpack.c.h.b16 %v3450
        %v3539 = vunpack.c.l.b16 %v3451
        %v3540 = vunpack.c.h.b16 %v3451
        %v3541 = vunpack.c.l.b16 %v3452
        %v3542 = vunpack.c.h.b16 %v3452
        %v3543 = vunpack.c.l.b16 %v3453
        %v3544 = vunpack.c.h.b16 %v3453
        %v3545 = vunpack.c.l.b16 %v3454
        %v3546 = vunpack.c.h.b16 %v3454
        %v3547 = vunpack.c.l.b16 %v3455
        %v3548 = vunpack.c.h.b16 %v3455
        %v3549 = vpack.c.b16 %v3529, %v3527
        %v3550 = vpack.c.b16 %v3530, %v3528
        %v3551 = vpack.c.b16 %v3533, %v3531
        %v3552 = vpack.c.b16 %v3534, %v3532
        %v3553 = vpack.c.b16 %v3537, %v3535
        %v3554 = vpack.c.b16 %v3538, %v3536
        %v3555 = vpack.c.b16 %v3541, %v3539
        %v3556 = vpack.c.b16 %v3542, %v3540
        %v3557 = vpack.c.b16 %v3545, %v3543
        %v3558 = vpack.c.b16 %v3546, %v3544
        %v3559 = vpack.c.b16 %v3547, %v3547
        %v3560 = vpack.c.b16 %v3548, %v3548
        %vm3571 = vcmask 687104
        %v3573 = vsel %vm3571, %v3467, 0
        %v3576 = vsel %vm3571, %v3475, 0
        %v3579 = vsel %vm3571, %v3483, 0
        %v3582 = vsel %vm3571, %v3491, 0
        %v3585 = vsel %vm3571, %v3499, 0
        %v3588 = vsel %vm3571, %v3507, 0
        %v3591 = vsel %vm3571, %v3515, 0
        %vm3593 = vcmask 1041408
        %v3595 = vsel %vm3593, %v3559, 0
        %v3598 = vsel %vm3593, %v3560, 0
        %3600 = vmatprep.subr.bf16.mxu0 %v3550
        %3601 = vmatpush1.bf16.msra.mxu0 %v3549
        %3602 = vmatprep.subr.bf16.mxu0 %v3552
        %3603 = vmatpush1.bf16.msra.mxu0 %v3551
        %3604 = vmatprep.subr.bf16.mxu0 %v3554
        %3605 = vmatpush1.bf16.msra.mxu0 %v3553
        %3606 = vmatprep.subr.bf16.mxu0 %v3556
        %3607 = vmatpush1.bf16.msra.mxu0 %v3555
        %3608 = vmatprep.subr.bf16.mxu0 %v3558
        %3609 = vmatpush1.bf16.msra.mxu0 %v3557
        %3610 = vmatprep.subr.bf16.mxu0 %v3598
        %3611 = vmatpush1.bf16.msra.mxu0 %v3595
        %3612 = vmatprep.subr.bf16.mxu0 0
        %3613 = vmatpush1.bf16.msra.mxu0 0
        %3614 = vmatprep.subr.bf16.mxu0 0
        %3615 = vmatpush1.bf16.msra.mxu0 0
        %3616 = vmatprep.subr.bf16.mxu0 0
        %3617 = vmatpush1.bf16.msra.mxu0 0
        %3618 = vmatprep.subr.bf16.mxu0 0
        %3619 = vmatpush1.bf16.msra.mxu0 0
        %3620 = vmatprep.subr.bf16.mxu0 0
        %3621 = vmatpush1.bf16.msra.mxu0 0
        %3622 = vmatprep.subr.bf16.mxu0 0
        %3623 = vmatpush1.bf16.msra.mxu0 0
        %3624 = vmatprep.subr.bf16.mxu0 0
        %3625 = vmatpush1.bf16.msra.mxu0 0
        %3626 = vmatprep.subr.bf16.mxu0 0
        %3627 = vmatpush1.bf16.msra.mxu0 0
        %3628 = vmatprep.subr.bf16.mxu0 0
        %3629 = vmatpush1.bf16.msra.mxu0 0
        %3630 = vmatprep.subr.bf16.mxu0 0
        %3631 = vmatpush1.bf16.msra.mxu0 0
        %3632 = vmatprep.mubr.bf16.mxu0 0
        %3633 = vmatmul.mubr.bf16.gmra.mrb[0].mxu0 %v3573
        %v3634 = vpop.f32.mrb[0].mxu0
        %v3635 = vadd.f32 0.0, %v3634
        %v3636 = vpop.f32.mrb[0].mxu0
        %v3637 = vadd.f32 0.0, %v3636
        %v3638 = vpop.f32.mrb[0].mxu0
        %v3639 = vadd.f32 0.0, %v3638
        %v3640 = vpop.f32.mrb[0].mxu0
        %v3641 = vadd.f32 0.0, %v3640
        %3642 = vmatprep.mubr.bf16.mxu0 0
        %3643 = vmatmul.mubr.bf16.gmra.mrb[0].mxu0 %v3576
        %v3644 = vpop.f32.mrb[0].mxu0
        %v3645 = vadd.f32 0.0, %v3644
        %v3646 = vpop.f32.mrb[0].mxu0
        %v3647 = vadd.f32 0.0, %v3646
        %v3648 = vpop.f32.mrb[0].mxu0
        %v3649 = vadd.f32 0.0, %v3648
        %v3650 = vpop.f32.mrb[0].mxu0
        %v3651 = vadd.f32 0.0, %v3650
        %3652 = vmatprep.mubr.bf16.mxu0 0
        %3653 = vmatmul.mubr.bf16.gmra.mrb[0].mxu0 %v3579
        %v3654 = vpop.f32.mrb[0].mxu0
        %v3655 = vadd.f32 0.0, %v3654
        %v3656 = vpop.f32.mrb[0].mxu0
        %v3657 = vadd.f32 0.0, %v3656
        %v3658 = vpop.f32.mrb[0].mxu0
        %v3659 = vadd.f32 0.0, %v3658
        %v3660 = vpop.f32.mrb[0].mxu0
        %v3661 = vadd.f32 0.0, %v3660
        %3662 = vmatprep.mubr.bf16.mxu0 0
        %3663 = vmatmul.mubr.bf16.gmra.mrb[0].mxu0 %v3582
        %v3664 = vpop.f32.mrb[0].mxu0
        %v3665 = vadd.f32 0.0, %v3664
        %v3666 = vpop.f32.mrb[0].mxu0
        %v3667 = vadd.f32 0.0, %v3666
        %v3668 = vpop.f32.mrb[0].mxu0
        %v3669 = vadd.f32 0.0, %v3668
        %v3670 = vpop.f32.mrb[0].mxu0
        %v3671 = vadd.f32 0.0, %v3670
        %3672 = vmatprep.mubr.bf16.mxu0 0
        %3673 = vmatmul.mubr.bf16.gmra.mrb[0].mxu0 %v3585
        %v3674 = vpop.f32.mrb[0].mxu0
        %v3675 = vadd.f32 0.0, %v3674
        %v3676 = vpop.f32.mrb[0].mxu0
        %v3677 = vadd.f32 0.0, %v3676
        %v3678 = vpop.f32.mrb[0].mxu0
        %v3679 = vadd.f32 0.0, %v3678
        %v3680 = vpop.f32.mrb[0].mxu0
        %v3681 = vadd.f32 0.0, %v3680
        %3682 = vmatprep.mubr.bf16.mxu0 0
        %3683 = vmatmul.mubr.bf16.gmra.mrb[0].mxu0 %v3588
        %v3684 = vpop.f32.mrb[0].mxu0
        %v3685 = vadd.f32 0.0, %v3684
        %v3686 = vpop.f32.mrb[0].mxu0
        %v3687 = vadd.f32 0.0, %v3686
        %v3688 = vpop.f32.mrb[0].mxu0
        %v3689 = vadd.f32 0.0, %v3688
        %v3690 = vpop.f32.mrb[0].mxu0
        %v3691 = vadd.f32 0.0, %v3690
        %3692 = vmatprep.mubr.bf16.mxu0 0
        %3693 = vmatmul.mubr.bf16.gmra.mrb[0].mxu0 %v3591
        %v3694 = vpop.f32.mrb[0].mxu0
        %v3695 = vadd.f32 0.0, %v3694
        %v3696 = vpop.f32.mrb[0].mxu0
        %v3697 = vadd.f32 0.0, %v3696
        %v3698 = vpop.f32.mrb[0].mxu0
        %v3699 = vadd.f32 0.0, %v3698
        %v3700 = vpop.f32.mrb[0].mxu0
        %v3701 = vadd.f32 0.0, %v3700
        %3702 = vdwg.mxu0
        %s3703 = scalar_lea.vmem %s5, 176
        %v3704 = vld [vmem:[%s3703] sm:$0xff]
        %v3705 = vld [vmem:[%s3703 + $0x8] sm:$0xff]
        %v3706 = vld [vmem:[%s3703 + $0x10] sm:$0xff]
        %v3707 = vld [vmem:[%s3703 + $0x18] sm:$0xff]
        %v3708 = vld [vmem:[%s3703 + $0x20] sm:$0xff]
        %v3709 = vld [vmem:[%s3703 + $0x28] sm:$0xff]
        %v3710 = vld [vmem:[%s3703 + $0x30] sm:$0xff]
        %v3711 = vld [vmem:[%s3703 + $0x38] sm:$0xff]
        %v3712 = vld [vmem:[%s3703 + $0x40] sm:$0xff]
        %v3713 = vld [vmem:[%s3703 + $0x48] sm:$0xff]
        %v3714 = vld [vmem:[%s3703 + $0x50] sm:$0x33]
        %s3715 = scalar_lea.vmem %s5, 264
        %v3716 = vld [vmem:[%s3715] sm:$0xff]
        %v3717 = vld [vmem:[%s3715 + $0x8] sm:$0xff]
        %v3718 = vld [vmem:[%s3715 + $0x10] sm:$0xff]
        %v3719 = vld [vmem:[%s3715 + $0x18] sm:$0xff]
        %v3720 = vld [vmem:[%s3715 + $0x20] sm:$0xff]
        %v3721 = vld [vmem:[%s3715 + $0x28] sm:$0xff]
        %v3722 = vld [vmem:[%s3715 + $0x30] sm:$0xff]
        %v3723 = vld [vmem:[%s3715 + $0x38] sm:$0xff]
        %v3724 = vld [vmem:[%s3715 + $0x40] sm:$0xff]
        %v3725 = vld [vmem:[%s3715 + $0x48] sm:$0xff]
        %v3726 = vld [vmem:[%s3715 + $0x50] sm:$0x33]
        %v3727 = vrot.slane %v3457, 1
        %v3728 = vrot.slane %v3459, 2
        %v3729 = vor.u32 %v3727, %v3728
        %v3730 = vrot.slane %v3468, 1
        %v3731 = vrot.slane %v3464, 2
        %v3732 = vor.u32 %v3730, %v3731
        %v3733 = vsel %vm952, %v3729, %v3732
        %v3734 = vrot.slane %v3476, 1
        %v3735 = vrot.slane %v3472, 2
        %v3736 = vor.u32 %v3734, %v3735
        %v3737 = vsel %vm952, %v3732, %v3736
        %v3738 = vrot.slane %v3484, 1
        %v3739 = vrot.slane %v3480, 2
        %v3740 = vor.u32 %v3738, %v3739
        %v3741 = vsel %vm952, %v3736, %v3740
        %v3742 = vrot.slane %v3492, 1
        %v3743 = vrot.slane %v3488, 2
        %v3744 = vor.u32 %v3742, %v3743
        %v3745 = vsel %vm952, %v3740, %v3744
        %v3746 = vrot.slane %v3500, 1
        %v3747 = vrot.slane %v3496, 2
        %v3748 = vor.u32 %v3746, %v3747
        %v3749 = vsel %vm952, %v3744, %v3748
        %v3750 = vrot.slane %v3508, 1
        %v3751 = vrot.slane %v3504, 2
        %v3752 = vor.u32 %v3750, %v3751
        %v3753 = vsel %vm952, %v3748, %v3752
        %v3754 = vshrl.u32 %v3432, 16
        %v3756 = vrot.slane %v3754, 1
        %v3757 = vrot.slane %v3512, 2
        %v3758 = vor.u32 %v3756, %v3757
        %v3759 = vsel %vm952, %v3752, %v3758
        %v3771 = vunpack.c.l.b16 %v3716
        %v3772 = vunpack.c.h.b16 %v3716
        %v3773 = vunpack.c.l.b16 %v3717
        %v3774 = vunpack.c.h.b16 %v3717
        %v3775 = vunpack.c.l.b16 %v3718
        %v3776 = vunpack.c.h.b16 %v3718
        %v3777 = vunpack.c.l.b16 %v3719
        %v3778 = vunpack.c.h.b16 %v3719
        %v3779 = vunpack.c.l.b16 %v3720
        %v3780 = vunpack.c.h.b16 %v3720
        %v3781 = vunpack.c.l.b16 %v3721
        %v3782 = vunpack.c.h.b16 %v3721
        %v3783 = vunpack.c.l.b16 %v3722
        %v3784 = vunpack.c.h.b16 %v3722
        %v3785 = vunpack.c.l.b16 %v3723
        %v3786 = vunpack.c.h.b16 %v3723
        %v3787 = vunpack.c.l.b16 %v3724
        %v3788 = vunpack.c.h.b16 %v3724
        %v3789 = vunpack.c.l.b16 %v3725
        %v3790 = vunpack.c.h.b16 %v3725
        %v3791 = vunpack.c.l.b16 %v3726
        %v3792 = vunpack.c.h.b16 %v3726
        %v3793 = vpack.c.b16 %v3773, %v3771
        %v3794 = vpack.c.b16 %v3774, %v3772
        %v3795 = vpack.c.b16 %v3777, %v3775
        %v3796 = vpack.c.b16 %v3778, %v3776
        %v3797 = vpack.c.b16 %v3781, %v3779
        %v3798 = vpack.c.b16 %v3782, %v3780
        %v3799 = vpack.c.b16 %v3785, %v3783
        %v3800 = vpack.c.b16 %v3786, %v3784
        %v3801 = vpack.c.b16 %v3789, %v3787
        %v3802 = vpack.c.b16 %v3790, %v3788
        %v3803 = vpack.c.b16 %v3791, %v3791
        %v3804 = vpack.c.b16 %v3792, %v3792
        %v3816 = vsel %vm3571, %v3733, 0
        %v3819 = vsel %vm3571, %v3737, 0
        %v3822 = vsel %vm3571, %v3741, 0
        %v3825 = vsel %vm3571, %v3745, 0
        %v3828 = vsel %vm3571, %v3749, 0
        %v3831 = vsel %vm3571, %v3753, 0
        %v3834 = vsel %vm3571, %v3759, 0
        %v3837 = vsel %vm3593, %v3803, 0
        %v3840 = vsel %vm3593, %v3804, 0
        %3842 = vmatprep.subr.bf16.mxu0 %v3794
        %3843 = vmatpush1.bf16.msra.mxu0 %v3793
        %3844 = vmatprep.subr.bf16.mxu0 %v3796
        %3845 = vmatpush1.bf16.msra.mxu0 %v3795
        %3846 = vmatprep.subr.bf16.mxu0 %v3798
        %3847 = vmatpush1.bf16.msra.mxu0 %v3797
        %3848 = vmatprep.subr.bf16.mxu0 %v3800
        %3849 = vmatpush1.bf16.msra.mxu0 %v3799
        %3850 = vmatprep.subr.bf16.mxu0 %v3802
        %3851 = vmatpush1.bf16.msra.mxu0 %v3801
        %3852 = vmatprep.subr.bf16.mxu0 %v3840
        %3853 = vmatpush1.bf16.msra.mxu0 %v3837
        %3854 = vmatprep.subr.bf16.mxu0 0
        %3855 = vmatpush1.bf16.msra.mxu0 0
        %3856 = vmatprep.subr.bf16.mxu0 0
        %3857 = vmatpush1.bf16.msra.mxu0 0
        %3858 = vmatprep.subr.bf16.mxu0 0
        %3859 = vmatpush1.bf16.msra.mxu0 0
        %3860 = vmatprep.subr.bf16.mxu0 0
        %3861 = vmatpush1.bf16.msra.mxu0 0
        %3862 = vmatprep.subr.bf16.mxu0 0
        %3863 = vmatpush1.bf16.msra.mxu0 0
        %3864 = vmatprep.subr.bf16.mxu0 0
        %3865 = vmatpush1.bf16.msra.mxu0 0
        %3866 = vmatprep.subr.bf16.mxu0 0
        %3867 = vmatpush1.bf16.msra.mxu0 0
        %3868 = vmatprep.subr.bf16.mxu0 0
        %3869 = vmatpush1.bf16.msra.mxu0 0
        %3870 = vmatprep.subr.bf16.mxu0 0
        %3871 = vmatpush1.bf16.msra.mxu0 0
        %3872 = vmatprep.subr.bf16.mxu0 0
        %3873 = vmatpush1.bf16.msra.mxu0 0
        %3874 = vmatprep.mubr.bf16.mxu0 0
        %3875 = vmatmul.mubr.bf16.gmra.mrb[0].mxu0 %v3816
        %v3876 = vpop.f32.mrb[0].mxu0
        %v3877 = vadd.f32 0.0, %v3876
        %v3878 = vpop.f32.mrb[0].mxu0
        %v3879 = vadd.f32 0.0, %v3878
        %v3880 = vpop.f32.mrb[0].mxu0
        %v3881 = vadd.f32 0.0, %v3880
        %v3882 = vpop.f32.mrb[0].mxu0
        %v3883 = vadd.f32 0.0, %v3882
        %3884 = vmatprep.mubr.bf16.mxu0 0
        %3885 = vmatmul.mubr.bf16.gmra.mrb[0].mxu0 %v3819
        %v3886 = vpop.f32.mrb[0].mxu0
        %v3887 = vadd.f32 0.0, %v3886
        %v3888 = vpop.f32.mrb[0].mxu0
        %v3889 = vadd.f32 0.0, %v3888
        %v3890 = vpop.f32.mrb[0].mxu0
        %v3891 = vadd.f32 0.0, %v3890
        %v3892 = vpop.f32.mrb[0].mxu0
        %v3893 = vadd.f32 0.0, %v3892
        %3894 = vmatprep.mubr.bf16.mxu0 0
        %3895 = vmatmul.mubr.bf16.gmra.mrb[0].mxu0 %v3822
        %v3896 = vpop.f32.mrb[0].mxu0
        %v3897 = vadd.f32 0.0, %v3896
        %v3898 = vpop.f32.mrb[0].mxu0
        %v3899 = vadd.f32 0.0, %v3898
        %v3900 = vpop.f32.mrb[0].mxu0
        %v3901 = vadd.f32 0.0, %v3900
        %v3902 = vpop.f32.mrb[0].mxu0
        %v3903 = vadd.f32 0.0, %v3902
        %3904 = vmatprep.mubr.bf16.mxu0 0
        %3905 = vmatmul.mubr.bf16.gmra.mrb[0].mxu0 %v3825
        %v3906 = vpop.f32.mrb[0].mxu0
        %v3907 = vadd.f32 0.0, %v3906
        %v3908 = vpop.f32.mrb[0].mxu0
        %v3909 = vadd.f32 0.0, %v3908
        %v3910 = vpop.f32.mrb[0].mxu0
        %v3911 = vadd.f32 0.0, %v3910
        %v3912 = vpop.f32.mrb[0].mxu0
        %v3913 = vadd.f32 0.0, %v3912
        %3914 = vmatprep.mubr.bf16.mxu0 0
        %3915 = vmatmul.mubr.bf16.gmra.mrb[0].mxu0 %v3828
        %v3916 = vpop.f32.mrb[0].mxu0
        %v3917 = vadd.f32 0.0, %v3916
        %v3918 = vpop.f32.mrb[0].mxu0
        %v3919 = vadd.f32 0.0, %v3918
        %v3920 = vpop.f32.mrb[0].mxu0
        %v3921 = vadd.f32 0.0, %v3920
        %v3922 = vpop.f32.mrb[0].mxu0
        %v3923 = vadd.f32 0.0, %v3922
        %3924 = vmatprep.mubr.bf16.mxu0 0
        %3925 = vmatmul.mubr.bf16.gmra.mrb[0].mxu0 %v3831
        %v3926 = vpop.f32.mrb[0].mxu0
        %v3927 = vadd.f32 0.0, %v3926
        %v3928 = vpop.f32.mrb[0].mxu0
        %v3929 = vadd.f32 0.0, %v3928
        %v3930 = vpop.f32.mrb[0].mxu0
        %v3931 = vadd.f32 0.0, %v3930
        %v3932 = vpop.f32.mrb[0].mxu0
        %v3933 = vadd.f32 0.0, %v3932
        %3934 = vmatprep.mubr.bf16.mxu0 0
        %3935 = vmatmul.mubr.bf16.gmra.mrb[0].mxu0 %v3834
        %v3936 = vpop.f32.mrb[0].mxu0
        %v3937 = vadd.f32 0.0, %v3936
        %v3938 = vpop.f32.mrb[0].mxu0
        %v3939 = vadd.f32 0.0, %v3938
        %v3940 = vpop.f32.mrb[0].mxu0
        %v3941 = vadd.f32 0.0, %v3940
        %v3942 = vpop.f32.mrb[0].mxu0
        %v3943 = vadd.f32 0.0, %v3942
        %3944 = vdwg.mxu0
        %s3945 = scalar_lea.vmem %s5, 352
        %v3946 = vld [vmem:[%s3945] sm:$0xff]
        %v3947 = vld [vmem:[%s3945 + $0x8] sm:$0xff]
        %v3948 = vld [vmem:[%s3945 + $0x10] sm:$0xff]
        %v3949 = vld [vmem:[%s3945 + $0x18] sm:$0xff]
        %v3950 = vld [vmem:[%s3945 + $0x20] sm:$0xff]
        %v3951 = vld [vmem:[%s3945 + $0x28] sm:$0xff]
        %v3952 = vld [vmem:[%s3945 + $0x30] sm:$0xff]
        %v3953 = vld [vmem:[%s3945 + $0x38] sm:$0xff]
        %v3954 = vld [vmem:[%s3945 + $0x40] sm:$0xff]
        %v3955 = vld [vmem:[%s3945 + $0x48] sm:$0xff]
        %v3956 = vld [vmem:[%s3945 + $0x50] sm:$0x33]
        %v3965 = vrot.slane %v3425, 2
        %v3966 = vrot.slane %v3426, 2
        %v3967 = vsel %vm1345, %v3965, %v3966
        %v3968 = vrot.slane %v3427, 2
        %v3969 = vsel %vm1345, %v3966, %v3968
        %v3970 = vrot.slane %v3428, 2
        %v3971 = vsel %vm1345, %v3968, %v3970
        %v3972 = vrot.slane %v3429, 2
        %v3973 = vsel %vm1345, %v3970, %v3972
        %v3974 = vrot.slane %v3430, 2
        %v3975 = vsel %vm1345, %v3972, %v3974
        %v3976 = vrot.slane %v3431, 2
        %v3977 = vsel %vm1345, %v3974, %v3976
        %v3978 = vrot.slane %v3432, 2
        %v3979 = vsel %vm1345, %v3976, %v3978
        %v3991 = vunpack.c.l.b16 %v3946
        %v3992 = vunpack.c.h.b16 %v3946
        %v3993 = vunpack.c.l.b16 %v3947
        %v3994 = vunpack.c.h.b16 %v3947
        %v3995 = vunpack.c.l.b16 %v3948
        %v3996 = vunpack.c.h.b16 %v3948
        %v3997 = vunpack.c.l.b16 %v3949
        %v3998 = vunpack.c.h.b16 %v3949
        %v3999 = vunpack.c.l.b16 %v3950
        %v4000 = vunpack.c.h.b16 %v3950
        %v4001 = vunpack.c.l.b16 %v3951
        %v4002 = vunpack.c.h.b16 %v3951
        %v4003 = vunpack.c.l.b16 %v3952
        %v4004 = vunpack.c.h.b16 %v3952
        %v4005 = vunpack.c.l.b16 %v3953
        %v4006 = vunpack.c.h.b16 %v3953
        %v4007 = vunpack.c.l.b16 %v3954
        %v4008 = vunpack.c.h.b16 %v3954
        %v4009 = vunpack.c.l.b16 %v3955
        %v4010 = vunpack.c.h.b16 %v3955
        %v4011 = vunpack.c.l.b16 %v3956
        %v4012 = vunpack.c.h.b16 %v3956
        %v4013 = vpack.c.b16 %v3993, %v3991
        %v4014 = vpack.c.b16 %v3994, %v3992
        %v4015 = vpack.c.b16 %v3997, %v3995
        %v4016 = vpack.c.b16 %v3998, %v3996
        %v4017 = vpack.c.b16 %v4001, %v3999
        %v4018 = vpack.c.b16 %v4002, %v4000
        %v4019 = vpack.c.b16 %v4005, %v4003
        %v4020 = vpack.c.b16 %v4006, %v4004
        %v4021 = vpack.c.b16 %v4009, %v4007
        %v4022 = vpack.c.b16 %v4010, %v4008
        %v4023 = vpack.c.b16 %v4011, %v4011
        %v4024 = vpack.c.b16 %v4012, %v4012
        %v4036 = vsel %vm3571, %v3967, 0
        %v4039 = vsel %vm3571, %v3969, 0
        %v4042 = vsel %vm3571, %v3971, 0
        %v4045 = vsel %vm3571, %v3973, 0
        %v4048 = vsel %vm3571, %v3975, 0
        %v4051 = vsel %vm3571, %v3977, 0
        %v4054 = vsel %vm3571, %v3979, 0
        %v4057 = vsel %vm3593, %v4023, 0
        %v4060 = vsel %vm3593, %v4024, 0
        %4062 = vmatprep.subr.bf16.mxu0 %v4014
        %4063 = vmatpush1.bf16.msra.mxu0 %v4013
        %4064 = vmatprep.subr.bf16.mxu0 %v4016
        %4065 = vmatpush1.bf16.msra.mxu0 %v4015
        %4066 = vmatprep.subr.bf16.mxu0 %v4018
        %4067 = vmatpush1.bf16.msra.mxu0 %v4017
        %4068 = vmatprep.subr.bf16.mxu0 %v4020
        %4069 = vmatpush1.bf16.msra.mxu0 %v4019
        %4070 = vmatprep.subr.bf16.mxu0 %v4022
        %4071 = vmatpush1.bf16.msra.mxu0 %v4021
        %4072 = vmatprep.subr.bf16.mxu0 %v4060
        %4073 = vmatpush1.bf16.msra.mxu0 %v4057
        %4074 = vmatprep.subr.bf16.mxu0 0
        %4075 = vmatpush1.bf16.msra.mxu0 0
        %4076 = vmatprep.subr.bf16.mxu0 0
        %4077 = vmatpush1.bf16.msra.mxu0 0
        %4078 = vmatprep.subr.bf16.mxu0 0
        %4079 = vmatpush1.bf16.msra.mxu0 0
        %4080 = vmatprep.subr.bf16.mxu0 0
        %4081 = vmatpush1.bf16.msra.mxu0 0
        %4082 = vmatprep.subr.bf16.mxu0 0
        %4083 = vmatpush1.bf16.msra.mxu0 0
        %4084 = vmatprep.subr.bf16.mxu0 0
        %4085 = vmatpush1.bf16.msra.mxu0 0
        %4086 = vmatprep.subr.bf16.mxu0 0
        %4087 = vmatpush1.bf16.msra.mxu0 0
        %4088 = vmatprep.subr.bf16.mxu0 0
        %4089 = vmatpush1.bf16.msra.mxu0 0
        %4090 = vmatprep.subr.bf16.mxu0 0
        %4091 = vmatpush1.bf16.msra.mxu0 0
        %4092 = vmatprep.subr.bf16.mxu0 0
        %4093 = vmatpush1.bf16.msra.mxu0 0
        %4094 = vmatprep.mubr.bf16.mxu0 0
        %4095 = vmatmul.mubr.bf16.gmra.mrb[0].mxu0 %v4036
        %v4096 = vpop.f32.mrb[0].mxu0
        %v4097 = vadd.f32 0.0, %v4096
        %v4098 = vpop.f32.mrb[0].mxu0
        %v4099 = vadd.f32 0.0, %v4098
        %v4100 = vpop.f32.mrb[0].mxu0
        %v4101 = vadd.f32 0.0, %v4100
        %v4102 = vpop.f32.mrb[0].mxu0
        %v4103 = vadd.f32 0.0, %v4102
        %4104 = vmatprep.mubr.bf16.mxu0 0
        %4105 = vmatmul.mubr.bf16.gmra.mrb[0].mxu0 %v4039
        %v4106 = vpop.f32.mrb[0].mxu0
        %v4107 = vadd.f32 0.0, %v4106
        %v4108 = vpop.f32.mrb[0].mxu0
        %v4109 = vadd.f32 0.0, %v4108
        %v4110 = vpop.f32.mrb[0].mxu0
        %v4111 = vadd.f32 0.0, %v4110
        %v4112 = vpop.f32.mrb[0].mxu0
        %v4113 = vadd.f32 0.0, %v4112
        %4114 = vmatprep.mubr.bf16.mxu0 0
        %4115 = vmatmul.mubr.bf16.gmra.mrb[0].mxu0 %v4042
        %v4116 = vpop.f32.mrb[0].mxu0
        %v4117 = vadd.f32 0.0, %v4116
        %v4118 = vpop.f32.mrb[0].mxu0
        %v4119 = vadd.f32 0.0, %v4118
        %v4120 = vpop.f32.mrb[0].mxu0
        %v4121 = vadd.f32 0.0, %v4120
        %v4122 = vpop.f32.mrb[0].mxu0
        %v4123 = vadd.f32 0.0, %v4122
        %4124 = vmatprep.mubr.bf16.mxu0 0
        %4125 = vmatmul.mubr.bf16.gmra.mrb[0].mxu0 %v4045
        %v4126 = vpop.f32.mrb[0].mxu0
        %v4127 = vadd.f32 0.0, %v4126
        %v4128 = vpop.f32.mrb[0].mxu0
        %v4129 = vadd.f32 0.0, %v4128
        %v4130 = vpop.f32.mrb[0].mxu0
        %v4131 = vadd.f32 0.0, %v4130
        %v4132 = vpop.f32.mrb[0].mxu0
        %v4133 = vadd.f32 0.0, %v4132
        %4134 = vmatprep.mubr.bf16.mxu0 0
        %4135 = vmatmul.mubr.bf16.gmra.mrb[0].mxu0 %v4048
        %v4136 = vpop.f32.mrb[0].mxu0
        %v4137 = vadd.f32 0.0, %v4136
        %v4138 = vpop.f32.mrb[0].mxu0
        %v4139 = vadd.f32 0.0, %v4138
        %v4140 = vpop.f32.mrb[0].mxu0
        %v4141 = vadd.f32 0.0, %v4140
        %v4142 = vpop.f32.mrb[0].mxu0
        %v4143 = vadd.f32 0.0, %v4142
        %4144 = vmatprep.mubr.bf16.mxu0 0
        %4145 = vmatmul.mubr.bf16.gmra.mrb[0].mxu0 %v4051
        %v4146 = vpop.f32.mrb[0].mxu0
        %v4147 = vadd.f32 0.0, %v4146
        %v4148 = vpop.f32.mrb[0].mxu0
        %v4149 = vadd.f32 0.0, %v4148
        %v4150 = vpop.f32.mrb[0].mxu0
        %v4151 = vadd.f32 0.0, %v4150
        %v4152 = vpop.f32.mrb[0].mxu0
        %v4153 = vadd.f32 0.0, %v4152
        %4154 = vmatprep.mubr.bf16.mxu0 0
        %4155 = vmatmul.mubr.bf16.gmra.mrb[0].mxu0 %v4054
        %v4156 = vpop.f32.mrb[0].mxu0
        %v4157 = vadd.f32 0.0, %v4156
        %v4158 = vpop.f32.mrb[0].mxu0
        %v4159 = vadd.f32 0.0, %v4158
        %v4160 = vpop.f32.mrb[0].mxu0
        %v4161 = vadd.f32 0.0, %v4160
        %v4162 = vpop.f32.mrb[0].mxu0
        %v4163 = vadd.f32 0.0, %v4162
        %4164 = vdwg.mxu0
        %v4176 = vunpack.c.l.b16 %v3433
        %v4177 = vunpack.c.h.b16 %v3433
        %v4178 = vunpack.c.l.b16 %v3434
        %v4179 = vunpack.c.h.b16 %v3434
        %v4180 = vunpack.c.l.b16 %v3435
        %v4181 = vunpack.c.h.b16 %v3435
        %v4182 = vunpack.c.l.b16 %v3436
        %v4183 = vunpack.c.h.b16 %v3436
        %v4184 = vunpack.c.l.b16 %v3437
        %v4185 = vunpack.c.h.b16 %v3437
        %v4186 = vunpack.c.l.b16 %v3438
        %v4187 = vunpack.c.h.b16 %v3438
        %v4188 = vunpack.c.l.b16 %v3439
        %v4189 = vunpack.c.h.b16 %v3439
        %v4190 = vunpack.c.l.b16 %v3440
        %v4191 = vunpack.c.h.b16 %v3440
        %v4192 = vunpack.c.l.b16 %v3441
        %v4193 = vunpack.c.h.b16 %v3441
        %v4194 = vunpack.c.l.b16 %v3442
        %v4195 = vunpack.c.h.b16 %v3442
        %v4196 = vunpack.c.l.b16 %v3443
        %v4197 = vunpack.c.h.b16 %v3443
        %v4198 = vpack.c.b16 %v4178, %v4176
        %v4199 = vpack.c.b16 %v4179, %v4177
        %v4200 = vpack.c.b16 %v4182, %v4180
        %v4201 = vpack.c.b16 %v4183, %v4181
        %v4202 = vpack.c.b16 %v4186, %v4184
        %v4203 = vpack.c.b16 %v4187, %v4185
        %v4204 = vpack.c.b16 %v4190, %v4188
        %v4205 = vpack.c.b16 %v4191, %v4189
        %v4206 = vpack.c.b16 %v4194, %v4192
        %v4207 = vpack.c.b16 %v4195, %v4193
        %v4208 = vpack.c.b16 %v4196, %v4196
        %v4209 = vpack.c.b16 %v4197, %v4197
        %v4220 = vsel %vm3571, %v3425, 0
        %v4222 = vsel %vm3571, %v3426, 0
        %v4224 = vsel %vm3571, %v3427, 0
        %v4226 = vsel %vm3571, %v3428, 0
        %v4228 = vsel %vm3571, %v3429, 0
        %v4230 = vsel %vm3571, %v3430, 0
        %v4232 = vsel %vm3571, %v3431, 0
        %v4235 = vsel %vm3593, %v4208, 0
        %v4238 = vsel %vm3593, %v4209, 0
        %4240 = vmatprep.subr.bf16.mxu0 %v4199
        %4241 = vmatpush1.bf16.msra.mxu0 %v4198
        %4242 = vmatprep.subr.bf16.mxu0 %v4201
        %4243 = vmatpush1.bf16.msra.mxu0 %v4200
        %4244 = vmatprep.subr.bf16.mxu0 %v4203
        %4245 = vmatpush1.bf16.msra.mxu0 %v4202
        %4246 = vmatprep.subr.bf16.mxu0 %v4205
        %4247 = vmatpush1.bf16.msra.mxu0 %v4204
        %4248 = vmatprep.subr.bf16.mxu0 %v4207
        %4249 = vmatpush1.bf16.msra.mxu0 %v4206
        %4250 = vmatprep.subr.bf16.mxu0 %v4238
        %4251 = vmatpush1.bf16.msra.mxu0 %v4235
        %4252 = vmatprep.subr.bf16.mxu0 0
        %4253 = vmatpush1.bf16.msra.mxu0 0
        %4254 = vmatprep.subr.bf16.mxu0 0
        %4255 = vmatpush1.bf16.msra.mxu0 0
        %4256 = vmatprep.subr.bf16.mxu0 0
        %4257 = vmatpush1.bf16.msra.mxu0 0
        %4258 = vmatprep.subr.bf16.mxu0 0
        %4259 = vmatpush1.bf16.msra.mxu0 0
        %4260 = vmatprep.subr.bf16.mxu0 0
        %4261 = vmatpush1.bf16.msra.mxu0 0
        %4262 = vmatprep.subr.bf16.mxu0 0
        %4263 = vmatpush1.bf16.msra.mxu0 0
        %4264 = vmatprep.subr.bf16.mxu0 0
        %4265 = vmatpush1.bf16.msra.mxu0 0
        %4266 = vmatprep.subr.bf16.mxu0 0
        %4267 = vmatpush1.bf16.msra.mxu0 0
        %4268 = vmatprep.subr.bf16.mxu0 0
        %4269 = vmatpush1.bf16.msra.mxu0 0
        %4270 = vmatprep.subr.bf16.mxu0 0
        %4271 = vmatpush1.bf16.msra.mxu0 0
        %4272 = vmatprep.mubr.bf16.mxu0 0
        %4273 = vmatmul.mubr.bf16.gmra.mrb[0].mxu0 %v4220
        %v4274 = vpop.f32.mrb[0].mxu0
        %v4275 = vadd.f32 %v3635, %v4274
        %v4276 = vpop.f32.mrb[0].mxu0
        %v4277 = vadd.f32 %v3637, %v4276
        %v4278 = vpop.f32.mrb[0].mxu0
        %v4279 = vadd.f32 %v3639, %v4278
        %v4280 = vpop.f32.mrb[0].mxu0
        %v4281 = vadd.f32 %v3641, %v4280
        %4282 = vmatprep.mubr.bf16.mxu0 0
        %4283 = vmatmul.mubr.bf16.gmra.mrb[0].mxu0 %v4222
        %v4284 = vpop.f32.mrb[0].mxu0
        %v4285 = vadd.f32 %v3645, %v4284
        %v4286 = vpop.f32.mrb[0].mxu0
        %v4287 = vadd.f32 %v3647, %v4286
        %v4288 = vpop.f32.mrb[0].mxu0
        %v4289 = vadd.f32 %v3649, %v4288
        %v4290 = vpop.f32.mrb[0].mxu0
        %v4291 = vadd.f32 %v3651, %v4290
        %4292 = vmatprep.mubr.bf16.mxu0 0
        %4293 = vmatmul.mubr.bf16.gmra.mrb[0].mxu0 %v4224
        %v4294 = vpop.f32.mrb[0].mxu0
        %v4295 = vadd.f32 %v3655, %v4294
        %v4296 = vpop.f32.mrb[0].mxu0
        %v4297 = vadd.f32 %v3657, %v4296
        %v4298 = vpop.f32.mrb[0].mxu0
        %v4299 = vadd.f32 %v3659, %v4298
        %v4300 = vpop.f32.mrb[0].mxu0
        %v4301 = vadd.f32 %v3661, %v4300
        %4302 = vmatprep.mubr.bf16.mxu0 0
        %4303 = vmatmul.mubr.bf16.gmra.mrb[0].mxu0 %v4226
        %v4304 = vpop.f32.mrb[0].mxu0
        %v4305 = vadd.f32 %v3665, %v4304
        %v4306 = vpop.f32.mrb[0].mxu0
        %v4307 = vadd.f32 %v3667, %v4306
        %v4308 = vpop.f32.mrb[0].mxu0
        %v4309 = vadd.f32 %v3669, %v4308
        %v4310 = vpop.f32.mrb[0].mxu0
        %v4311 = vadd.f32 %v3671, %v4310
        %4312 = vmatprep.mubr.bf16.mxu0 0
        %4313 = vmatmul.mubr.bf16.gmra.mrb[0].mxu0 %v4228
        %v4314 = vpop.f32.mrb[0].mxu0
        %v4315 = vadd.f32 %v3675, %v4314
        %v4316 = vpop.f32.mrb[0].mxu0
        %v4317 = vadd.f32 %v3677, %v4316
        %v4318 = vpop.f32.mrb[0].mxu0
        %v4319 = vadd.f32 %v3679, %v4318
        %v4320 = vpop.f32.mrb[0].mxu0
        %v4321 = vadd.f32 %v3681, %v4320
        %4322 = vmatprep.mubr.bf16.mxu0 0
        %4323 = vmatmul.mubr.bf16.gmra.mrb[0].mxu0 %v4230
        %v4324 = vpop.f32.mrb[0].mxu0
        %v4325 = vadd.f32 %v3685, %v4324
        %v4326 = vpop.f32.mrb[0].mxu0
        %v4327 = vadd.f32 %v3687, %v4326
        %v4328 = vpop.f32.mrb[0].mxu0
        %v4329 = vadd.f32 %v3689, %v4328
        %v4330 = vpop.f32.mrb[0].mxu0
        %v4331 = vadd.f32 %v3691, %v4330
        %4332 = vmatprep.mubr.bf16.mxu0 0
        %4333 = vmatmul.mubr.bf16.gmra.mrb[0].mxu0 %v4232
        %v4334 = vpop.f32.mrb[0].mxu0
        %v4335 = vadd.f32 %v3695, %v4334
        %v4336 = vpop.f32.mrb[0].mxu0
        %v4337 = vadd.f32 %v3697, %v4336
        %v4338 = vpop.f32.mrb[0].mxu0
        %v4339 = vadd.f32 %v3699, %v4338
        %v4340 = vpop.f32.mrb[0].mxu0
        %v4341 = vadd.f32 %v3701, %v4340
        %4342 = vdwg.mxu0
        %v4343 = vrot.slane %v3425, 1
        %v4344 = vrot.slane %v3426, 1
        %v4345 = vsel %vm1941, %v4343, %v4344
        %v4346 = vrot.slane %v3427, 1
        %v4347 = vsel %vm1941, %v4344, %v4346
        %v4348 = vrot.slane %v3428, 1
        %v4349 = vsel %vm1941, %v4346, %v4348
        %v4350 = vrot.slane %v3429, 1
        %v4351 = vsel %vm1941, %v4348, %v4350
        %v4352 = vrot.slane %v3430, 1
        %v4353 = vsel %vm1941, %v4350, %v4352
        %v4354 = vrot.slane %v3431, 1
        %v4355 = vsel %vm1941, %v4352, %v4354
        %v4356 = vrot.slane %v3432, 1
        %v4357 = vsel %vm1941, %v4354, %v4356
        %v4369 = vunpack.c.l.b16 %v3704
        %v4370 = vunpack.c.h.b16 %v3704
        %v4371 = vunpack.c.l.b16 %v3705
        %v4372 = vunpack.c.h.b16 %v3705
        %v4373 = vunpack.c.l.b16 %v3706
        %v4374 = vunpack.c.h.b16 %v3706
        %v4375 = vunpack.c.l.b16 %v3707
        %v4376 = vunpack.c.h.b16 %v3707
        %v4377 = vunpack.c.l.b16 %v3708
        %v4378 = vunpack.c.h.b16 %v3708
        %v4379 = vunpack.c.l.b16 %v3709
        %v4380 = vunpack.c.h.b16 %v3709
        %v4381 = vunpack.c.l.b16 %v3710
        %v4382 = vunpack.c.h.b16 %v3710
        %v4383 = vunpack.c.l.b16 %v3711
        %v4384 = vunpack.c.h.b16 %v3711
        %v4385 = vunpack.c.l.b16 %v3712
        %v4386 = vunpack.c.h.b16 %v3712
        %v4387 = vunpack.c.l.b16 %v3713
        %v4388 = vunpack.c.h.b16 %v3713
        %v4389 = vunpack.c.l.b16 %v3714
        %v4390 = vunpack.c.h.b16 %v3714
        %v4391 = vpack.c.b16 %v4371, %v4369
        %v4392 = vpack.c.b16 %v4372, %v4370
        %v4393 = vpack.c.b16 %v4375, %v4373
        %v4394 = vpack.c.b16 %v4376, %v4374
        %v4395 = vpack.c.b16 %v4379, %v4377
        %v4396 = vpack.c.b16 %v4380, %v4378
        %v4397 = vpack.c.b16 %v4383, %v4381
        %v4398 = vpack.c.b16 %v4384, %v4382
        %v4399 = vpack.c.b16 %v4387, %v4385
        %v4400 = vpack.c.b16 %v4388, %v4386
        %v4401 = vpack.c.b16 %v4389, %v4389
        %v4402 = vpack.c.b16 %v4390, %v4390
        %v4414 = vsel %vm3571, %v4345, 0
        %v4417 = vsel %vm3571, %v4347, 0
        %v4420 = vsel %vm3571, %v4349, 0
        %v4423 = vsel %vm3571, %v4351, 0
        %v4426 = vsel %vm3571, %v4353, 0
        %v4429 = vsel %vm3571, %v4355, 0
        %v4432 = vsel %vm3571, %v4357, 0
        %v4435 = vsel %vm3593, %v4401, 0
        %v4438 = vsel %vm3593, %v4402, 0
        %4440 = vmatprep.subr.bf16.mxu0 %v4392
        %4441 = vmatpush1.bf16.msra.mxu0 %v4391
        %4442 = vmatprep.subr.bf16.mxu0 %v4394
        %4443 = vmatpush1.bf16.msra.mxu0 %v4393
        %4444 = vmatprep.subr.bf16.mxu0 %v4396
        %4445 = vmatpush1.bf16.msra.mxu0 %v4395
        %4446 = vmatprep.subr.bf16.mxu0 %v4398
        %4447 = vmatpush1.bf16.msra.mxu0 %v4397
        %4448 = vmatprep.subr.bf16.mxu0 %v4400
        %4449 = vmatpush1.bf16.msra.mxu0 %v4399
        %4450 = vmatprep.subr.bf16.mxu0 %v4438
        %4451 = vmatpush1.bf16.msra.mxu0 %v4435
        %4452 = vmatprep.subr.bf16.mxu0 0
        %4453 = vmatpush1.bf16.msra.mxu0 0
        %4454 = vmatprep.subr.bf16.mxu0 0
        %4455 = vmatpush1.bf16.msra.mxu0 0
        %4456 = vmatprep.subr.bf16.mxu0 0
        %4457 = vmatpush1.bf16.msra.mxu0 0
        %4458 = vmatprep.subr.bf16.mxu0 0
        %4459 = vmatpush1.bf16.msra.mxu0 0
        %4460 = vmatprep.subr.bf16.mxu0 0
        %4461 = vmatpush1.bf16.msra.mxu0 0
        %4462 = vmatprep.subr.bf16.mxu0 0
        %4463 = vmatpush1.bf16.msra.mxu0 0
        %4464 = vmatprep.subr.bf16.mxu0 0
        %4465 = vmatpush1.bf16.msra.mxu0 0
        %4466 = vmatprep.subr.bf16.mxu0 0
        %4467 = vmatpush1.bf16.msra.mxu0 0
        %4468 = vmatprep.subr.bf16.mxu0 0
        %4469 = vmatpush1.bf16.msra.mxu0 0
        %4470 = vmatprep.subr.bf16.mxu0 0
        %4471 = vmatpush1.bf16.msra.mxu0 0
        %4472 = vmatprep.mubr.bf16.mxu0 0
        %4473 = vmatmul.mubr.bf16.gmra.mrb[0].mxu0 %v4414
        %v4474 = vpop.f32.mrb[0].mxu0
        %v4475 = vadd.f32 %v3877, %v4474
        %v4476 = vpop.f32.mrb[0].mxu0
        %v4477 = vadd.f32 %v3879, %v4476
        %v4478 = vpop.f32.mrb[0].mxu0
        %v4479 = vadd.f32 %v3881, %v4478
        %v4480 = vpop.f32.mrb[0].mxu0
        %v4481 = vadd.f32 %v3883, %v4480
        %4482 = vmatprep.mubr.bf16.mxu0 0
        %4483 = vmatmul.mubr.bf16.gmra.mrb[0].mxu0 %v4417
        %v4484 = vpop.f32.mrb[0].mxu0
        %v4485 = vadd.f32 %v3887, %v4484
        %v4486 = vpop.f32.mrb[0].mxu0
        %v4487 = vadd.f32 %v3889, %v4486
        %v4488 = vpop.f32.mrb[0].mxu0
        %v4489 = vadd.f32 %v3891, %v4488
        %v4490 = vpop.f32.mrb[0].mxu0
        %v4491 = vadd.f32 %v3893, %v4490
        %4492 = vmatprep.mubr.bf16.mxu0 0
        %4493 = vmatmul.mubr.bf16.gmra.mrb[0].mxu0 %v4420
        %v4494 = vpop.f32.mrb[0].mxu0
        %v4495 = vadd.f32 %v3897, %v4494
        %v4496 = vpop.f32.mrb[0].mxu0
        %v4497 = vadd.f32 %v3899, %v4496
        %v4498 = vpop.f32.mrb[0].mxu0
        %v4499 = vadd.f32 %v3901, %v4498
        %v4500 = vpop.f32.mrb[0].mxu0
        %v4501 = vadd.f32 %v3903, %v4500
        %4502 = vmatprep.mubr.bf16.mxu0 0
        %4503 = vmatmul.mubr.bf16.gmra.mrb[0].mxu0 %v4423
        %v4504 = vpop.f32.mrb[0].mxu0
        %v4505 = vadd.f32 %v3907, %v4504
        %v4506 = vpop.f32.mrb[0].mxu0
        %v4507 = vadd.f32 %v3909, %v4506
        %v4508 = vpop.f32.mrb[0].mxu0
        %v4509 = vadd.f32 %v3911, %v4508
        %v4510 = vpop.f32.mrb[0].mxu0
        %v4511 = vadd.f32 %v3913, %v4510
        %4512 = vmatprep.mubr.bf16.mxu0 0
        %4513 = vmatmul.mubr.bf16.gmra.mrb[0].mxu0 %v4426
        %v4514 = vpop.f32.mrb[0].mxu0
        %v4515 = vadd.f32 %v3917, %v4514
        %v4516 = vpop.f32.mrb[0].mxu0
        %v4517 = vadd.f32 %v3919, %v4516
        %v4518 = vpop.f32.mrb[0].mxu0
        %v4519 = vadd.f32 %v3921, %v4518
        %v4520 = vpop.f32.mrb[0].mxu0
        %v4521 = vadd.f32 %v3923, %v4520
        %4522 = vmatprep.mubr.bf16.mxu0 0
        %4523 = vmatmul.mubr.bf16.gmra.mrb[0].mxu0 %v4429
        %v4524 = vpop.f32.mrb[0].mxu0
        %v4525 = vadd.f32 %v3927, %v4524
        %v4526 = vpop.f32.mrb[0].mxu0
        %v4527 = vadd.f32 %v3929, %v4526
        %v4528 = vpop.f32.mrb[0].mxu0
        %v4529 = vadd.f32 %v3931, %v4528
        %v4530 = vpop.f32.mrb[0].mxu0
        %v4531 = vadd.f32 %v3933, %v4530
        %4532 = vmatprep.mubr.bf16.mxu0 0
        %4533 = vmatmul.mubr.bf16.gmra.mrb[0].mxu0 %v4432
        %v4534 = vpop.f32.mrb[0].mxu0
        %v4535 = vadd.f32 %v3937, %v4534
        %v4536 = vpop.f32.mrb[0].mxu0
        %v4537 = vadd.f32 %v3939, %v4536
        %v4538 = vpop.f32.mrb[0].mxu0
        %v4539 = vadd.f32 %v3941, %v4538
        %v4540 = vpop.f32.mrb[0].mxu0
        %v4541 = vadd.f32 %v3943, %v4540
        %4542 = vdwg.mxu0
        %v4543 = vadd.f32 %v4275, %v4475
        %v4544 = vadd.f32 %v4277, %v4477
        %v4545 = vadd.f32 %v4279, %v4479
        %v4546 = vadd.f32 %v4281, %v4481
        %v4547 = vadd.f32 %v4285, %v4485
        %v4548 = vadd.f32 %v4287, %v4487
        %v4549 = vadd.f32 %v4289, %v4489
        %v4550 = vadd.f32 %v4291, %v4491
        %v4551 = vadd.f32 %v4295, %v4495
        %v4552 = vadd.f32 %v4297, %v4497
        %v4553 = vadd.f32 %v4299, %v4499
        %v4554 = vadd.f32 %v4301, %v4501
        %v4555 = vadd.f32 %v4305, %v4505
        %v4556 = vadd.f32 %v4307, %v4507
        %v4557 = vadd.f32 %v4309, %v4509
        %v4558 = vadd.f32 %v4311, %v4511
        %v4559 = vadd.f32 %v4315, %v4515
        %v4560 = vadd.f32 %v4317, %v4517
        %v4561 = vadd.f32 %v4319, %v4519
        %v4562 = vadd.f32 %v4321, %v4521
        %v4563 = vadd.f32 %v4325, %v4525
        %v4564 = vadd.f32 %v4327, %v4527
        %v4565 = vadd.f32 %v4329, %v4529
        %v4566 = vadd.f32 %v4331, %v4531
        %v4567 = vadd.f32 %v4335, %v4535
        %v4568 = vadd.f32 %v4337, %v4537
        %v4569 = vadd.f32 %v4339, %v4539
        %v4570 = vadd.f32 %v4341, %v4541
        %v4571 = vadd.f32 %v4543, %v4097
        %v4572 = vadd.f32 %v4544, %v4099
        %v4573 = vadd.f32 %v4545, %v4101
        %v4574 = vadd.f32 %v4546, %v4103
        %v4575 = vadd.f32 %v4547, %v4107
        %v4576 = vadd.f32 %v4548, %v4109
        %v4577 = vadd.f32 %v4549, %v4111
        %v4578 = vadd.f32 %v4550, %v4113
        %v4579 = vadd.f32 %v4551, %v4117
        %v4580 = vadd.f32 %v4552, %v4119
        %v4581 = vadd.f32 %v4553, %v4121
        %v4582 = vadd.f32 %v4554, %v4123
        %v4583 = vadd.f32 %v4555, %v4127
        %v4584 = vadd.f32 %v4556, %v4129
        %v4585 = vadd.f32 %v4557, %v4131
        %v4586 = vadd.f32 %v4558, %v4133
        %v4587 = vadd.f32 %v4559, %v4137
        %v4588 = vadd.f32 %v4560, %v4139
        %v4589 = vadd.f32 %v4561, %v4141
        %v4590 = vadd.f32 %v4562, %v4143
        %v4591 = vadd.f32 %v4563, %v4147
        %v4592 = vadd.f32 %v4564, %v4149
        %v4593 = vadd.f32 %v4565, %v4151
        %v4594 = vadd.f32 %v4566, %v4153
        %v4595 = vadd.f32 %v4567, %v4157
        %v4596 = vadd.f32 %v4568, %v4159
        %v4597 = vadd.f32 %v4569, %v4161
        %v4598 = vadd.f32 %v4570, %v4163
        %v4599 = vld [vmem:[%s6] sm:$0x3]
        %v4601 = vlaneseq
        %v4602 = vshrl.u32 %v4601, 7
        %v4603 = vsub.s32 0, %v4602
        %v4604 = vrot.slane %v4599, %v4603
        %v4605 = vlaneseq
        %v4606 = vshrl.u32 %v4605, 7
        %v4607 = vsub.s32 1, %v4606
        %v4608 = vrot.slane %v4599, %v4607
        %v4611 = vadd.f32 %v4571, %v4604
        %v4612 = vadd.f32 %v4572, %v4608
        %v4613 = vadd.f32 %v4573, %v4604
        %v4614 = vadd.f32 %v4574, %v4608
        %v4615 = vadd.f32 %v4575, %v4604
        %v4616 = vadd.f32 %v4576, %v4608
        %v4617 = vadd.f32 %v4577, %v4604
        %v4618 = vadd.f32 %v4578, %v4608
        %v4619 = vadd.f32 %v4579, %v4604
        %v4620 = vadd.f32 %v4580, %v4608
        %v4621 = vadd.f32 %v4581, %v4604
        %v4622 = vadd.f32 %v4582, %v4608
        %v4623 = vadd.f32 %v4583, %v4604
        %v4624 = vadd.f32 %v4584, %v4608
        %v4625 = vadd.f32 %v4585, %v4604
        %v4626 = vadd.f32 %v4586, %v4608
        %v4627 = vadd.f32 %v4587, %v4604
        %v4628 = vadd.f32 %v4588, %v4608
        %v4629 = vadd.f32 %v4589, %v4604
        %v4630 = vadd.f32 %v4590, %v4608
        %v4631 = vadd.f32 %v4591, %v4604
        %v4632 = vadd.f32 %v4592, %v4608
        %v4633 = vadd.f32 %v4593, %v4604
        %v4634 = vadd.f32 %v4594, %v4608
        %v4635 = vadd.f32 %v4595, %v4604
        %v4636 = vadd.f32 %v4596, %v4608
        %v4637 = vadd.f32 %v4597, %v4604
        %v4638 = vadd.f32 %v4598, %v4608
        %v4639 = vmax.f32 %v4611, 0.0
        %v4640 = vmax.f32 %v4612, 0.0
        %v4641 = vmax.f32 %v4613, 0.0
        %v4642 = vmax.f32 %v4614, 0.0
        %v4643 = vmax.f32 %v4615, 0.0
        %v4644 = vmax.f32 %v4616, 0.0
        %v4645 = vmax.f32 %v4617, 0.0
        %v4646 = vmax.f32 %v4618, 0.0
        %v4647 = vmax.f32 %v4619, 0.0
        %v4648 = vmax.f32 %v4620, 0.0
        %v4649 = vmax.f32 %v4621, 0.0
        %v4650 = vmax.f32 %v4622, 0.0
        %v4651 = vmax.f32 %v4623, 0.0
        %v4652 = vmax.f32 %v4624, 0.0
        %v4653 = vmax.f32 %v4625, 0.0
        %v4654 = vmax.f32 %v4626, 0.0
        %v4655 = vmax.f32 %v4627, 0.0
        %v4656 = vmax.f32 %v4628, 0.0
        %v4657 = vmax.f32 %v4629, 0.0
        %v4658 = vmax.f32 %v4630, 0.0
        %v4659 = vmax.f32 %v4631, 0.0
        %v4660 = vmax.f32 %v4632, 0.0
        %v4661 = vmax.f32 %v4633, 0.0
        %v4662 = vmax.f32 %v4634, 0.0
        %v4663 = vmax.f32 %v4635, 0.0
        %v4664 = vmax.f32 %v4636, 0.0
        %v4665 = vmax.f32 %v4637, 0.0
        %v4666 = vmax.f32 %v4638, 0.0
        %v4667 = vpack.c.bf16 %v4641, %v4639
        %v4668 = vpack.c.bf16 %v4642, %v4640
        %v4669 = vpack.c.bf16 %v4645, %v4643
        %v4670 = vpack.c.bf16 %v4646, %v4644
        %v4671 = vpack.c.bf16 %v4649, %v4647
        %v4672 = vpack.c.bf16 %v4650, %v4648
        %v4673 = vpack.c.bf16 %v4653, %v4651
        %v4674 = vpack.c.bf16 %v4654, %v4652
        %v4675 = vpack.c.bf16 %v4657, %v4655
        %v4676 = vpack.c.bf16 %v4658, %v4656
        %v4677 = vpack.c.bf16 %v4661, %v4659
        %v4678 = vpack.c.bf16 %v4662, %v4660
        %v4679 = vpack.c.bf16 %v4665, %v4663
        %v4680 = vpack.c.bf16 %v4666, %v4664
        %v4681 = vld [vmem:[%s7] sm:$0xf]
        %v4682 = vld [vmem:[%s7 + $0x4] sm:$0xf]
        %v4683 = vld [vmem:[%s7 + $0x8] sm:$0xf]
        %v4684 = vld [vmem:[%s7 + $0xc] sm:$0xf]
        %v4685 = vld [vmem:[%s7 + $0x10] sm:$0xf]
        %v4691 = vunpack.c.l.b16 %v4681
        %v4692 = vunpack.c.l.b16 %v4682
        %v4693 = vunpack.c.l.b16 %v4683
        %v4694 = vunpack.c.l.b16 %v4684
        %v4695 = vunpack.c.l.b16 %v4685
        %v4696 = vpack.c.b16 %v4692, %v4691
        %v4697 = vpack.c.b16 %v4694, %v4693
        %v4698 = vpack.c.b16 %v4695, %v4695
        %vm4699 = vcmask 916480
        %v4701 = vsel %vm4699, %v4696, 0
        %v4704 = vsel %vm4699, %v4697, 0
        %v4707 = vsel %vm4699, %v4698, 0
        %4709 = vmatprep.subr.bf16.mxu0 %v4668
        %4710 = vmatpush1.bf16.msra.mxu0 %v4667
        %4711 = vmatprep.subr.bf16.mxu0 %v4670
        %4712 = vmatpush1.bf16.msra.mxu0 %v4669
        %4713 = vmatprep.subr.bf16.mxu0 %v4672
        %4714 = vmatpush1.bf16.msra.mxu0 %v4671
        %4715 = vmatprep.subr.bf16.mxu0 %v4674
        %4716 = vmatpush1.bf16.msra.mxu0 %v4673
        %4717 = vmatprep.subr.bf16.mxu0 %v4676
        %4718 = vmatpush1.bf16.msra.mxu0 %v4675
        %4719 = vmatprep.subr.bf16.mxu0 %v4678
        %4720 = vmatpush1.bf16.msra.mxu0 %v4677
        %4721 = vmatprep.subr.bf16.mxu0 %v4680
        %4722 = vmatpush1.bf16.msra.mxu0 %v4679
        %4723 = vmatprep.subr.bf16.mxu0 0
        %4724 = vmatpush1.bf16.msra.mxu0 0
        %4725 = vmatprep.subr.bf16.mxu0 0
        %4726 = vmatpush1.bf16.msra.mxu0 0
        %4727 = vmatprep.subr.bf16.mxu0 0
        %4728 = vmatpush1.bf16.msra.mxu0 0
        %4729 = vmatprep.subr.bf16.mxu0 0
        %4730 = vmatpush1.bf16.msra.mxu0 0
        %4731 = vmatprep.subr.bf16.mxu0 0
        %4732 = vmatpush1.bf16.msra.mxu0 0
        %4733 = vmatprep.subr.bf16.mxu0 0
        %4734 = vmatpush1.bf16.msra.mxu0 0
        %4735 = vmatprep.subr.bf16.mxu0 0
        %4736 = vmatpush1.bf16.msra.mxu0 0
        %4737 = vmatprep.subr.bf16.mxu0 0
        %4738 = vmatpush1.bf16.msra.mxu0 0
        %4739 = vmatprep.subr.bf16.mxu0 0
        %4740 = vmatpush1.bf16.msra.mxu0 0
        %4741 = vmatprep.mubr.bf16.mxu0 0
        %4742 = vmatmul.mubr.bf16.gmra.mrb[0].mxu0 %v4701
        %v4743 = vpop.f32.mrb[0].mxu0
        %v4744 = vadd.f32 0.0, %v4743
        %v4745 = vpop.f32.mrb[0].mxu0
        %v4746 = vadd.f32 0.0, %v4745
        %v4747 = vpop.f32.mrb[0].mxu0
        %v4748 = vadd.f32 0.0, %v4747
        %v4749 = vpop.f32.mrb[0].mxu0
        %v4750 = vadd.f32 0.0, %v4749
        %4751 = vmatprep.mubr.bf16.mxu0 0
        %4752 = vmatmul.mubr.bf16.gmra.mrb[0].mxu0 %v4704
        %v4753 = vpop.f32.mrb[0].mxu0
        %v4754 = vadd.f32 0.0, %v4753
        %v4755 = vpop.f32.mrb[0].mxu0
        %v4756 = vadd.f32 0.0, %v4755
        %v4757 = vpop.f32.mrb[0].mxu0
        %v4758 = vadd.f32 0.0, %v4757
        %v4759 = vpop.f32.mrb[0].mxu0
        %v4760 = vadd.f32 0.0, %v4759
        %4761 = vmatprep.mubr.bf16.mxu0 0
        %4762 = vmatmul.mubr.bf16.gmra.mrb[0].mxu0 %v4707
        %v4763 = vpop.f32.mrb[0].mxu0
        %v4764 = vadd.f32 0.0, %v4763
        %v4765 = vpop.f32.mrb[0].mxu0
        %v4766 = vadd.f32 0.0, %v4765
        %v4767 = vpop.f32.mrb[0].mxu0
        %v4768 = vpop.f32.mrb[0].mxu0
        %4769 = vdwg.mxu0
        %s4770 = scalar_lea.vmem %s7, 20
        %v4771 = vld [vmem:[%s4770] sm:$0xf]
        %v4772 = vld [vmem:[%s4770 + $0x4] sm:$0xf]
        %v4773 = vld [vmem:[%s4770 + $0x8] sm:$0xf]
        %v4774 = vld [vmem:[%s4770 + $0xc] sm:$0xf]
        %v4775 = vld [vmem:[%s4770 + $0x10] sm:$0xf]
        %v4781 = vunpack.c.l.b16 %v4771
        %v4782 = vunpack.c.l.b16 %v4772
        %v4783 = vunpack.c.l.b16 %v4773
        %v4784 = vunpack.c.l.b16 %v4774
        %v4785 = vunpack.c.l.b16 %v4775
        %v4786 = vpack.c.b16 %v4782, %v4781
        %v4787 = vpack.c.b16 %v4784, %v4783
        %v4788 = vpack.c.b16 %v4785, %v4785
        %v4790 = vsel %vm4699, %v4786, 0
        %v4793 = vsel %vm4699, %v4787, 0
        %v4796 = vsel %vm4699, %v4788, 0
        %4798 = vmatprep.subr.bf16.mxu0 %v4668
        %4799 = vmatpush1.bf16.msra.mxu0 %v4667
        %4800 = vmatprep.subr.bf16.mxu0 %v4670
        %4801 = vmatpush1.bf16.msra.mxu0 %v4669
        %4802 = vmatprep.subr.bf16.mxu0 %v4672
        %4803 = vmatpush1.bf16.msra.mxu0 %v4671
        %4804 = vmatprep.subr.bf16.mxu0 %v4674
        %4805 = vmatpush1.bf16.msra.mxu0 %v4673
        %4806 = vmatprep.subr.bf16.mxu0 %v4676
        %4807 = vmatpush1.bf16.msra.mxu0 %v4675
        %4808 = vmatprep.subr.bf16.mxu0 %v4678
        %4809 = vmatpush1.bf16.msra.mxu0 %v4677
        %4810 = vmatprep.subr.bf16.mxu0 %v4680
        %4811 = vmatpush1.bf16.msra.mxu0 %v4679
        %4812 = vmatprep.subr.bf16.mxu0 0
        %4813 = vmatpush1.bf16.msra.mxu0 0
        %4814 = vmatprep.subr.bf16.mxu0 0
        %4815 = vmatpush1.bf16.msra.mxu0 0
        %4816 = vmatprep.subr.bf16.mxu0 0
        %4817 = vmatpush1.bf16.msra.mxu0 0
        %4818 = vmatprep.subr.bf16.mxu0 0
        %4819 = vmatpush1.bf16.msra.mxu0 0
        %4820 = vmatprep.subr.bf16.mxu0 0
        %4821 = vmatpush1.bf16.msra.mxu0 0
        %4822 = vmatprep.subr.bf16.mxu0 0
        %4823 = vmatpush1.bf16.msra.mxu0 0
        %4824 = vmatprep.subr.bf16.mxu0 0
        %4825 = vmatpush1.bf16.msra.mxu0 0
        %4826 = vmatprep.subr.bf16.mxu0 0
        %4827 = vmatpush1.bf16.msra.mxu0 0
        %4828 = vmatprep.subr.bf16.mxu0 0
        %4829 = vmatpush1.bf16.msra.mxu0 0
        %4830 = vmatprep.mubr.bf16.mxu0 0
        %4831 = vmatmul.mubr.bf16.gmra.mrb[0].mxu0 %v4790
        %v4832 = vpop.f32.mrb[0].mxu0
        %v4833 = vadd.f32 0.0, %v4832
        %v4834 = vpop.f32.mrb[0].mxu0
        %v4835 = vadd.f32 0.0, %v4834
        %v4836 = vpop.f32.mrb[0].mxu0
        %v4837 = vadd.f32 0.0, %v4836
        %v4838 = vpop.f32.mrb[0].mxu0
        %v4839 = vadd.f32 0.0, %v4838
        %4840 = vmatprep.mubr.bf16.mxu0 0
        %4841 = vmatmul.mubr.bf16.gmra.mrb[0].mxu0 %v4793
        %v4842 = vpop.f32.mrb[0].mxu0
        %v4843 = vadd.f32 0.0, %v4842
        %v4844 = vpop.f32.mrb[0].mxu0
        %v4845 = vadd.f32 0.0, %v4844
        %v4846 = vpop.f32.mrb[0].mxu0
        %v4847 = vadd.f32 0.0, %v4846
        %v4848 = vpop.f32.mrb[0].mxu0
        %v4849 = vadd.f32 0.0, %v4848
        %4850 = vmatprep.mubr.bf16.mxu0 0
        %4851 = vmatmul.mubr.bf16.gmra.mrb[0].mxu0 %v4796
        %v4852 = vpop.f32.mrb[0].mxu0
        %v4853 = vadd.f32 0.0, %v4852
        %v4854 = vpop.f32.mrb[0].mxu0
        %v4855 = vadd.f32 0.0, %v4854
        %v4856 = vpop.f32.mrb[0].mxu0
        %v4857 = vpop.f32.mrb[0].mxu0
        %4858 = vdwg.mxu0
        %v4859 = vmax.f32 %v4744, %v4833
        %v4860 = vmax.f32 %v4746, %v4835
        %v4861 = vmax.f32 %v4748, %v4837
        %v4862 = vmax.f32 %v4750, %v4839
        %v4863 = vmax.f32 %v4754, %v4843
        %v4864 = vmax.f32 %v4756, %v4845
        %v4865 = vmax.f32 %v4758, %v4847
        %v4866 = vmax.f32 %v4760, %v4849
        %v4867 = vmax.f32 %v4764, %v4853
        %v4868 = vmax.f32 %v4766, %v4855
        %v4869 = vpack.c.bf16 %v4861, %v4859
        %v4870 = vpack.c.bf16 %v4862, %v4860
        %v4871 = vpack.c.bf16 %v4865, %v4863
        %v4872 = vpack.c.bf16 %v4866, %v4864
        %v4873 = vpack.c.bf16 %v4867, %v4867
        %v4874 = vpack.c.bf16 %v4868, %v4868
        %v4875 = vld [vmem:[%s8] sm:$0xf]
        %v4876 = vld [vmem:[%s8 + $0x4] sm:$0xf]
        %v4877 = vld [vmem:[%s8 + $0x8] sm:$0xf]
        %v4878 = vld [vmem:[%s8 + $0xc] sm:$0xf]
        %v4879 = vld [vmem:[%s8 + $0x10] sm:$0xf]
        %v4880 = vld [vmem:[%s8 + $0x14] sm:$0xf]
        %v4881 = vld [vmem:[%s8 + $0x18] sm:$0xf]
        %v4882 = vld [vmem:[%s8 + $0x1c] sm:$0xf]
        %v4883 = vld [vmem:[%s8 + $0x20] sm:$0xf]
        %v4884 = vld [vmem:[%s8 + $0x24] sm:$0xf]
        %v4885 = vld [vmem:[%s8 + $0x28] sm:$0xf]
        %v4886 = vld [vmem:[%s8 + $0x2c] sm:$0xf]
        %v4887 = vld [vmem:[%s8 + $0x30] sm:$0xf]
        %v4888 = vld [vmem:[%s8 + $0x34] sm:$0xf]
        %v4889 = vld [vmem:[%s8 + $0x38] sm:$0xf]
        %v4890 = vld [vmem:[%s8 + $0x3c] sm:$0xf]
        %v4891 = vld [vmem:[%s8 + $0x40] sm:$0xf]
        %v4892 = vld [vmem:[%s8 + $0x44] sm:$0xf]
        %v4893 = vld [vmem:[%s8 + $0x48] sm:$0xf]
        %v4894 = vld [vmem:[%s8 + $0x4c] sm:$0xf]
        %v4915 = vunpack.c.l.b16 %v4875
        %v4916 = vunpack.c.l.b16 %v4876
        %v4917 = vunpack.c.l.b16 %v4877
        %v4918 = vunpack.c.l.b16 %v4878
        %v4919 = vunpack.c.l.b16 %v4879
        %v4920 = vunpack.c.l.b16 %v4880
        %v4921 = vunpack.c.l.b16 %v4881
        %v4922 = vunpack.c.l.b16 %v4882
        %v4923 = vunpack.c.l.b16 %v4883
        %v4924 = vunpack.c.l.b16 %v4884
        %v4925 = vunpack.c.l.b16 %v4885
        %v4926 = vunpack.c.l.b16 %v4886
        %v4927 = vunpack.c.l.b16 %v4887
        %v4928 = vunpack.c.l.b16 %v4888
        %v4929 = vunpack.c.l.b16 %v4889
        %v4930 = vunpack.c.l.b16 %v4890
        %v4931 = vunpack.c.l.b16 %v4891
        %v4932 = vunpack.c.l.b16 %v4892
        %v4933 = vunpack.c.l.b16 %v4893
        %v4934 = vunpack.c.l.b16 %v4894
        %v4935 = vpack.c.b16 %v4916, %v4915
        %v4936 = vpack.c.b16 %v4918, %v4917
        %v4937 = vpack.c.b16 %v4920, %v4919
        %v4938 = vpack.c.b16 %v4922, %v4921
        %v4939 = vpack.c.b16 %v4924, %v4923
        %v4940 = vpack.c.b16 %v4926, %v4925
        %v4941 = vpack.c.b16 %v4928, %v4927
        %v4942 = vpack.c.b16 %v4930, %v4929
        %v4943 = vpack.c.b16 %v4932, %v4931
        %v4944 = vpack.c.b16 %v4934, %v4933
        %vm4955 = vcmask 261120
        %v4957 = vsel %vm4955, %v4870, 0
        %v4960 = vsel %vm4955, %v4872, 0
        %v4963 = vsel %vm4955, %v4874, 0
        %4965 = vmatprep.subr.bf16.mxu0 0
        %4966 = vmatpush1.bf16.msra.mxu0 %v4935
        %4967 = vmatprep.subr.bf16.mxu0 0
        %4968 = vmatpush1.bf16.msra.mxu0 %v4936
        %4969 = vmatprep.subr.bf16.mxu0 0
        %4970 = vmatpush1.bf16.msra.mxu0 %v4937
        %4971 = vmatprep.subr.bf16.mxu0 0
        %4972 = vmatpush1.bf16.msra.mxu0 %v4938
        %4973 = vmatprep.subr.bf16.mxu0 0
        %4974 = vmatpush1.bf16.msra.mxu0 %v4939
        %4975 = vmatprep.subr.bf16.mxu0 0
        %4976 = vmatpush1.bf16.msra.mxu0 %v4940
        %4977 = vmatprep.subr.bf16.mxu0 0
        %4978 = vmatpush1.bf16.msra.mxu0 %v4941
        %4979 = vmatprep.subr.bf16.mxu0 0
        %4980 = vmatpush1.bf16.msra.mxu0 %v4942
        %4981 = vmatprep.subr.bf16.mxu0 0
        %4982 = vmatpush1.bf16.msra.mxu0 %v4943
        %4983 = vmatprep.subr.bf16.mxu0 0
        %4984 = vmatpush1.bf16.msra.mxu0 %v4944
        %4985 = vmatprep.subr.bf16.mxu0 0
        %4986 = vmatpush1.bf16.msra.mxu0 0
        %4987 = vmatprep.subr.bf16.mxu0 0
        %4988 = vmatpush1.bf16.msra.mxu0 0
        %4989 = vmatprep.subr.bf16.mxu0 0
        %4990 = vmatpush1.bf16.msra.mxu0 0
        %4991 = vmatprep.subr.bf16.mxu0 0
        %4992 = vmatpush1.bf16.msra.mxu0 0
        %4993 = vmatprep.subr.bf16.mxu0 0
        %4994 = vmatpush1.bf16.msra.mxu0 0
        %4995 = vmatprep.subr.bf16.mxu0 0
        %4996 = vmatpush1.bf16.msra.mxu0 0
        %4997 = vmatprep.mubr.bf16.mxu0 %v4957
        %4998 = vmatmul.mubr.bf16.gmra.mrb[0].mxu0 %v4869
        %v4999 = vpop.f32.mrb[0].mxu0
        %v5000 = vadd.f32 0.0, %v4999
        %v5001 = vpop.f32.mrb[0].mxu0
        %v5002 = vpop.f32.mrb[0].mxu0
        %v5003 = vadd.f32 0.0, %v5002
        %v5004 = vpop.f32.mrb[0].mxu0
        %5005 = vmatprep.mubr.bf16.mxu0 %v4960
        %5006 = vmatmul.mubr.bf16.gmra.mrb[0].mxu0 %v4871
        %v5007 = vpop.f32.mrb[0].mxu0
        %v5008 = vadd.f32 0.0, %v5007
        %v5009 = vpop.f32.mrb[0].mxu0
        %v5010 = vpop.f32.mrb[0].mxu0
        %v5011 = vadd.f32 0.0, %v5010
        %v5012 = vpop.f32.mrb[0].mxu0
        %5013 = vmatprep.mubr.bf16.mxu0 %v4963
        %5014 = vmatmul.mubr.bf16.gmra.mrb[0].mxu0 %v4873
        %v5015 = vpop.f32.mrb[0].mxu0
        %v5016 = vadd.f32 0.0, %v5015
        %v5017 = vpop.f32.mrb[0].mxu0
        %v5018 = vpop.f32.mrb[0].mxu0
        %v5019 = vpop.f32.mrb[0].mxu0
        %5020 = vdwg.mxu0
        %s5021 = scalar_lea.vmem %s8, 80
        %v5022 = vld [vmem:[%s5021] sm:$0xf]
        %v5023 = vld [vmem:[%s5021 + $0x4] sm:$0xf]
        %v5024 = vld [vmem:[%s5021 + $0x8] sm:$0xf]
        %v5025 = vld [vmem:[%s5021 + $0xc] sm:$0xf]
        %v5026 = vld [vmem:[%s5021 + $0x10] sm:$0xf]
        %v5027 = vld [vmem:[%s5021 + $0x14] sm:$0xf]
        %v5028 = vld [vmem:[%s5021 + $0x18] sm:$0xf]
        %v5029 = vld [vmem:[%s5021 + $0x1c] sm:$0xf]
        %v5030 = vld [vmem:[%s5021 + $0x20] sm:$0xf]
        %v5031 = vld [vmem:[%s5021 + $0x24] sm:$0xf]
        %v5032 = vld [vmem:[%s5021 + $0x28] sm:$0xf]
        %v5033 = vld [vmem:[%s5021 + $0x2c] sm:$0xf]
        %v5034 = vld [vmem:[%s5021 + $0x30] sm:$0xf]
        %v5035 = vld [vmem:[%s5021 + $0x34] sm:$0xf]
        %v5036 = vld [vmem:[%s5021 + $0x38] sm:$0xf]
        %v5037 = vld [vmem:[%s5021 + $0x3c] sm:$0xf]
        %v5038 = vld [vmem:[%s5021 + $0x40] sm:$0xf]
        %v5039 = vld [vmem:[%s5021 + $0x44] sm:$0xf]
        %v5040 = vld [vmem:[%s5021 + $0x48] sm:$0xf]
        %v5041 = vld [vmem:[%s5021 + $0x4c] sm:$0xf]
        %v5062 = vunpack.c.l.b16 %v5022
        %v5063 = vunpack.c.l.b16 %v5023
        %v5064 = vunpack.c.l.b16 %v5024
        %v5065 = vunpack.c.l.b16 %v5025
        %v5066 = vunpack.c.l.b16 %v5026
        %v5067 = vunpack.c.l.b16 %v5027
        %v5068 = vunpack.c.l.b16 %v5028
        %v5069 = vunpack.c.l.b16 %v5029
        %v5070 = vunpack.c.l.b16 %v5030
        %v5071 = vunpack.c.l.b16 %v5031
        %v5072 = vunpack.c.l.b16 %v5032
        %v5073 = vunpack.c.l.b16 %v5033
        %v5074 = vunpack.c.l.b16 %v5034
        %v5075 = vunpack.c.l.b16 %v5035
        %v5076 = vunpack.c.l.b16 %v5036
        %v5077 = vunpack.c.l.b16 %v5037
        %v5078 = vunpack.c.l.b16 %v5038
        %v5079 = vunpack.c.l.b16 %v5039
        %v5080 = vunpack.c.l.b16 %v5040
        %v5081 = vunpack.c.l.b16 %v5041
        %v5082 = vpack.c.b16 %v5063, %v5062
        %v5083 = vpack.c.b16 %v5065, %v5064
        %v5084 = vpack.c.b16 %v5067, %v5066
        %v5085 = vpack.c.b16 %v5069, %v5068
        %v5086 = vpack.c.b16 %v5071, %v5070
        %v5087 = vpack.c.b16 %v5073, %v5072
        %v5088 = vpack.c.b16 %v5075, %v5074
        %v5089 = vpack.c.b16 %v5077, %v5076
        %v5090 = vpack.c.b16 %v5079, %v5078
        %v5091 = vpack.c.b16 %v5081, %v5080
        %5102 = vmatprep.subr.bf16.mxu0 0
        %5103 = vmatpush1.bf16.msra.mxu0 %v5082
        %5104 = vmatprep.subr.bf16.mxu0 0
        %5105 = vmatpush1.bf16.msra.mxu0 %v5083
        %5106 = vmatprep.subr.bf16.mxu0 0
        %5107 = vmatpush1.bf16.msra.mxu0 %v5084
        %5108 = vmatprep.subr.bf16.mxu0 0
        %5109 = vmatpush1.bf16.msra.mxu0 %v5085
        %5110 = vmatprep.subr.bf16.mxu0 0
        %5111 = vmatpush1.bf16.msra.mxu0 %v5086
        %5112 = vmatprep.subr.bf16.mxu0 0
        %5113 = vmatpush1.bf16.msra.mxu0 %v5087
        %5114 = vmatprep.subr.bf16.mxu0 0
        %5115 = vmatpush1.bf16.msra.mxu0 %v5088
        %5116 = vmatprep.subr.bf16.mxu0 0
        %5117 = vmatpush1.bf16.msra.mxu0 %v5089
        %5118 = vmatprep.subr.bf16.mxu0 0
        %5119 = vmatpush1.bf16.msra.mxu0 %v5090
        %5120 = vmatprep.subr.bf16.mxu0 0
        %5121 = vmatpush1.bf16.msra.mxu0 %v5091
        %5122 = vmatprep.subr.bf16.mxu0 0
        %5123 = vmatpush1.bf16.msra.mxu0 0
        %5124 = vmatprep.subr.bf16.mxu0 0
        %5125 = vmatpush1.bf16.msra.mxu0 0
        %5126 = vmatprep.subr.bf16.mxu0 0
        %5127 = vmatpush1.bf16.msra.mxu0 0
        %5128 = vmatprep.subr.bf16.mxu0 0
        %5129 = vmatpush1.bf16.msra.mxu0 0
        %5130 = vmatprep.subr.bf16.mxu0 0
        %5131 = vmatpush1.bf16.msra.mxu0 0
        %5132 = vmatprep.subr.bf16.mxu0 0
        %5133 = vmatpush1.bf16.msra.mxu0 0
        %5134 = vmatprep.mubr.bf16.mxu0 %v4957
        %5135 = vmatmul.mubr.bf16.gmra.mrb[0].mxu0 %v4869
        %v5136 = vpop.f32.mrb[0].mxu0
        %v5137 = vadd.f32 0.0, %v5136
        %v5138 = vpop.f32.mrb[0].mxu0
        %v5139 = vpop.f32.mrb[0].mxu0
        %v5140 = vadd.f32 0.0, %v5139
        %v5141 = vpop.f32.mrb[0].mxu0
        %5142 = vmatprep.mubr.bf16.mxu0 %v4960
        %5143 = vmatmul.mubr.bf16.gmra.mrb[0].mxu0 %v4871
        %v5144 = vpop.f32.mrb[0].mxu0
        %v5145 = vadd.f32 0.0, %v5144
        %v5146 = vpop.f32.mrb[0].mxu0
        %v5147 = vpop.f32.mrb[0].mxu0
        %v5148 = vadd.f32 0.0, %v5147
        %v5149 = vpop.f32.mrb[0].mxu0
        %5150 = vmatprep.mubr.bf16.mxu0 %v4963
        %5151 = vmatmul.mubr.bf16.gmra.mrb[0].mxu0 %v4873
        %v5152 = vpop.f32.mrb[0].mxu0
        %v5153 = vadd.f32 0.0, %v5152
        %v5154 = vpop.f32.mrb[0].mxu0
        %v5155 = vpop.f32.mrb[0].mxu0
        %v5156 = vpop.f32.mrb[0].mxu0
        %5157 = vdwg.mxu0
        %v5158 = vmax.f32 %v5000, %v5137
        %v5159 = vmax.f32 %v5003, %v5140
        %v5160 = vmax.f32 %v5008, %v5145
        %v5161 = vmax.f32 %v5011, %v5148
        %v5162 = vmax.f32 %v5016, %v5153
        %v5163 = vpack.c.bf16 %v5159, %v5158
        %v5164 = vpack.c.bf16 %v5161, %v5160
        %v5165 = vpack.c.bf16 %v5162, %v5162
        %v5166 = vld [vmem:[%s11] sm:$0x7]
        %v5167 = vld [vmem:[%s9] sm:$0xf]
        %v5168 = vld [vmem:[%s9 + $0x4] sm:$0xf]
        %v5169 = vld [vmem:[%s9 + $0x8] sm:$0xf]
        %v5170 = vld [vmem:[%s9 + $0xc] sm:$0xf]
        %v5171 = vld [vmem:[%s9 + $0x10] sm:$0xf]
        %v5172 = vld [vmem:[%s9 + $0x14] sm:$0xf]
        %v5173 = vld [vmem:[%s9 + $0x18] sm:$0xf]
        %v5174 = vld [vmem:[%s9 + $0x1c] sm:$0xf]
        %v5175 = vld [vmem:[%s9 + $0x20] sm:$0xf]
        %v5176 = vld [vmem:[%s9 + $0x24] sm:$0xf]
        %s5177 = scalar_lea.vmem %s9, 40
        %v5178 = vld [vmem:[%s5177] sm:$0xf]
        %v5179 = vld [vmem:[%s5177 + $0x4] sm:$0xf]
        %v5180 = vld [vmem:[%s5177 + $0x8] sm:$0xf]
        %v5181 = vld [vmem:[%s5177 + $0xc] sm:$0xf]
        %v5182 = vld [vmem:[%s5177 + $0x10] sm:$0xf]
        %v5183 = vld [vmem:[%s5177 + $0x14] sm:$0xf]
        %v5184 = vld [vmem:[%s5177 + $0x18] sm:$0xf]
        %v5185 = vld [vmem:[%s5177 + $0x1c] sm:$0xf]
        %v5186 = vld [vmem:[%s5177 + $0x20] sm:$0xf]
        %v5187 = vld [vmem:[%s5177 + $0x24] sm:$0xf]
        %v5189 = vrot.slane %v5163, 4
        %v5200 = vunpack.c.l.b16 %v5178
        %v5201 = vunpack.c.l.b16 %v5179
        %v5202 = vunpack.c.l.b16 %v5180
        %v5203 = vunpack.c.l.b16 %v5181
        %v5204 = vunpack.c.l.b16 %v5182
        %v5205 = vunpack.c.l.b16 %v5183
        %v5206 = vunpack.c.l.b16 %v5184
        %v5207 = vunpack.c.l.b16 %v5185
        %v5208 = vunpack.c.l.b16 %v5186
        %v5209 = vunpack.c.l.b16 %v5187
        %v5210 = vpack.c.b16 %v5201, %v5200
        %v5211 = vpack.c.b16 %v5203, %v5202
        %v5212 = vpack.c.b16 %v5205, %v5204
        %v5213 = vpack.c.b16 %v5207, %v5206
        %v5214 = vpack.c.b16 %v5209, %v5208
        %vm5220 = vcmask 654336
        %v5222 = vsel %vm5220, %v5189, 0
        %5224 = vmatprep.subr.bf16.mxu0 0
        %5225 = vmatpush1.bf16.msra.mxu0 %v5210
        %5226 = vmatprep.subr.bf16.mxu0 0
        %5227 = vmatpush1.bf16.msra.mxu0 %v5211
        %5228 = vmatprep.subr.bf16.mxu0 0
        %5229 = vmatpush1.bf16.msra.mxu0 %v5212
        %5230 = vmatprep.subr.bf16.mxu0 0
        %5231 = vmatpush1.bf16.msra.mxu0 %v5213
        %5232 = vmatprep.subr.bf16.mxu0 0
        %5233 = vmatpush1.bf16.msra.mxu0 %v5214
        %5234 = vmatprep.subr.bf16.mxu0 0
        %5235 = vmatpush1.bf16.msra.mxu0 0
        %5236 = vmatprep.subr.bf16.mxu0 0
        %5237 = vmatpush1.bf16.msra.mxu0 0
        %5238 = vmatprep.subr.bf16.mxu0 0
        %5239 = vmatpush1.bf16.msra.mxu0 0
        %5240 = vmatprep.subr.bf16.mxu0 0
        %5241 = vmatpush1.bf16.msra.mxu0 0
        %5242 = vmatprep.subr.bf16.mxu0 0
        %5243 = vmatpush1.bf16.msra.mxu0 0
        %5244 = vmatprep.subr.bf16.mxu0 0
        %5245 = vmatpush1.bf16.msra.mxu0 0
        %5246 = vmatprep.subr.bf16.mxu0 0
        %5247 = vmatpush1.bf16.msra.mxu0 0
        %5248 = vmatprep.subr.bf16.mxu0 0
        %5249 = vmatpush1.bf16.msra.mxu0 0
        %5250 = vmatprep.subr.bf16.mxu0 0
        %5251 = vmatpush1.bf16.msra.mxu0 0
        %5252 = vmatprep.subr.bf16.mxu0 0
        %5253 = vmatpush1.bf16.msra.mxu0 0
        %5254 = vmatprep.subr.bf16.mxu0 0
        %5255 = vmatpush1.bf16.msra.mxu0 0
        %5256 = vmatprep.mubr.bf16.mxu0 0
        %5257 = vmatmul.mubr.bf16.gmra.mrb[0].mxu0 %v5222
        %v5258 = vpop.f32.mrb[0].mxu0
        %v5259 = vadd.f32 0.0, %v5258
        %v5260 = vpop.f32.mrb[0].mxu0
        %v5261 = vpop.f32.mrb[0].mxu0
        %v5262 = vpop.f32.mrb[0].mxu0
        %5263 = vdwg.mxu0
        %s5264 = scalar_lea.vmem %s9, 80
        %v5265 = vld [vmem:[%s5264] sm:$0xf]
        %v5266 = vld [vmem:[%s5264 + $0x4] sm:$0xf]
        %v5267 = vld [vmem:[%s5264 + $0x8] sm:$0xf]
        %v5268 = vld [vmem:[%s5264 + $0xc] sm:$0xf]
        %v5269 = vld [vmem:[%s5264 + $0x10] sm:$0xf]
        %v5270 = vld [vmem:[%s5264 + $0x14] sm:$0xf]
        %v5271 = vld [vmem:[%s5264 + $0x18] sm:$0xf]
        %v5272 = vld [vmem:[%s5264 + $0x1c] sm:$0xf]
        %v5273 = vld [vmem:[%s5264 + $0x20] sm:$0xf]
        %v5274 = vld [vmem:[%s5264 + $0x24] sm:$0xf]
        %s5275 = scalar_lea.vmem %s9, 120
        %v5276 = vld [vmem:[%s5275] sm:$0xf]
        %v5277 = vld [vmem:[%s5275 + $0x4] sm:$0xf]
        %v5278 = vld [vmem:[%s5275 + $0x8] sm:$0xf]
        %v5279 = vld [vmem:[%s5275 + $0xc] sm:$0xf]
        %v5280 = vld [vmem:[%s5275 + $0x10] sm:$0xf]
        %v5281 = vld [vmem:[%s5275 + $0x14] sm:$0xf]
        %v5282 = vld [vmem:[%s5275 + $0x18] sm:$0xf]
        %v5283 = vld [vmem:[%s5275 + $0x1c] sm:$0xf]
        %v5284 = vld [vmem:[%s5275 + $0x20] sm:$0xf]
        %v5285 = vld [vmem:[%s5275 + $0x24] sm:$0xf]
        %v5287 = vrot.slane %v5164, 4
        %v5298 = vunpack.c.l.b16 %v5276
        %v5299 = vunpack.c.l.b16 %v5277
        %v5300 = vunpack.c.l.b16 %v5278
        %v5301 = vunpack.c.l.b16 %v5279
        %v5302 = vunpack.c.l.b16 %v5280
        %v5303 = vunpack.c.l.b16 %v5281
        %v5304 = vunpack.c.l.b16 %v5282
        %v5305 = vunpack.c.l.b16 %v5283
        %v5306 = vunpack.c.l.b16 %v5284
        %v5307 = vunpack.c.l.b16 %v5285
        %v5308 = vpack.c.b16 %v5299, %v5298
        %v5309 = vpack.c.b16 %v5301, %v5300
        %v5310 = vpack.c.b16 %v5303, %v5302
        %v5311 = vpack.c.b16 %v5305, %v5304
        %v5312 = vpack.c.b16 %v5307, %v5306
        %v5319 = vsel %vm5220, %v5287, 0
        %5321 = vmatprep.subr.bf16.mxu0 0
        %5322 = vmatpush1.bf16.msra.mxu0 %v5308
        %5323 = vmatprep.subr.bf16.mxu0 0
        %5324 = vmatpush1.bf16.msra.mxu0 %v5309
        %5325 = vmatprep.subr.bf16.mxu0 0
        %5326 = vmatpush1.bf16.msra.mxu0 %v5310
        %5327 = vmatprep.subr.bf16.mxu0 0
        %5328 = vmatpush1.bf16.msra.mxu0 %v5311
        %5329 = vmatprep.subr.bf16.mxu0 0
        %5330 = vmatpush1.bf16.msra.mxu0 %v5312
        %5331 = vmatprep.subr.bf16.mxu0 0
        %5332 = vmatpush1.bf16.msra.mxu0 0
        %5333 = vmatprep.subr.bf16.mxu0 0
        %5334 = vmatpush1.bf16.msra.mxu0 0
        %5335 = vmatprep.subr.bf16.mxu0 0
        %5336 = vmatpush1.bf16.msra.mxu0 0
        %5337 = vmatprep.subr.bf16.mxu0 0
        %5338 = vmatpush1.bf16.msra.mxu0 0
        %5339 = vmatprep.subr.bf16.mxu0 0
        %5340 = vmatpush1.bf16.msra.mxu0 0
        %5341 = vmatprep.subr.bf16.mxu0 0
        %5342 = vmatpush1.bf16.msra.mxu0 0
        %5343 = vmatprep.subr.bf16.mxu0 0
        %5344 = vmatpush1.bf16.msra.mxu0 0
        %5345 = vmatprep.subr.bf16.mxu0 0
        %5346 = vmatpush1.bf16.msra.mxu0 0
        %5347 = vmatprep.subr.bf16.mxu0 0
        %5348 = vmatpush1.bf16.msra.mxu0 0
        %5349 = vmatprep.subr.bf16.mxu0 0
        %5350 = vmatpush1.bf16.msra.mxu0 0
        %5351 = vmatprep.subr.bf16.mxu0 0
        %5352 = vmatpush1.bf16.msra.mxu0 0
        %5353 = vmatprep.mubr.bf16.mxu0 0
        %5354 = vmatmul.mubr.bf16.gmra.mrb[0].mxu0 %v5319
        %v5355 = vpop.f32.mrb[0].mxu0
        %v5356 = vadd.f32 0.0, %v5355
        %v5357 = vpop.f32.mrb[0].mxu0
        %v5358 = vpop.f32.mrb[0].mxu0
        %v5359 = vpop.f32.mrb[0].mxu0
        %5360 = vdwg.mxu0
        %s5361 = scalar_lea.vmem %s9, 160
        %v5362 = vld [vmem:[%s5361] sm:$0xf]
        %v5363 = vld [vmem:[%s5361 + $0x4] sm:$0xf]
        %v5364 = vld [vmem:[%s5361 + $0x8] sm:$0xf]
        %v5365 = vld [vmem:[%s5361 + $0xc] sm:$0xf]
        %v5366 = vld [vmem:[%s5361 + $0x10] sm:$0xf]
        %v5367 = vld [vmem:[%s5361 + $0x14] sm:$0xf]
        %v5368 = vld [vmem:[%s5361 + $0x18] sm:$0xf]
        %v5369 = vld [vmem:[%s5361 + $0x1c] sm:$0xf]
        %v5370 = vld [vmem:[%s5361 + $0x20] sm:$0xf]
        %v5371 = vld [vmem:[%s5361 + $0x24] sm:$0xf]
        %v5382 = vunpack.c.l.b16 %v5362
        %v5383 = vunpack.c.l.b16 %v5363
        %v5384 = vunpack.c.l.b16 %v5364
        %v5385 = vunpack.c.l.b16 %v5365
        %v5386 = vunpack.c.l.b16 %v5366
        %v5387 = vunpack.c.l.b16 %v5367
        %v5388 = vunpack.c.l.b16 %v5368
        %v5389 = vunpack.c.l.b16 %v5369
        %v5390 = vunpack.c.l.b16 %v5370
        %v5391 = vunpack.c.l.b16 %v5371
        %v5392 = vpack.c.b16 %v5383, %v5382
        %v5393 = vpack.c.b16 %v5385, %v5384
        %v5394 = vpack.c.b16 %v5387, %v5386
        %v5395 = vpack.c.b16 %v5389, %v5388
        %v5396 = vpack.c.b16 %v5391, %v5390
        %v5403 = vsel %vm5220, %v5165, 0
        %5405 = vmatprep.subr.bf16.mxu0 0
        %5406 = vmatpush1.bf16.msra.mxu0 %v5392
        %5407 = vmatprep.subr.bf16.mxu0 0
        %5408 = vmatpush1.bf16.msra.mxu0 %v5393
        %5409 = vmatprep.subr.bf16.mxu0 0
        %5410 = vmatpush1.bf16.msra.mxu0 %v5394
        %5411 = vmatprep.subr.bf16.mxu0 0
        %5412 = vmatpush1.bf16.msra.mxu0 %v5395
        %5413 = vmatprep.subr.bf16.mxu0 0
        %5414 = vmatpush1.bf16.msra.mxu0 %v5396
        %5415 = vmatprep.subr.bf16.mxu0 0
        %5416 = vmatpush1.bf16.msra.mxu0 0
        %5417 = vmatprep.subr.bf16.mxu0 0
        %5418 = vmatpush1.bf16.msra.mxu0 0
        %5419 = vmatprep.subr.bf16.mxu0 0
        %5420 = vmatpush1.bf16.msra.mxu0 0
        %5421 = vmatprep.subr.bf16.mxu0 0
        %5422 = vmatpush1.bf16.msra.mxu0 0
        %5423 = vmatprep.subr.bf16.mxu0 0
        %5424 = vmatpush1.bf16.msra.mxu0 0
        %5425 = vmatprep.subr.bf16.mxu0 0
        %5426 = vmatpush1.bf16.msra.mxu0 0
        %5427 = vmatprep.subr.bf16.mxu0 0
        %5428 = vmatpush1.bf16.msra.mxu0 0
        %5429 = vmatprep.subr.bf16.mxu0 0
        %5430 = vmatpush1.bf16.msra.mxu0 0
        %5431 = vmatprep.subr.bf16.mxu0 0
        %5432 = vmatpush1.bf16.msra.mxu0 0
        %5433 = vmatprep.subr.bf16.mxu0 0
        %5434 = vmatpush1.bf16.msra.mxu0 0
        %5435 = vmatprep.subr.bf16.mxu0 0
        %5436 = vmatpush1.bf16.msra.mxu0 0
        %5437 = vmatprep.mubr.bf16.mxu0 0
        %5438 = vmatmul.mubr.bf16.gmra.mrb[0].mxu0 %v5403
        %v5439 = vpop.f32.mrb[0].mxu0
        %v5440 = vadd.f32 0.0, %v5439
        %v5441 = vpop.f32.mrb[0].mxu0
        %v5442 = vpop.f32.mrb[0].mxu0
        %v5443 = vpop.f32.mrb[0].mxu0
        %5444 = vdwg.mxu0
        %v5455 = vunpack.c.l.b16 %v5167
        %v5456 = vunpack.c.l.b16 %v5168
        %v5457 = vunpack.c.l.b16 %v5169
        %v5458 = vunpack.c.l.b16 %v5170
        %v5459 = vunpack.c.l.b16 %v5171
        %v5460 = vunpack.c.l.b16 %v5172
        %v5461 = vunpack.c.l.b16 %v5173
        %v5462 = vunpack.c.l.b16 %v5174
        %v5463 = vunpack.c.l.b16 %v5175
        %v5464 = vunpack.c.l.b16 %v5176
        %v5465 = vpack.c.b16 %v5456, %v5455
        %v5466 = vpack.c.b16 %v5458, %v5457
        %v5467 = vpack.c.b16 %v5460, %v5459
        %v5468 = vpack.c.b16 %v5462, %v5461
        %v5469 = vpack.c.b16 %v5464, %v5463
        %v5476 = vsel %vm5220, %v5163, 0
        %5478 = vmatprep.subr.bf16.mxu0 0
        %5479 = vmatpush1.bf16.msra.mxu0 %v5465
        %5480 = vmatprep.subr.bf16.mxu0 0
        %5481 = vmatpush1.bf16.msra.mxu0 %v5466
        %5482 = vmatprep.subr.bf16.mxu0 0
        %5483 = vmatpush1.bf16.msra.mxu0 %v5467
        %5484 = vmatprep.subr.bf16.mxu0 0
        %5485 = vmatpush1.bf16.msra.mxu0 %v5468
        %5486 = vmatprep.subr.bf16.mxu0 0
        %5487 = vmatpush1.bf16.msra.mxu0 %v5469
        %5488 = vmatprep.subr.bf16.mxu0 0
        %5489 = vmatpush1.bf16.msra.mxu0 0
        %5490 = vmatprep.subr.bf16.mxu0 0
        %5491 = vmatpush1.bf16.msra.mxu0 0
        %5492 = vmatprep.subr.bf16.mxu0 0
        %5493 = vmatpush1.bf16.msra.mxu0 0
        %5494 = vmatprep.subr.bf16.mxu0 0
        %5495 = vmatpush1.bf16.msra.mxu0 0
        %5496 = vmatprep.subr.bf16.mxu0 0
        %5497 = vmatpush1.bf16.msra.mxu0 0
        %5498 = vmatprep.subr.bf16.mxu0 0
        %5499 = vmatpush1.bf16.msra.mxu0 0
        %5500 = vmatprep.subr.bf16.mxu0 0
        %5501 = vmatpush1.bf16.msra.mxu0 0
        %5502 = vmatprep.subr.bf16.mxu0 0
        %5503 = vmatpush1.bf16.msra.mxu0 0
        %5504 = vmatprep.subr.bf16.mxu0 0
        %5505 = vmatpush1.bf16.msra.mxu0 0
        %5506 = vmatprep.subr.bf16.mxu0 0
        %5507 = vmatpush1.bf16.msra.mxu0 0
        %5508 = vmatprep.subr.bf16.mxu0 0
        %5509 = vmatpush1.bf16.msra.mxu0 0
        %5510 = vmatprep.mubr.bf16.mxu0 0
        %5511 = vmatmul.mubr.bf16.gmra.mrb[0].mxu0 %v5476
        %v5512 = vpop.f32.mrb[0].mxu0
        %v5513 = vadd.f32 %v5259, %v5512
        %v5514 = vpop.f32.mrb[0].mxu0
        %v5515 = vpop.f32.mrb[0].mxu0
        %v5516 = vpop.f32.mrb[0].mxu0
        %5517 = vdwg.mxu0
        %v5528 = vunpack.c.l.b16 %v5265
        %v5529 = vunpack.c.l.b16 %v5266
        %v5530 = vunpack.c.l.b16 %v5267
        %v5531 = vunpack.c.l.b16 %v5268
        %v5532 = vunpack.c.l.b16 %v5269
        %v5533 = vunpack.c.l.b16 %v5270
        %v5534 = vunpack.c.l.b16 %v5271
        %v5535 = vunpack.c.l.b16 %v5272
        %v5536 = vunpack.c.l.b16 %v5273
        %v5537 = vunpack.c.l.b16 %v5274
        %v5538 = vpack.c.b16 %v5529, %v5528
        %v5539 = vpack.c.b16 %v5531, %v5530
        %v5540 = vpack.c.b16 %v5533, %v5532
        %v5541 = vpack.c.b16 %v5535, %v5534
        %v5542 = vpack.c.b16 %v5537, %v5536
        %v5549 = vsel %vm5220, %v5164, 0
        %5551 = vmatprep.subr.bf16.mxu0 0
        %5552 = vmatpush1.bf16.msra.mxu0 %v5538
        %5553 = vmatprep.subr.bf16.mxu0 0
        %5554 = vmatpush1.bf16.msra.mxu0 %v5539
        %5555 = vmatprep.subr.bf16.mxu0 0
        %5556 = vmatpush1.bf16.msra.mxu0 %v5540
        %5557 = vmatprep.subr.bf16.mxu0 0
        %5558 = vmatpush1.bf16.msra.mxu0 %v5541
        %5559 = vmatprep.subr.bf16.mxu0 0
        %5560 = vmatpush1.bf16.msra.mxu0 %v5542
        %5561 = vmatprep.subr.bf16.mxu0 0
        %5562 = vmatpush1.bf16.msra.mxu0 0
        %5563 = vmatprep.subr.bf16.mxu0 0
        %5564 = vmatpush1.bf16.msra.mxu0 0
        %5565 = vmatprep.subr.bf16.mxu0 0
        %5566 = vmatpush1.bf16.msra.mxu0 0
        %5567 = vmatprep.subr.bf16.mxu0 0
        %5568 = vmatpush1.bf16.msra.mxu0 0
        %5569 = vmatprep.subr.bf16.mxu0 0
        %5570 = vmatpush1.bf16.msra.mxu0 0
        %5571 = vmatprep.subr.bf16.mxu0 0
        %5572 = vmatpush1.bf16.msra.mxu0 0
        %5573 = vmatprep.subr.bf16.mxu0 0
        %5574 = vmatpush1.bf16.msra.mxu0 0
        %5575 = vmatprep.subr.bf16.mxu0 0
        %5576 = vmatpush1.bf16.msra.mxu0 0
        %5577 = vmatprep.subr.bf16.mxu0 0
        %5578 = vmatpush1.bf16.msra.mxu0 0
        %5579 = vmatprep.subr.bf16.mxu0 0
        %5580 = vmatpush1.bf16.msra.mxu0 0
        %5581 = vmatprep.subr.bf16.mxu0 0
        %5582 = vmatpush1.bf16.msra.mxu0 0
        %5583 = vmatprep.mubr.bf16.mxu0 0
        %5584 = vmatmul.mubr.bf16.gmra.mrb[0].mxu0 %v5549
        %v5585 = vpop.f32.mrb[0].mxu0
        %v5586 = vadd.f32 %v5356, %v5585
        %v5587 = vpop.f32.mrb[0].mxu0
        %v5588 = vpop.f32.mrb[0].mxu0
        %v5589 = vpop.f32.mrb[0].mxu0
        %5590 = vdwg.mxu0
        %v5591 = vadd.f32 %v5513, %v5586
        %v5592 = vadd.f32 %v5591, %v5440
        %v5593 = vlaneseq
        %v5594 = vshrl.u32 %v5593, 7
        %v5595 = vsub.s32 0, %v5594
        %v5596 = vrot.slane %v5166, %v5595
        %v5597 = vadd.f32 %v5592, %v5596
        %v5598 = vmax.f32 %v5597, 0.0
        %v5599 = vpack.c.bf16 %v5598, %v5598
        %v5600 = vld [vmem:[%s10] sm:$0xf]
        %v5601 = vld [vmem:[%s10 + $0x4] sm:$0xf]
        %v5602 = vld [vmem:[%s10 + $0x8] sm:$0xf]
        %v5603 = vld [vmem:[%s10 + $0xc] sm:$0xf]
        %v5604 = vld [vmem:[%s10 + $0x10] sm:$0xf]
        %v5605 = vld [vmem:[%s10 + $0x14] sm:$0xf]
        %v5606 = vld [vmem:[%s10 + $0x18] sm:$0xf]
        %v5607 = vld [vmem:[%s10 + $0x1c] sm:$0xf]
        %v5608 = vld [vmem:[%s10 + $0x20] sm:$0xf]
        %v5609 = vld [vmem:[%s10 + $0x24] sm:$0xf]
        %v5610 = vld [vmem:[%s10 + $0x28] sm:$0xf]
        %v5611 = vld [vmem:[%s10 + $0x2c] sm:$0xf]
        %v5612 = vld [vmem:[%s10 + $0x30] sm:$0xf]
        %v5613 = vld [vmem:[%s10 + $0x34] sm:$0xf]
        %v5614 = vld [vmem:[%s10 + $0x38] sm:$0xf]
        %v5615 = vld [vmem:[%s10 + $0x3c] sm:$0xf]
        %v5616 = vlaneseq
        %v5617 = vshrl.u32 %v5616, 7
        %v5618 = vsub.s32 1, %v5617
        %v5619 = vrot.slane %v5166, %v5618
        %v5636 = vunpack.c.l.b16 %v5600
        %v5637 = vunpack.c.l.b16 %v5601
        %v5638 = vunpack.c.l.b16 %v5602
        %v5639 = vunpack.c.l.b16 %v5603
        %v5640 = vunpack.c.l.b16 %v5604
        %v5641 = vunpack.c.l.b16 %v5605
        %v5642 = vunpack.c.l.b16 %v5606
        %v5643 = vunpack.c.l.b16 %v5607
        %v5644 = vunpack.c.l.b16 %v5608
        %v5645 = vunpack.c.l.b16 %v5609
        %v5646 = vunpack.c.l.b16 %v5610
        %v5647 = vunpack.c.l.b16 %v5611
        %v5648 = vunpack.c.l.b16 %v5612
        %v5649 = vunpack.c.l.b16 %v5613
        %v5650 = vunpack.c.l.b16 %v5614
        %v5651 = vunpack.c.l.b16 %v5615
        %v5652 = vpack.c.b16 %v5637, %v5636
        %v5653 = vpack.c.b16 %v5639, %v5638
        %v5654 = vpack.c.b16 %v5641, %v5640
        %v5655 = vpack.c.b16 %v5643, %v5642
        %v5656 = vpack.c.b16 %v5645, %v5644
        %v5657 = vpack.c.b16 %v5647, %v5646
        %v5658 = vpack.c.b16 %v5649, %v5648
        %v5659 = vpack.c.b16 %v5651, %v5650
        %5668 = vmatprep.subr.bf16.mxu0 0
        %5669 = vmatpush1.bf16.msra.mxu0 %v5652
        %5670 = vmatprep.subr.bf16.mxu0 0
        %5671 = vmatpush1.bf16.msra.mxu0 %v5653
        %5672 = vmatprep.subr.bf16.mxu0 0
        %5673 = vmatpush1.bf16.msra.mxu0 %v5654
        %5674 = vmatprep.subr.bf16.mxu0 0
        %5675 = vmatpush1.bf16.msra.mxu0 %v5655
        %5676 = vmatprep.subr.bf16.mxu0 0
        %5677 = vmatpush1.bf16.msra.mxu0 %v5656
        %5678 = vmatprep.subr.bf16.mxu0 0
        %5679 = vmatpush1.bf16.msra.mxu0 %v5657
        %5680 = vmatprep.subr.bf16.mxu0 0
        %5681 = vmatpush1.bf16.msra.mxu0 %v5658
        %5682 = vmatprep.subr.bf16.mxu0 0
        %5683 = vmatpush1.bf16.msra.mxu0 %v5659
        %5684 = vmatprep.subr.bf16.mxu0 0
        %5685 = vmatpush1.bf16.msra.mxu0 0
        %5686 = vmatprep.subr.bf16.mxu0 0
        %5687 = vmatpush1.bf16.msra.mxu0 0
        %5688 = vmatprep.subr.bf16.mxu0 0
        %5689 = vmatpush1.bf16.msra.mxu0 0
        %5690 = vmatprep.subr.bf16.mxu0 0
        %5691 = vmatpush1.bf16.msra.mxu0 0
        %5692 = vmatprep.subr.bf16.mxu0 0
        %5693 = vmatpush1.bf16.msra.mxu0 0
        %5694 = vmatprep.subr.bf16.mxu0 0
        %5695 = vmatpush1.bf16.msra.mxu0 0
        %5696 = vmatprep.subr.bf16.mxu0 0
        %5697 = vmatpush1.bf16.msra.mxu0 0
        %5698 = vmatprep.subr.bf16.mxu0 0
        %5699 = vmatpush1.bf16.msra.mxu0 0
        %5700 = vmatprep.mubr.bf16.mxu0 0
        %5701 = vmatmul.mubr.bf16.gmra.mrb[0].mxu0 %v5599
        %v5702 = vpop.f32.mrb[0].mxu0
        %v5703 = vadd.f32 %v5619, %v5702
        %v5704 = vpop.f32.mrb[0].mxu0
        %v5705 = vpop.f32.mrb[0].mxu0
        %v5706 = vpop.f32.mrb[0].mxu0
        %5707 = vdwg.mxu0
        %v5708 = vmax.f32 %v5703, 0.0
        %v5709 = vpack.c.bf16 %v5708, %v5708
        %s5710 = scalar_lea.vmem %s10, 64
        %v5711 = vld [vmem:[%s5710] sm:$0xf]
        %v5712 = vld [vmem:[%s5710 + $0x4] sm:$0xf]
        %v5713 = vld [vmem:[%s5710 + $0x8] sm:$0xf]
        %v5714 = vld [vmem:[%s5710 + $0xc] sm:$0xf]
        %v5715 = vld [vmem:[%s5710 + $0x10] sm:$0xf]
        %v5716 = vld [vmem:[%s5710 + $0x14] sm:$0xf]
        %v5717 = vld [vmem:[%s5710 + $0x18] sm:$0xf]
        %v5718 = vld [vmem:[%s5710 + $0x1c] sm:$0xf]
        %v5719 = vld [vmem:[%s5710 + $0x20] sm:$0xf]
        %v5720 = vld [vmem:[%s5710 + $0x24] sm:$0xf]
        %v5721 = vld [vmem:[%s5710 + $0x28] sm:$0xf]
        %v5722 = vld [vmem:[%s5710 + $0x2c] sm:$0xf]
        %v5723 = vld [vmem:[%s5710 + $0x30] sm:$0xf]
        %v5724 = vld [vmem:[%s5710 + $0x34] sm:$0xf]
        %v5725 = vld [vmem:[%s5710 + $0x38] sm:$0xf]
        %v5726 = vld [vmem:[%s5710 + $0x3c] sm:$0xf]
        %v5727 = vlaneseq
        %v5728 = vshrl.u32 %v5727, 7
        %v5729 = vsub.s32 2, %v5728
        %v5730 = vrot.slane %v5166, %v5729
        %v5747 = vunpack.c.l.b16 %v5711
        %v5748 = vunpack.c.l.b16 %v5712
        %v5749 = vunpack.c.l.b16 %v5713
        %v5750 = vunpack.c.l.b16 %v5714
        %v5751 = vunpack.c.l.b16 %v5715
        %v5752 = vunpack.c.l.b16 %v5716
        %v5753 = vunpack.c.l.b16 %v5717
        %v5754 = vunpack.c.l.b16 %v5718
        %v5755 = vunpack.c.l.b16 %v5719
        %v5756 = vunpack.c.l.b16 %v5720
        %v5757 = vunpack.c.l.b16 %v5721
        %v5758 = vunpack.c.l.b16 %v5722
        %v5759 = vunpack.c.l.b16 %v5723
        %v5760 = vunpack.c.l.b16 %v5724
        %v5761 = vunpack.c.l.b16 %v5725
        %v5762 = vunpack.c.l.b16 %v5726
        %v5763 = vpack.c.b16 %v5748, %v5747
        %v5764 = vpack.c.b16 %v5750, %v5749
        %v5765 = vpack.c.b16 %v5752, %v5751
        %v5766 = vpack.c.b16 %v5754, %v5753
        %v5767 = vpack.c.b16 %v5756, %v5755
        %v5768 = vpack.c.b16 %v5758, %v5757
        %v5769 = vpack.c.b16 %v5760, %v5759
        %v5770 = vpack.c.b16 %v5762, %v5761
        %5779 = vmatprep.subr.bf16.mxu0 0
        %5780 = vmatpush1.bf16.msra.mxu0 %v5763
        %5781 = vmatprep.subr.bf16.mxu0 0
        %5782 = vmatpush1.bf16.msra.mxu0 %v5764
        %5783 = vmatprep.subr.bf16.mxu0 0
        %5784 = vmatpush1.bf16.msra.mxu0 %v5765
        %5785 = vmatprep.subr.bf16.mxu0 0
        %5786 = vmatpush1.bf16.msra.mxu0 %v5766
        %5787 = vmatprep.subr.bf16.mxu0 0
        %5788 = vmatpush1.bf16.msra.mxu0 %v5767
        %5789 = vmatprep.subr.bf16.mxu0 0
        %5790 = vmatpush1.bf16.msra.mxu0 %v5768
        %5791 = vmatprep.subr.bf16.mxu0 0
        %5792 = vmatpush1.bf16.msra.mxu0 %v5769
        %5793 = vmatprep.subr.bf16.mxu0 0
        %5794 = vmatpush1.bf16.msra.mxu0 %v5770
        %5795 = vmatprep.subr.bf16.mxu0 0
        %5796 = vmatpush1.bf16.msra.mxu0 0
        %5797 = vmatprep.subr.bf16.mxu0 0
        %5798 = vmatpush1.bf16.msra.mxu0 0
        %5799 = vmatprep.subr.bf16.mxu0 0
        %5800 = vmatpush1.bf16.msra.mxu0 0
        %5801 = vmatprep.subr.bf16.mxu0 0
        %5802 = vmatpush1.bf16.msra.mxu0 0
        %5803 = vmatprep.subr.bf16.mxu0 0
        %5804 = vmatpush1.bf16.msra.mxu0 0
        %5805 = vmatprep.subr.bf16.mxu0 0
        %5806 = vmatpush1.bf16.msra.mxu0 0
        %5807 = vmatprep.subr.bf16.mxu0 0
        %5808 = vmatpush1.bf16.msra.mxu0 0
        %5809 = vmatprep.subr.bf16.mxu0 0
        %5810 = vmatpush1.bf16.msra.mxu0 0
        %5811 = vmatprep.mubr.bf16.mxu0 0
        %5812 = vmatmul.mubr.bf16.gmra.mrb[0].mxu0 %v5709
        %v5813 = vpop.f32.mrb[0].mxu0
        %v5814 = vadd.f32 %v5730, %v5813
        %v5815 = vpop.f32.mrb[0].mxu0
        %v5816 = vpop.f32.mrb[0].mxu0
        %v5817 = vpop.f32.mrb[0].mxu0
        %5818 = vdwg.mxu0
        %5819 = vst [vmem:[%s406] sm:$0xff] %v5814
        %s5820 = sand.u32 %s291, 1
        %s5821 = scalar_lea.sflag [#allocation3], %s5820
        %s5822 = sand.u32 %s291, 1
        %s5823 = smul.addr %s5822, 8
        %s5824 = scalar_lea.vmem [#allocation2], %s5823
        // Predicated region
        $region69: #{net_forward.1} parent=67 // pred_check
          %p5825 = pneg %p301
        $region70: #{net_forward.1} parent=67 // pred_check_branch
          %5827 = sbr.rel (%p5825) target = $region72
        $region71: #{net_forward.1} parent=67 // pred_region
          %s5829 = ssub.s32 128, 128
          %5830 = vsyncadd %s5821, %s5829
          %s5831 = smul.addr %s26, 128
          %s5832 = scalar_lea.hbm %s12, %s5831
          %s5834 = sshll.u32 %s5824, 4
          %s5835 = int_to_ptr.vmem [resolvable:$true] %s5834
          %5837 = dma.vmem_to_hbm [thread:$0]  %s5835, 128, %s5832, %s5821
        $region72: #{net_forward.1} parent=67 // pred_fallthru
          _
      $region68: #{net_forward.1} parent=5 // pred_fallthru
        _
      %p5838 = scmp.le.s32.totalorder 2, %s21
      // Predicated region
      $region73: #{net_forward.1} parent=5 // pred_check
        %p5839 = pneg %p5838
      $region74: #{net_forward.1} parent=5 // pred_check_branch
        %5841 = sbr.rel (%p5839) target = $region76
      $region75: #{net_forward.1} parent=5 // pred_region
        %s5842 = ssub.s32 %s21, 2
        // Predicated region
        $region77: #{net_forward.1} parent=75 // pred_check
          %p5843 = pneg %p307
        $region78: #{net_forward.1} parent=75 // pred_check_branch
          %5845 = sbr.rel (%p5843) target = $region80
        $region79: #{net_forward.1} parent=75 // pred_region
          %s5846 = sand.u32 %s292, 1
          %s5847 = scalar_lea.sflag [#allocation3], %s5846
          %s5848 = sand.u32 %s292, 1
          %s5849 = smul.addr %s5848, 8
          %s5850 = scalar_lea.vmem [#allocation2], %s5849
          %5851 = dma.done %s5847, 128
        $region80: #{net_forward.1} parent=75 // pred_fallthru
          _
      $region76: #{net_forward.1} parent=5 // pred_fallthru
        _
    $region6: #{net_forward.1} parent=1 // loop_footer
      %s25 = sadd.s32 1, %s21
    $region7: #{net_forward.1} parent=1 // loop_footer_branch
      %20 = sbr.rel target = $region3
    $region8: #{net_forward.1} parent=1 // loop_exit
      _
    %5852 = vsyncpa [#allocation3], 1
    %s5853 = scalar_lea.sflag [#allocation3], 1
    %5854 = vsyncpa %s5853, 1

</llo_original>
